<compile_context>
chip_gen: v7x
topology: tpu7x:2x2x1
jax: 0.10.0
libtpu: 0.0.40
codegen_flags: <defaults>
</compile_context>

<pallas_src>
import functools

import jax
import jax.numpy as jnp
from jax.experimental import pallas as pl
from jax.experimental.pallas import tpu as pltpu  # noqa: F401  (kept for TPU backend)


# ----------------------------------------------------------------------------
# shared in-kernel helpers
# ----------------------------------------------------------------------------
def _sigmoid(v):
    return 1.0 / (1.0 + jnp.exp(-v))


def _lstm_cell(x_t, h, c, wih, whh, b, H):
    """One LSTM step with gate-packed weights: wih (I,4H), whh (H,4H), b (1,4H).

    Gate order matches PyTorch: i, f, g, o (packed along the last axis)."""
    g = (jnp.dot(x_t, wih, preferred_element_type=jnp.float32)
         + jnp.dot(h, whh, preferred_element_type=jnp.float32) + b)
    i = _sigmoid(g[:, 0 * H:1 * H])
    f = _sigmoid(g[:, 1 * H:2 * H])
    gg = jnp.tanh(g[:, 2 * H:3 * H])
    o = _sigmoid(g[:, 3 * H:4 * H])
    c_new = f * c + i * gg
    h_new = o * jnp.tanh(c_new)
    return h_new, c_new


# ----------------------------------------------------------------------------
# Kernel 1: fused lstm1 -> lstm2, returns h_n of lstm2 (== s[:, -1, :])
# ----------------------------------------------------------------------------
def _seq_lstm_kernel(x_ref, wih1_ref, whh1_ref, b1_ref,
                     wih2_ref, whh2_ref, b2_ref, out_ref, *, T, H):
    B = x_ref.shape[1]
    wih1 = wih1_ref[...]; whh1 = whh1_ref[...]; b1 = b1_ref[...]
    wih2 = wih2_ref[...]; whh2 = whh2_ref[...]; b2 = b2_ref[...]
    z = jnp.zeros((B, H), jnp.float32)

    def body(t, carry):
        h1, c1, h2, c2 = carry
        x_t = x_ref[t]                                  # (B, I)
        h1, c1 = _lstm_cell(x_t, h1, c1, wih1, whh1, b1, H)
        h2, c2 = _lstm_cell(h1, h2, c2, wih2, whh2, b2, H)
        return (h1, c1, h2, c2)

    _, _, h2, _ = jax.lax.fori_loop(0, T, body, (z, z, z, z), unroll=True)
    out_ref[...] = h2


def seq_lstm(x_tbf, wih1, whh1, b1, wih2, whh2, b2):
    """x_tbf: (T, B, I) time-major float32. Returns (B, H_pad) final hidden."""
    T, B, _ = x_tbf.shape
    H = whh1.shape[0]
    return pl.pallas_call(
        functools.partial(_seq_lstm_kernel, T=T, H=H),
        out_shape=jax.ShapeDtypeStruct((B, H), jnp.float32),
    )(x_tbf, wih1, whh1, b1, wih2, whh2, b2)


# ----------------------------------------------------------------------------
# Kernel 2: user_lstm + SDPA (role groups) + MHA over roles + mean
#           + concat([s, public_senti]) + dense1(relu) + dense2
# ----------------------------------------------------------------------------
def _user_head_kernel(lens_ref, hist_ref, wihu_ref, whhu_ref, bu_ref,
                      centers_ref, fea_ref, mask_ref, s_ref,
                      wq_ref, bq_ref, wk_ref, bk_ref, wv_ref, bv_ref,
                      wo_ref, bo_ref, wd1_ref, bd1_ref, wd2_ref, bd2_ref,
                      out_ref, *, n_heads, d_head, members):
    TH, U, _ = hist_ref.shape
    S = whhu_ref.shape[0]                                 # senti_size
    R, NMAX, VEC = fea_ref.shape

    # --- per-user LSTM over padded histories (pack_sequence emulation) -------
    wih = wihu_ref[...]; whh = whhu_ref[...]; b = bu_ref[...]
    lens = lens_ref[...]                                  # (U, 1) int32
    z = jnp.zeros((U, S), jnp.float32)

    def body(t, carry):
        h, c = carry
        h_new, c_new = _lstm_cell(hist_ref[t], h, c, wih, whh, b, S)
        live = t < lens                                   # (U, 1) bool
        return (jnp.where(live, h_new, h), jnp.where(live, c_new, c))

    h_user, _ = jax.lax.fori_loop(0, TH, body, (z, z), unroll=True)   # (U, S)

    # --- user_attention: scaled dot-product, center vs member user vectors ---
    logits = jnp.sum(centers_ref[...] * fea_ref[...], axis=-1) * (
        1.0 / float(VEC) ** 0.5)                          # (R, NMAX)
    logits = jnp.where(mask_ref[...] > 0.0, logits, -1e30)
    m = jnp.max(logits, axis=-1, keepdims=True)
    e = jnp.exp(logits - m)
    attn = e * pl.reciprocal(jnp.sum(e, axis=-1, keepdims=True), approx=True)

    # gather member sentiments per role (static trace-time grouping)
    rows = []
    for mem in members:
        mrows = [h_user[u:u + 1, :] for u in mem]
        mrows += [jnp.zeros((1, S), jnp.float32)] * (NMAX - len(mem))
        rows.append(jnp.concatenate(mrows, axis=0)[None])
    senti_pad = jnp.concatenate(rows, axis=0)             # (R, NMAX, S)
    role_senti = jnp.sum(attn[..., None] * senti_pad, axis=1)   # (R, S)

    # --- role_attention: multi-head self-attention (heads batched) + mean ----
    q = jnp.dot(role_senti, wq_ref[...],
                preferred_element_type=jnp.float32) + bq_ref[...]
    k = jnp.dot(role_senti, wk_ref[...],
                preferred_element_type=jnp.float32) + bk_ref[...]
    v = jnp.dot(role_senti, wv_ref[...],
                preferred_element_type=jnp.float32) + bv_ref[...]
    scale = 1.0 / float(d_head) ** 0.5
    heads = []
    for hh in range(n_heads):
        sl = slice(hh * d_head, (hh + 1) * d_head)
        qh, kh, vh = q[:, sl], k[:, sl], v[:, sl]
        att = jax.lax.dot_general(qh, kh, (((1,), (1,)), ((), ())),
                                  preferred_element_type=jnp.float32) * scale
        am = jnp.max(att, axis=-1, keepdims=True)
        ae = jnp.exp(att - am)
        att = ae * pl.reciprocal(jnp.sum(ae, axis=-1, keepdims=True),
                                 approx=True)
        heads.append(jnp.dot(att, vh, preferred_element_type=jnp.float32))
    head_cat = jnp.concatenate(heads, axis=-1)            # (R, n_heads*d_head)
    mha_out = jnp.dot(head_cat, wo_ref[...],
                      preferred_element_type=jnp.float32) + bo_ref[...]
    public = jnp.mean(mha_out, axis=0, keepdims=True)     # (1, S)

    # --- concat + dense1(relu) + dense2 (dropout = identity) -----------------
    feat = jnp.concatenate([s_ref[...], public], axis=-1)  # (1, H_pad + S)
    h1 = jnp.maximum(
        jnp.dot(feat, wd1_ref[...], preferred_element_type=jnp.float32)
        + bd1_ref[...], 0.0)
    out_ref[...] = (jnp.dot(h1, wd2_ref[...],
                            preferred_element_type=jnp.float32) + bd2_ref[...])


def user_head(lens, hist, wihu, whhu, bu, centers, fea, mask, s_last,
              wq, bq, wk, bk, wv, bv, wo, bo, wd1, bd1, wd2, bd2,
              *, n_heads, d_head, members):
    B = s_last.shape[0]
    OUT = wd2.shape[-1]
    return pl.pallas_call(
        functools.partial(_user_head_kernel, n_heads=n_heads,
                          d_head=d_head, members=members),
        out_shape=jax.ShapeDtypeStruct((B, OUT), jnp.float32),
    )(lens, hist, wihu, whhu, bu, centers, fea, mask, s_last,
      wq, bq, wk, bk, wv, bv, wo, bo, wd1, bd1, wd2, bd2)


# ----------------------------------------------------------------------------
# driver
# ----------------------------------------------------------------------------
if __name__ == "__main__":
    key = jax.random.PRNGKey(0)
    ks = list(jax.random.split(key, 24))

    # --- hyper-parameters implied by Ours_T ---
    B, T, IN, OUT = 1, 8, 16, 4            # args.input_size / args.output_size
    HID, H_P, SENTI = 60, 64, 128          # hidden_size (padded to 64), senti_size
    SKEP, VEC = 32, 16                     # args.skep_size, cluster vec dim
    U, R, TH, NMAX = 6, 3, 3, 2            # users, roles(k), max hist len, users/role
    N_HEADS, D_HEAD = 2, 64                # MultiHeadAttention h, d (= d_v)

    def nrm(k, shape, std=1.0):
        return std * jax.random.normal(k, shape, dtype=jnp.float32)

    def xavier(k, shape):
        fan_in, fan_out = shape
        lim = (6.0 / (fan_in + fan_out)) ** 0.5
        return jax.random.uniform(k, shape, jnp.float32, -lim, lim)

    def packed_lstm(k, i_dim, h_dim, i_pad, h_pad):
        """Gate-packed, zero-padded LSTM params: (i_pad,4*h_pad), (h_pad,4*h_pad),
        (1,4*h_pad).  Zero padding keeps padded hidden lanes exactly 0."""
        k1, k2, k3 = jax.random.split(k, 3)
        s = 1.0 / (h_dim ** 0.5)
        wih = jax.random.uniform(k1, (4, i_dim, h_dim), jnp.float32, -s, s)
        whh = jax.random.uniform(k2, (4, h_dim, h_dim), jnp.float32, -s, s)
        b = jax.random.uniform(k3, (4, 1, h_dim), jnp.float32, -s, s)  # b_ih+b_hh
        wih_p = jnp.zeros((4, i_pad, h_pad), jnp.float32).at[:, :i_dim, :h_dim].set(wih)
        whh_p = jnp.zeros((4, h_pad, h_pad), jnp.float32).at[:, :h_dim, :h_dim].set(whh)
        b_p = jnp.zeros((4, 1, h_pad), jnp.float32).at[:, :, :h_dim].set(b)
        pack = lambda a: jnp.concatenate([a[g] for g in range(4)], axis=-1)
        return pack(wih_p), pack(whh_p), pack(b_p)

    # --- parameters (deterministic) ---
    wih1, whh1, bl1 = packed_lstm(ks[0], IN, HID, IN, H_P)      # lstm1
    wih2, whh2, bl2 = packed_lstm(ks[1], HID, HID, H_P, H_P)    # lstm2
    wihu, whhu, blu = packed_lstm(ks[2], SKEP, SENTI, SKEP, SENTI)  # user_lstm

    # MultiHeadAttention projections (nn.Linear init: normal std=0.001, bias 0)
    HD = N_HEADS * D_HEAD
    wq = nrm(ks[3], (SENTI, HD), 0.001)
    wk = nrm(ks[4], (SENTI, HD), 0.001)
    wv = nrm(ks[5], (SENTI, HD), 0.001)
    wo = nrm(ks[6], (HD, SENTI), 0.001)
    bq = jnp.zeros((1, HD), jnp.float32)
    bk = jnp.zeros((1, HD), jnp.float32)
    bv = jnp.zeros((1, HD), jnp.float32)
    bo = jnp.zeros((1, SENTI), jnp.float32)

    # Dense layers (xavier_uniform weights, zero bias), padded to H_P layout
    w_d1_u = xavier(ks[7], (HID + SENTI, HID))                  # (188, 60)
    w_d1 = jnp.zeros((H_P + SENTI, H_P), jnp.float32)
    w_d1 = w_d1.at[:HID, :HID].set(w_d1_u[:HID])                # s rows
    w_d1 = w_d1.at[H_P:, :HID].set(w_d1_u[HID:])                # senti rows
    b_d1 = jnp.zeros((1, H_P), jnp.float32)
    w_d2_u = xavier(ks[8], (HID, OUT))
    w_d2 = jnp.zeros((H_P, OUT), jnp.float32).at[:HID].set(w_d2_u)
    b_d2 = jnp.zeros((1, OUT), jnp.float32)

    # --- inputs ---
    x = nrm(ks[9], (B, T, IN))                        # time-series input
    x_tbf = jnp.transpose(x, (1, 0, 2))               # time-major (T, B, IN)

    # synthetic replacement of ./train_test/*.npy contents
    text_embed = nrm(ks[10], (10, SKEP))              # "post" embeddings
    user_vec = nrm(ks[11], (U, VEC))
    cluster_center = nrm(ks[12], (R, VEC))
    cluster_id = [0, 1, 2, 0, 1, 2]
    hist_post_ids = [[0, 1], [2], [3, 4, 5], [6, 7], [8, 9, 0], [1]]
    hist_lens = [min(len(p), TH) for p in hist_post_ids]

    hist_pad = jnp.zeros((TH, U, SKEP), jnp.float32)  # time-major padded hist
    for ui, pids in enumerate(hist_post_ids):
        for ti, pid in enumerate(pids[:TH]):
            hist_pad = hist_pad.at[ti, ui].set(text_embed[pid])
    lens_u = jnp.asarray(hist_lens, jnp.int32).reshape(U, 1)

    # group users by role (order of first appearance, as defaultdict does)
    role_order = []
    for cid in cluster_id:
        if cid not in role_order:
            role_order.append(cid)
    members = tuple(tuple(i for i, c in enumerate(cluster_id) if c == rid)
                    for rid in role_order)            # static trace-time grouping
    fea_pad = jnp.zeros((R, NMAX, VEC), jnp.float32)
    grp_mask = jnp.zeros((R, NMAX), jnp.float32)
    centers = jnp.zeros((R, 1, VEC), jnp.float32)
    for r_pos, rid in enumerate(role_order):
        centers = centers.at[r_pos, 0].set(cluster_center[rid])
        for j, ui in enumerate(members[r_pos]):
            fea_pad = fea_pad.at[r_pos, j].set(user_vec[ui])
            grp_mask = grp_mask.at[r_pos, j].set(1.0)

    # ------------------------------------------------------------------
    # forward pass: 2 fused pallas_call launches
    # ------------------------------------------------------------------
    s_last = seq_lstm(x_tbf, wih1, whh1, bl1, wih2, whh2, bl2)   # (B, H_P)
    out = user_head(lens_u, hist_pad, wihu, whhu, blu,
                    centers, fea_pad, grp_mask, s_last,
                    wq, bq, wk, bk, wv, bv, wo, bo,
                    w_d1, b_d1, w_d2, b_d2,
                    n_heads=N_HEADS, d_head=D_HEAD, members=members)  # (B, OUT)

    out = jax.block_until_ready(out)
    assert out.shape == (B, OUT) and bool(jnp.all(jnp.isfinite(out)))
    print("KERNEL_OK")
</pallas_src>

<mosaic_0001>
module attributes {stable_mosaic.version = 11 : i64} {
  func.func @_seq_lstm_kernel(%arg0: memref<8x1x16xf32, #tpu.memory_space<vmem>>, %arg1: memref<16x256xf32, #tpu.memory_space<vmem>>, %arg2: memref<64x256xf32, #tpu.memory_space<vmem>>, %arg3: memref<1x256xf32, #tpu.memory_space<vmem>>, %arg4: memref<64x256xf32, #tpu.memory_space<vmem>>, %arg5: memref<64x256xf32, #tpu.memory_space<vmem>>, %arg6: memref<1x256xf32, #tpu.memory_space<vmem>>, %arg7: memref<1x64xf32, #tpu.memory_space<vmem>>) attributes {dimension_semantics = [], scalar_prefetch = 0 : i64, scratch_operands = 0 : i64, tpu.core_type = #tpu.core_type<tc>} {
    %c0 = arith.constant 0 : index
    %c0_0 = arith.constant 0 : index
    %0 = vector.load %arg1[%c0, %c0_0] : memref<16x256xf32, #tpu.memory_space<vmem>>, vector<16x256xf32>
    %c0_1 = arith.constant 0 : index
    %c0_2 = arith.constant 0 : index
    %1 = vector.load %arg2[%c0_1, %c0_2] : memref<64x256xf32, #tpu.memory_space<vmem>>, vector<64x256xf32>
    %c0_3 = arith.constant 0 : index
    %c0_4 = arith.constant 0 : index
    %2 = vector.load %arg3[%c0_3, %c0_4] : memref<1x256xf32, #tpu.memory_space<vmem>>, vector<1x256xf32>
    %c0_5 = arith.constant 0 : index
    %c0_6 = arith.constant 0 : index
    %3 = vector.load %arg4[%c0_5, %c0_6] : memref<64x256xf32, #tpu.memory_space<vmem>>, vector<64x256xf32>
    %c0_7 = arith.constant 0 : index
    %c0_8 = arith.constant 0 : index
    %4 = vector.load %arg5[%c0_7, %c0_8] : memref<64x256xf32, #tpu.memory_space<vmem>>, vector<64x256xf32>
    %c0_9 = arith.constant 0 : index
    %c0_10 = arith.constant 0 : index
    %5 = vector.load %arg6[%c0_9, %c0_10] : memref<1x256xf32, #tpu.memory_space<vmem>>, vector<1x256xf32>
    %cst = arith.constant 0.000000e+00 : f32
    %6 = vector.broadcast %cst : f32 to vector<1x64xf32>
    %c0_i32 = arith.constant 0 : i32
    %7 = arith.index_cast %c0_i32 : i32 to index
    %c0_11 = arith.constant 0 : index
    %c0_12 = arith.constant 0 : index
    %8 = vector.load %arg0[%7, %c0_11, %c0_12] : memref<8x1x16xf32, #tpu.memory_space<vmem>>, vector<1x1x16xf32>
    %9 = vector.shape_cast %8 : vector<1x1x16xf32> to vector<1x16xf32>
    %cst_13 = arith.constant dense<0.000000e+00> : vector<1x256xf32>
    %10 = tpu.matmul %9, %0, %cst_13 {dimension_numbers = #tpu.dot_dimension_numbers<[1], [0], [0], [1], [0, 0, 1, 1], [], []>} : vector<1x16xf32>, vector<16x256xf32>, vector<1x256xf32> -> vector<1x256xf32>
    %cst_14 = arith.constant dense<0.000000e+00> : vector<1x256xf32>
    %11 = tpu.matmul %6, %1, %cst_14 {dimension_numbers = #tpu.dot_dimension_numbers<[1], [0], [0], [1], [0, 0, 1, 1], [], []>} : vector<1x64xf32>, vector<64x256xf32>, vector<1x256xf32> -> vector<1x256xf32>
    %12 = arith.addf %10, %11 : vector<1x256xf32>
    %13 = arith.addf %12, %2 : vector<1x256xf32>
    %14 = vector.extract_strided_slice %13 {offsets = [0, 0], sizes = [1, 64], strides = [1, 1]} : vector<1x256xf32> to vector<1x64xf32>
    %cst_15 = arith.constant 0.000000e+00 : f32
    %15 = vector.broadcast %cst_15 : f32 to vector<1x64xf32>
    %16 = arith.subf %15, %14 : vector<1x64xf32>
    %17 = math.exp %16 : vector<1x64xf32>
    %cst_16 = arith.constant 1.000000e+00 : f32
    %18 = vector.broadcast %cst_16 : f32 to vector<1x64xf32>
    %19 = arith.addf %18, %17 : vector<1x64xf32>
    %cst_17 = arith.constant 1.000000e+00 : f32
    %20 = vector.broadcast %cst_17 : f32 to vector<1x64xf32>
    %21 = arith.divf %20, %19 : vector<1x64xf32>
    %22 = vector.extract_strided_slice %13 {offsets = [0, 64], sizes = [1, 64], strides = [1, 1]} : vector<1x256xf32> to vector<1x64xf32>
    %cst_18 = arith.constant 0.000000e+00 : f32
    %23 = vector.broadcast %cst_18 : f32 to vector<1x64xf32>
    %24 = arith.subf %23, %22 : vector<1x64xf32>
    %25 = math.exp %24 : vector<1x64xf32>
    %cst_19 = arith.constant 1.000000e+00 : f32
    %26 = vector.broadcast %cst_19 : f32 to vector<1x64xf32>
    %27 = arith.addf %26, %25 : vector<1x64xf32>
    %cst_20 = arith.constant 1.000000e+00 : f32
    %28 = vector.broadcast %cst_20 : f32 to vector<1x64xf32>
    %29 = arith.divf %28, %27 : vector<1x64xf32>
    %30 = vector.extract_strided_slice %13 {offsets = [0, 128], sizes = [1, 64], strides = [1, 1]} : vector<1x256xf32> to vector<1x64xf32>
    %31 = math.tanh %30 : vector<1x64xf32>
    %32 = vector.extract_strided_slice %13 {offsets = [0, 192], sizes = [1, 64], strides = [1, 1]} : vector<1x256xf32> to vector<1x64xf32>
    %cst_21 = arith.constant 0.000000e+00 : f32
    %33 = vector.broadcast %cst_21 : f32 to vector<1x64xf32>
    %34 = arith.subf %33, %32 : vector<1x64xf32>
    %35 = math.exp %34 : vector<1x64xf32>
    %cst_22 = arith.constant 1.000000e+00 : f32
    %36 = vector.broadcast %cst_22 : f32 to vector<1x64xf32>
    %37 = arith.addf %36, %35 : vector<1x64xf32>
    %cst_23 = arith.constant 1.000000e+00 : f32
    %38 = vector.broadcast %cst_23 : f32 to vector<1x64xf32>
    %39 = arith.divf %38, %37 : vector<1x64xf32>
    %40 = arith.mulf %29, %6 : vector<1x64xf32>
    %41 = arith.mulf %21, %31 : vector<1x64xf32>
    %42 = arith.addf %40, %41 : vector<1x64xf32>
    %43 = math.tanh %42 : vector<1x64xf32>
    %44 = arith.mulf %39, %43 : vector<1x64xf32>
    %cst_24 = arith.constant dense<0.000000e+00> : vector<1x256xf32>
    %45 = tpu.matmul %44, %3, %cst_24 {dimension_numbers = #tpu.dot_dimension_numbers<[1], [0], [0], [1], [0, 0, 1, 1], [], []>} : vector<1x64xf32>, vector<64x256xf32>, vector<1x256xf32> -> vector<1x256xf32>
    %cst_25 = arith.constant dense<0.000000e+00> : vector<1x256xf32>
    %46 = tpu.matmul %6, %4, %cst_25 {dimension_numbers = #tpu.dot_dimension_numbers<[1], [0], [0], [1], [0, 0, 1, 1], [], []>} : vector<1x64xf32>, vector<64x256xf32>, vector<1x256xf32> -> vector<1x256xf32>
    %47 = arith.addf %45, %46 : vector<1x256xf32>
    %48 = arith.addf %47, %5 : vector<1x256xf32>
    %49 = vector.extract_strided_slice %48 {offsets = [0, 0], sizes = [1, 64], strides = [1, 1]} : vector<1x256xf32> to vector<1x64xf32>
    %cst_26 = arith.constant 0.000000e+00 : f32
    %50 = vector.broadcast %cst_26 : f32 to vector<1x64xf32>
    %51 = arith.subf %50, %49 : vector<1x64xf32>
    %52 = math.exp %51 : vector<1x64xf32>
    %cst_27 = arith.constant 1.000000e+00 : f32
    %53 = vector.broadcast %cst_27 : f32 to vector<1x64xf32>
    %54 = arith.addf %53, %52 : vector<1x64xf32>
    %cst_28 = arith.constant 1.000000e+00 : f32
    %55 = vector.broadcast %cst_28 : f32 to vector<1x64xf32>
    %56 = arith.divf %55, %54 : vector<1x64xf32>
    %57 = vector.extract_strided_slice %48 {offsets = [0, 64], sizes = [1, 64], strides = [1, 1]} : vector<1x256xf32> to vector<1x64xf32>
    %cst_29 = arith.constant 0.000000e+00 : f32
    %58 = vector.broadcast %cst_29 : f32 to vector<1x64xf32>
    %59 = arith.subf %58, %57 : vector<1x64xf32>
    %60 = math.exp %59 : vector<1x64xf32>
    %cst_30 = arith.constant 1.000000e+00 : f32
    %61 = vector.broadcast %cst_30 : f32 to vector<1x64xf32>
    %62 = arith.addf %61, %60 : vector<1x64xf32>
    %cst_31 = arith.constant 1.000000e+00 : f32
    %63 = vector.broadcast %cst_31 : f32 to vector<1x64xf32>
    %64 = arith.divf %63, %62 : vector<1x64xf32>
    %65 = vector.extract_strided_slice %48 {offsets = [0, 128], sizes = [1, 64], strides = [1, 1]} : vector<1x256xf32> to vector<1x64xf32>
    %66 = math.tanh %65 : vector<1x64xf32>
    %67 = vector.extract_strided_slice %48 {offsets = [0, 192], sizes = [1, 64], strides = [1, 1]} : vector<1x256xf32> to vector<1x64xf32>
    %cst_32 = arith.constant 0.000000e+00 : f32
    %68 = vector.broadcast %cst_32 : f32 to vector<1x64xf32>
    %69 = arith.subf %68, %67 : vector<1x64xf32>
    %70 = math.exp %69 : vector<1x64xf32>
    %cst_33 = arith.constant 1.000000e+00 : f32
    %71 = vector.broadcast %cst_33 : f32 to vector<1x64xf32>
    %72 = arith.addf %71, %70 : vector<1x64xf32>
    %cst_34 = arith.constant 1.000000e+00 : f32
    %73 = vector.broadcast %cst_34 : f32 to vector<1x64xf32>
    %74 = arith.divf %73, %72 : vector<1x64xf32>
    %75 = arith.mulf %64, %6 : vector<1x64xf32>
    %76 = arith.mulf %56, %66 : vector<1x64xf32>
    %77 = arith.addf %75, %76 : vector<1x64xf32>
    %78 = math.tanh %77 : vector<1x64xf32>
    %79 = arith.mulf %74, %78 : vector<1x64xf32>
    %c1_i32 = arith.constant 1 : i32
    %80 = arith.index_cast %c1_i32 : i32 to index
    %c0_35 = arith.constant 0 : index
    %c0_36 = arith.constant 0 : index
    %81 = vector.load %arg0[%80, %c0_35, %c0_36] : memref<8x1x16xf32, #tpu.memory_space<vmem>>, vector<1x1x16xf32>
    %82 = vector.shape_cast %81 : vector<1x1x16xf32> to vector<1x16xf32>
    %cst_37 = arith.constant dense<0.000000e+00> : vector<1x256xf32>
    %83 = tpu.matmul %82, %0, %cst_37 {dimension_numbers = #tpu.dot_dimension_numbers<[1], [0], [0], [1], [0, 0, 1, 1], [], []>} : vector<1x16xf32>, vector<16x256xf32>, vector<1x256xf32> -> vector<1x256xf32>
    %cst_38 = arith.constant dense<0.000000e+00> : vector<1x256xf32>
    %84 = tpu.matmul %44, %1, %cst_38 {dimension_numbers = #tpu.dot_dimension_numbers<[1], [0], [0], [1], [0, 0, 1, 1], [], []>} : vector<1x64xf32>, vector<64x256xf32>, vector<1x256xf32> -> vector<1x256xf32>
    %85 = arith.addf %83, %84 : vector<1x256xf32>
    %86 = arith.addf %85, %2 : vector<1x256xf32>
    %87 = vector.extract_strided_slice %86 {offsets = [0, 0], sizes = [1, 64], strides = [1, 1]} : vector<1x256xf32> to vector<1x64xf32>
    %cst_39 = arith.constant 0.000000e+00 : f32
    %88 = vector.broadcast %cst_39 : f32 to vector<1x64xf32>
    %89 = arith.subf %88, %87 : vector<1x64xf32>
    %90 = math.exp %89 : vector<1x64xf32>
    %cst_40 = arith.constant 1.000000e+00 : f32
    %91 = vector.broadcast %cst_40 : f32 to vector<1x64xf32>
    %92 = arith.addf %91, %90 : vector<1x64xf32>
    %cst_41 = arith.constant 1.000000e+00 : f32
    %93 = vector.broadcast %cst_41 : f32 to vector<1x64xf32>
    %94 = arith.divf %93, %92 : vector<1x64xf32>
    %95 = vector.extract_strided_slice %86 {offsets = [0, 64], sizes = [1, 64], strides = [1, 1]} : vector<1x256xf32> to vector<1x64xf32>
    %cst_42 = arith.constant 0.000000e+00 : f32
    %96 = vector.broadcast %cst_42 : f32 to vector<1x64xf32>
    %97 = arith.subf %96, %95 : vector<1x64xf32>
    %98 = math.exp %97 : vector<1x64xf32>
    %cst_43 = arith.constant 1.000000e+00 : f32
    %99 = vector.broadcast %cst_43 : f32 to vector<1x64xf32>
    %100 = arith.addf %99, %98 : vector<1x64xf32>
    %cst_44 = arith.constant 1.000000e+00 : f32
    %101 = vector.broadcast %cst_44 : f32 to vector<1x64xf32>
    %102 = arith.divf %101, %100 : vector<1x64xf32>
    %103 = vector.extract_strided_slice %86 {offsets = [0, 128], sizes = [1, 64], strides = [1, 1]} : vector<1x256xf32> to vector<1x64xf32>
    %104 = math.tanh %103 : vector<1x64xf32>
    %105 = vector.extract_strided_slice %86 {offsets = [0, 192], sizes = [1, 64], strides = [1, 1]} : vector<1x256xf32> to vector<1x64xf32>
    %cst_45 = arith.constant 0.000000e+00 : f32
    %106 = vector.broadcast %cst_45 : f32 to vector<1x64xf32>
    %107 = arith.subf %106, %105 : vector<1x64xf32>
    %108 = math.exp %107 : vector<1x64xf32>
    %cst_46 = arith.constant 1.000000e+00 : f32
    %109 = vector.broadcast %cst_46 : f32 to vector<1x64xf32>
    %110 = arith.addf %109, %108 : vector<1x64xf32>
    %cst_47 = arith.constant 1.000000e+00 : f32
    %111 = vector.broadcast %cst_47 : f32 to vector<1x64xf32>
    %112 = arith.divf %111, %110 : vector<1x64xf32>
    %113 = arith.mulf %102, %42 : vector<1x64xf32>
    %114 = arith.mulf %94, %104 : vector<1x64xf32>
    %115 = arith.addf %113, %114 : vector<1x64xf32>
    %116 = math.tanh %115 : vector<1x64xf32>
    %117 = arith.mulf %112, %116 : vector<1x64xf32>
    %cst_48 = arith.constant dense<0.000000e+00> : vector<1x256xf32>
    %118 = tpu.matmul %117, %3, %cst_48 {dimension_numbers = #tpu.dot_dimension_numbers<[1], [0], [0], [1], [0, 0, 1, 1], [], []>} : vector<1x64xf32>, vector<64x256xf32>, vector<1x256xf32> -> vector<1x256xf32>
    %cst_49 = arith.constant dense<0.000000e+00> : vector<1x256xf32>
    %119 = tpu.matmul %79, %4, %cst_49 {dimension_numbers = #tpu.dot_dimension_numbers<[1], [0], [0], [1], [0, 0, 1, 1], [], []>} : vector<1x64xf32>, vector<64x256xf32>, vector<1x256xf32> -> vector<1x256xf32>
    %120 = arith.addf %118, %119 : vector<1x256xf32>
    %121 = arith.addf %120, %5 : vector<1x256xf32>
    %122 = vector.extract_strided_slice %121 {offsets = [0, 0], sizes = [1, 64], strides = [1, 1]} : vector<1x256xf32> to vector<1x64xf32>
    %cst_50 = arith.constant 0.000000e+00 : f32
    %123 = vector.broadcast %cst_50 : f32 to vector<1x64xf32>
    %124 = arith.subf %123, %122 : vector<1x64xf32>
    %125 = math.exp %124 : vector<1x64xf32>
    %cst_51 = arith.constant 1.000000e+00 : f32
    %126 = vector.broadcast %cst_51 : f32 to vector<1x64xf32>
    %127 = arith.addf %126, %125 : vector<1x64xf32>
    %cst_52 = arith.constant 1.000000e+00 : f32
    %128 = vector.broadcast %cst_52 : f32 to vector<1x64xf32>
    %129 = arith.divf %128, %127 : vector<1x64xf32>
    %130 = vector.extract_strided_slice %121 {offsets = [0, 64], sizes = [1, 64], strides = [1, 1]} : vector<1x256xf32> to vector<1x64xf32>
    %cst_53 = arith.constant 0.000000e+00 : f32
    %131 = vector.broadcast %cst_53 : f32 to vector<1x64xf32>
    %132 = arith.subf %131, %130 : vector<1x64xf32>
    %133 = math.exp %132 : vector<1x64xf32>
    %cst_54 = arith.constant 1.000000e+00 : f32
    %134 = vector.broadcast %cst_54 : f32 to vector<1x64xf32>
    %135 = arith.addf %134, %133 : vector<1x64xf32>
    %cst_55 = arith.constant 1.000000e+00 : f32
    %136 = vector.broadcast %cst_55 : f32 to vector<1x64xf32>
    %137 = arith.divf %136, %135 : vector<1x64xf32>
    %138 = vector.extract_strided_slice %121 {offsets = [0, 128], sizes = [1, 64], strides = [1, 1]} : vector<1x256xf32> to vector<1x64xf32>
    %139 = math.tanh %138 : vector<1x64xf32>
    %140 = vector.extract_strided_slice %121 {offsets = [0, 192], sizes = [1, 64], strides = [1, 1]} : vector<1x256xf32> to vector<1x64xf32>
    %cst_56 = arith.constant 0.000000e+00 : f32
    %141 = vector.broadcast %cst_56 : f32 to vector<1x64xf32>
    %142 = arith.subf %141, %140 : vector<1x64xf32>
    %143 = math.exp %142 : vector<1x64xf32>
    %cst_57 = arith.constant 1.000000e+00 : f32
    %144 = vector.broadcast %cst_57 : f32 to vector<1x64xf32>
    %145 = arith.addf %144, %143 : vector<1x64xf32>
    %cst_58 = arith.constant 1.000000e+00 : f32
    %146 = vector.broadcast %cst_58 : f32 to vector<1x64xf32>
    %147 = arith.divf %146, %145 : vector<1x64xf32>
    %148 = arith.mulf %137, %77 : vector<1x64xf32>
    %149 = arith.mulf %129, %139 : vector<1x64xf32>
    %150 = arith.addf %148, %149 : vector<1x64xf32>
    %151 = math.tanh %150 : vector<1x64xf32>
    %152 = arith.mulf %147, %151 : vector<1x64xf32>
    %c2_i32 = arith.constant 2 : i32
    %153 = arith.index_cast %c2_i32 : i32 to index
    %c0_59 = arith.constant 0 : index
    %c0_60 = arith.constant 0 : index
    %154 = vector.load %arg0[%153, %c0_59, %c0_60] : memref<8x1x16xf32, #tpu.memory_space<vmem>>, vector<1x1x16xf32>
    %155 = vector.shape_cast %154 : vector<1x1x16xf32> to vector<1x16xf32>
    %cst_61 = arith.constant dense<0.000000e+00> : vector<1x256xf32>
    %156 = tpu.matmul %155, %0, %cst_61 {dimension_numbers = #tpu.dot_dimension_numbers<[1], [0], [0], [1], [0, 0, 1, 1], [], []>} : vector<1x16xf32>, vector<16x256xf32>, vector<1x256xf32> -> vector<1x256xf32>
    %cst_62 = arith.constant dense<0.000000e+00> : vector<1x256xf32>
    %157 = tpu.matmul %117, %1, %cst_62 {dimension_numbers = #tpu.dot_dimension_numbers<[1], [0], [0], [1], [0, 0, 1, 1], [], []>} : vector<1x64xf32>, vector<64x256xf32>, vector<1x256xf32> -> vector<1x256xf32>
    %158 = arith.addf %156, %157 : vector<1x256xf32>
    %159 = arith.addf %158, %2 : vector<1x256xf32>
    %160 = vector.extract_strided_slice %159 {offsets = [0, 0], sizes = [1, 64], strides = [1, 1]} : vector<1x256xf32> to vector<1x64xf32>
    %cst_63 = arith.constant 0.000000e+00 : f32
    %161 = vector.broadcast %cst_63 : f32 to vector<1x64xf32>
    %162 = arith.subf %161, %160 : vector<1x64xf32>
    %163 = math.exp %162 : vector<1x64xf32>
    %cst_64 = arith.constant 1.000000e+00 : f32
    %164 = vector.broadcast %cst_64 : f32 to vector<1x64xf32>
    %165 = arith.addf %164, %163 : vector<1x64xf32>
    %cst_65 = arith.constant 1.000000e+00 : f32
    %166 = vector.broadcast %cst_65 : f32 to vector<1x64xf32>
    %167 = arith.divf %166, %165 : vector<1x64xf32>
    %168 = vector.extract_strided_slice %159 {offsets = [0, 64], sizes = [1, 64], strides = [1, 1]} : vector<1x256xf32> to vector<1x64xf32>
    %cst_66 = arith.constant 0.000000e+00 : f32
    %169 = vector.broadcast %cst_66 : f32 to vector<1x64xf32>
    %170 = arith.subf %169, %168 : vector<1x64xf32>
    %171 = math.exp %170 : vector<1x64xf32>
    %cst_67 = arith.constant 1.000000e+00 : f32
    %172 = vector.broadcast %cst_67 : f32 to vector<1x64xf32>
    %173 = arith.addf %172, %171 : vector<1x64xf32>
    %cst_68 = arith.constant 1.000000e+00 : f32
    %174 = vector.broadcast %cst_68 : f32 to vector<1x64xf32>
    %175 = arith.divf %174, %173 : vector<1x64xf32>
    %176 = vector.extract_strided_slice %159 {offsets = [0, 128], sizes = [1, 64], strides = [1, 1]} : vector<1x256xf32> to vector<1x64xf32>
    %177 = math.tanh %176 : vector<1x64xf32>
    %178 = vector.extract_strided_slice %159 {offsets = [0, 192], sizes = [1, 64], strides = [1, 1]} : vector<1x256xf32> to vector<1x64xf32>
    %cst_69 = arith.constant 0.000000e+00 : f32
    %179 = vector.broadcast %cst_69 : f32 to vector<1x64xf32>
    %180 = arith.subf %179, %178 : vector<1x64xf32>
    %181 = math.exp %180 : vector<1x64xf32>
    %cst_70 = arith.constant 1.000000e+00 : f32
    %182 = vector.broadcast %cst_70 : f32 to vector<1x64xf32>
    %183 = arith.addf %182, %181 : vector<1x64xf32>
    %cst_71 = arith.constant 1.000000e+00 : f32
    %184 = vector.broadcast %cst_71 : f32 to vector<1x64xf32>
    %185 = arith.divf %184, %183 : vector<1x64xf32>
    %186 = arith.mulf %175, %115 : vector<1x64xf32>
    %187 = arith.mulf %167, %177 : vector<1x64xf32>
    %188 = arith.addf %186, %187 : vector<1x64xf32>
    %189 = math.tanh %188 : vector<1x64xf32>
    %190 = arith.mulf %185, %189 : vector<1x64xf32>
    %cst_72 = arith.constant dense<0.000000e+00> : vector<1x256xf32>
    %191 = tpu.matmul %190, %3, %cst_72 {dimension_numbers = #tpu.dot_dimension_numbers<[1], [0], [0], [1], [0, 0, 1, 1], [], []>} : vector<1x64xf32>, vector<64x256xf32>, vector<1x256xf32> -> vector<1x256xf32>
    %cst_73 = arith.constant dense<0.000000e+00> : vector<1x256xf32>
    %192 = tpu.matmul %152, %4, %cst_73 {dimension_numbers = #tpu.dot_dimension_numbers<[1], [0], [0], [1], [0, 0, 1, 1], [], []>} : vector<1x64xf32>, vector<64x256xf32>, vector<1x256xf32> -> vector<1x256xf32>
    %193 = arith.addf %191, %192 : vector<1x256xf32>
    %194 = arith.addf %193, %5 : vector<1x256xf32>
    %195 = vector.extract_strided_slice %194 {offsets = [0, 0], sizes = [1, 64], strides = [1, 1]} : vector<1x256xf32> to vector<1x64xf32>
    %cst_74 = arith.constant 0.000000e+00 : f32
    %196 = vector.broadcast %cst_74 : f32 to vector<1x64xf32>
    %197 = arith.subf %196, %195 : vector<1x64xf32>
    %198 = math.exp %197 : vector<1x64xf32>
    %cst_75 = arith.constant 1.000000e+00 : f32
    %199 = vector.broadcast %cst_75 : f32 to vector<1x64xf32>
    %200 = arith.addf %199, %198 : vector<1x64xf32>
    %cst_76 = arith.constant 1.000000e+00 : f32
    %201 = vector.broadcast %cst_76 : f32 to vector<1x64xf32>
    %202 = arith.divf %201, %200 : vector<1x64xf32>
    %203 = vector.extract_strided_slice %194 {offsets = [0, 64], sizes = [1, 64], strides = [1, 1]} : vector<1x256xf32> to vector<1x64xf32>
    %cst_77 = arith.constant 0.000000e+00 : f32
    %204 = vector.broadcast %cst_77 : f32 to vector<1x64xf32>
    %205 = arith.subf %204, %203 : vector<1x64xf32>
    %206 = math.exp %205 : vector<1x64xf32>
    %cst_78 = arith.constant 1.000000e+00 : f32
    %207 = vector.broadcast %cst_78 : f32 to vector<1x64xf32>
    %208 = arith.addf %207, %206 : vector<1x64xf32>
    %cst_79 = arith.constant 1.000000e+00 : f32
    %209 = vector.broadcast %cst_79 : f32 to vector<1x64xf32>
    %210 = arith.divf %209, %208 : vector<1x64xf32>
    %211 = vector.extract_strided_slice %194 {offsets = [0, 128], sizes = [1, 64], strides = [1, 1]} : vector<1x256xf32> to vector<1x64xf32>
    %212 = math.tanh %211 : vector<1x64xf32>
    %213 = vector.extract_strided_slice %194 {offsets = [0, 192], sizes = [1, 64], strides = [1, 1]} : vector<1x256xf32> to vector<1x64xf32>
    %cst_80 = arith.constant 0.000000e+00 : f32
    %214 = vector.broadcast %cst_80 : f32 to vector<1x64xf32>
    %215 = arith.subf %214, %213 : vector<1x64xf32>
    %216 = math.exp %215 : vector<1x64xf32>
    %cst_81 = arith.constant 1.000000e+00 : f32
    %217 = vector.broadcast %cst_81 : f32 to vector<1x64xf32>
    %218 = arith.addf %217, %216 : vector<1x64xf32>
    %cst_82 = arith.constant 1.000000e+00 : f32
    %219 = vector.broadcast %cst_82 : f32 to vector<1x64xf32>
    %220 = arith.divf %219, %218 : vector<1x64xf32>
    %221 = arith.mulf %210, %150 : vector<1x64xf32>
    %222 = arith.mulf %202, %212 : vector<1x64xf32>
    %223 = arith.addf %221, %222 : vector<1x64xf32>
    %224 = math.tanh %223 : vector<1x64xf32>
    %225 = arith.mulf %220, %224 : vector<1x64xf32>
    %c3_i32 = arith.constant 3 : i32
    %226 = arith.index_cast %c3_i32 : i32 to index
    %c0_83 = arith.constant 0 : index
    %c0_84 = arith.constant 0 : index
    %227 = vector.load %arg0[%226, %c0_83, %c0_84] : memref<8x1x16xf32, #tpu.memory_space<vmem>>, vector<1x1x16xf32>
    %228 = vector.shape_cast %227 : vector<1x1x16xf32> to vector<1x16xf32>
    %cst_85 = arith.constant dense<0.000000e+00> : vector<1x256xf32>
    %229 = tpu.matmul %228, %0, %cst_85 {dimension_numbers = #tpu.dot_dimension_numbers<[1], [0], [0], [1], [0, 0, 1, 1], [], []>} : vector<1x16xf32>, vector<16x256xf32>, vector<1x256xf32> -> vector<1x256xf32>
    %cst_86 = arith.constant dense<0.000000e+00> : vector<1x256xf32>
    %230 = tpu.matmul %190, %1, %cst_86 {dimension_numbers = #tpu.dot_dimension_numbers<[1], [0], [0], [1], [0, 0, 1, 1], [], []>} : vector<1x64xf32>, vector<64x256xf32>, vector<1x256xf32> -> vector<1x256xf32>
    %231 = arith.addf %229, %230 : vector<1x256xf32>
    %232 = arith.addf %231, %2 : vector<1x256xf32>
    %233 = vector.extract_strided_slice %232 {offsets = [0, 0], sizes = [1, 64], strides = [1, 1]} : vector<1x256xf32> to vector<1x64xf32>
    %cst_87 = arith.constant 0.000000e+00 : f32
    %234 = vector.broadcast %cst_87 : f32 to vector<1x64xf32>
    %235 = arith.subf %234, %233 : vector<1x64xf32>
    %236 = math.exp %235 : vector<1x64xf32>
    %cst_88 = arith.constant 1.000000e+00 : f32
    %237 = vector.broadcast %cst_88 : f32 to vector<1x64xf32>
    %238 = arith.addf %237, %236 : vector<1x64xf32>
    %cst_89 = arith.constant 1.000000e+00 : f32
    %239 = vector.broadcast %cst_89 : f32 to vector<1x64xf32>
    %240 = arith.divf %239, %238 : vector<1x64xf32>
    %241 = vector.extract_strided_slice %232 {offsets = [0, 64], sizes = [1, 64], strides = [1, 1]} : vector<1x256xf32> to vector<1x64xf32>
    %cst_90 = arith.constant 0.000000e+00 : f32
    %242 = vector.broadcast %cst_90 : f32 to vector<1x64xf32>
    %243 = arith.subf %242, %241 : vector<1x64xf32>
    %244 = math.exp %243 : vector<1x64xf32>
    %cst_91 = arith.constant 1.000000e+00 : f32
    %245 = vector.broadcast %cst_91 : f32 to vector<1x64xf32>
    %246 = arith.addf %245, %244 : vector<1x64xf32>
    %cst_92 = arith.constant 1.000000e+00 : f32
    %247 = vector.broadcast %cst_92 : f32 to vector<1x64xf32>
    %248 = arith.divf %247, %246 : vector<1x64xf32>
    %249 = vector.extract_strided_slice %232 {offsets = [0, 128], sizes = [1, 64], strides = [1, 1]} : vector<1x256xf32> to vector<1x64xf32>
    %250 = math.tanh %249 : vector<1x64xf32>
    %251 = vector.extract_strided_slice %232 {offsets = [0, 192], sizes = [1, 64], strides = [1, 1]} : vector<1x256xf32> to vector<1x64xf32>
    %cst_93 = arith.constant 0.000000e+00 : f32
    %252 = vector.broadcast %cst_93 : f32 to vector<1x64xf32>
    %253 = arith.subf %252, %251 : vector<1x64xf32>
    %254 = math.exp %253 : vector<1x64xf32>
    %cst_94 = arith.constant 1.000000e+00 : f32
    %255 = vector.broadcast %cst_94 : f32 to vector<1x64xf32>
    %256 = arith.addf %255, %254 : vector<1x64xf32>
    %cst_95 = arith.constant 1.000000e+00 : f32
    %257 = vector.broadcast %cst_95 : f32 to vector<1x64xf32>
    %258 = arith.divf %257, %256 : vector<1x64xf32>
    %259 = arith.mulf %248, %188 : vector<1x64xf32>
    %260 = arith.mulf %240, %250 : vector<1x64xf32>
    %261 = arith.addf %259, %260 : vector<1x64xf32>
    %262 = math.tanh %261 : vector<1x64xf32>
    %263 = arith.mulf %258, %262 : vector<1x64xf32>
    %cst_96 = arith.constant dense<0.000000e+00> : vector<1x256xf32>
    %264 = tpu.matmul %263, %3, %cst_96 {dimension_numbers = #tpu.dot_dimension_numbers<[1], [0], [0], [1], [0, 0, 1, 1], [], []>} : vector<1x64xf32>, vector<64x256xf32>, vector<1x256xf32> -> vector<1x256xf32>
    %cst_97 = arith.constant dense<0.000000e+00> : vector<1x256xf32>
    %265 = tpu.matmul %225, %4, %cst_97 {dimension_numbers = #tpu.dot_dimension_numbers<[1], [0], [0], [1], [0, 0, 1, 1], [], []>} : vector<1x64xf32>, vector<64x256xf32>, vector<1x256xf32> -> vector<1x256xf32>
    %266 = arith.addf %264, %265 : vector<1x256xf32>
    %267 = arith.addf %266, %5 : vector<1x256xf32>
    %268 = vector.extract_strided_slice %267 {offsets = [0, 0], sizes = [1, 64], strides = [1, 1]} : vector<1x256xf32> to vector<1x64xf32>
    %cst_98 = arith.constant 0.000000e+00 : f32
    %269 = vector.broadcast %cst_98 : f32 to vector<1x64xf32>
    %270 = arith.subf %269, %268 : vector<1x64xf32>
    %271 = math.exp %270 : vector<1x64xf32>
    %cst_99 = arith.constant 1.000000e+00 : f32
    %272 = vector.broadcast %cst_99 : f32 to vector<1x64xf32>
    %273 = arith.addf %272, %271 : vector<1x64xf32>
    %cst_100 = arith.constant 1.000000e+00 : f32
    %274 = vector.broadcast %cst_100 : f32 to vector<1x64xf32>
    %275 = arith.divf %274, %273 : vector<1x64xf32>
    %276 = vector.extract_strided_slice %267 {offsets = [0, 64], sizes = [1, 64], strides = [1, 1]} : vector<1x256xf32> to vector<1x64xf32>
    %cst_101 = arith.constant 0.000000e+00 : f32
    %277 = vector.broadcast %cst_101 : f32 to vector<1x64xf32>
    %278 = arith.subf %277, %276 : vector<1x64xf32>
    %279 = math.exp %278 : vector<1x64xf32>
    %cst_102 = arith.constant 1.000000e+00 : f32
    %280 = vector.broadcast %cst_102 : f32 to vector<1x64xf32>
    %281 = arith.addf %280, %279 : vector<1x64xf32>
    %cst_103 = arith.constant 1.000000e+00 : f32
    %282 = vector.broadcast %cst_103 : f32 to vector<1x64xf32>
    %283 = arith.divf %282, %281 : vector<1x64xf32>
    %284 = vector.extract_strided_slice %267 {offsets = [0, 128], sizes = [1, 64], strides = [1, 1]} : vector<1x256xf32> to vector<1x64xf32>
    %285 = math.tanh %284 : vector<1x64xf32>
    %286 = vector.extract_strided_slice %267 {offsets = [0, 192], sizes = [1, 64], strides = [1, 1]} : vector<1x256xf32> to vector<1x64xf32>
    %cst_104 = arith.constant 0.000000e+00 : f32
    %287 = vector.broadcast %cst_104 : f32 to vector<1x64xf32>
    %288 = arith.subf %287, %286 : vector<1x64xf32>
    %289 = math.exp %288 : vector<1x64xf32>
    %cst_105 = arith.constant 1.000000e+00 : f32
    %290 = vector.broadcast %cst_105 : f32 to vector<1x64xf32>
    %291 = arith.addf %290, %289 : vector<1x64xf32>
    %cst_106 = arith.constant 1.000000e+00 : f32
    %292 = vector.broadcast %cst_106 : f32 to vector<1x64xf32>
    %293 = arith.divf %292, %291 : vector<1x64xf32>
    %294 = arith.mulf %283, %223 : vector<1x64xf32>
    %295 = arith.mulf %275, %285 : vector<1x64xf32>
    %296 = arith.addf %294, %295 : vector<1x64xf32>
    %297 = math.tanh %296 : vector<1x64xf32>
    %298 = arith.mulf %293, %297 : vector<1x64xf32>
    %c4_i32 = arith.constant 4 : i32
    %299 = arith.index_cast %c4_i32 : i32 to index
    %c0_107 = arith.constant 0 : index
    %c0_108 = arith.constant 0 : index
    %300 = vector.load %arg0[%299, %c0_107, %c0_108] : memref<8x1x16xf32, #tpu.memory_space<vmem>>, vector<1x1x16xf32>
    %301 = vector.shape_cast %300 : vector<1x1x16xf32> to vector<1x16xf32>
    %cst_109 = arith.constant dense<0.000000e+00> : vector<1x256xf32>
    %302 = tpu.matmul %301, %0, %cst_109 {dimension_numbers = #tpu.dot_dimension_numbers<[1], [0], [0], [1], [0, 0, 1, 1], [], []>} : vector<1x16xf32>, vector<16x256xf32>, vector<1x256xf32> -> vector<1x256xf32>
    %cst_110 = arith.constant dense<0.000000e+00> : vector<1x256xf32>
    %303 = tpu.matmul %263, %1, %cst_110 {dimension_numbers = #tpu.dot_dimension_numbers<[1], [0], [0], [1], [0, 0, 1, 1], [], []>} : vector<1x64xf32>, vector<64x256xf32>, vector<1x256xf32> -> vector<1x256xf32>
    %304 = arith.addf %302, %303 : vector<1x256xf32>
    %305 = arith.addf %304, %2 : vector<1x256xf32>
    %306 = vector.extract_strided_slice %305 {offsets = [0, 0], sizes = [1, 64], strides = [1, 1]} : vector<1x256xf32> to vector<1x64xf32>
    %cst_111 = arith.constant 0.000000e+00 : f32
    %307 = vector.broadcast %cst_111 : f32 to vector<1x64xf32>
    %308 = arith.subf %307, %306 : vector<1x64xf32>
    %309 = math.exp %308 : vector<1x64xf32>
    %cst_112 = arith.constant 1.000000e+00 : f32
    %310 = vector.broadcast %cst_112 : f32 to vector<1x64xf32>
    %311 = arith.addf %310, %309 : vector<1x64xf32>
    %cst_113 = arith.constant 1.000000e+00 : f32
    %312 = vector.broadcast %cst_113 : f32 to vector<1x64xf32>
    %313 = arith.divf %312, %311 : vector<1x64xf32>
    %314 = vector.extract_strided_slice %305 {offsets = [0, 64], sizes = [1, 64], strides = [1, 1]} : vector<1x256xf32> to vector<1x64xf32>
    %cst_114 = arith.constant 0.000000e+00 : f32
    %315 = vector.broadcast %cst_114 : f32 to vector<1x64xf32>
    %316 = arith.subf %315, %314 : vector<1x64xf32>
    %317 = math.exp %316 : vector<1x64xf32>
    %cst_115 = arith.constant 1.000000e+00 : f32
    %318 = vector.broadcast %cst_115 : f32 to vector<1x64xf32>
    %319 = arith.addf %318, %317 : vector<1x64xf32>
    %cst_116 = arith.constant 1.000000e+00 : f32
    %320 = vector.broadcast %cst_116 : f32 to vector<1x64xf32>
    %321 = arith.divf %320, %319 : vector<1x64xf32>
    %322 = vector.extract_strided_slice %305 {offsets = [0, 128], sizes = [1, 64], strides = [1, 1]} : vector<1x256xf32> to vector<1x64xf32>
    %323 = math.tanh %322 : vector<1x64xf32>
    %324 = vector.extract_strided_slice %305 {offsets = [0, 192], sizes = [1, 64], strides = [1, 1]} : vector<1x256xf32> to vector<1x64xf32>
    %cst_117 = arith.constant 0.000000e+00 : f32
    %325 = vector.broadcast %cst_117 : f32 to vector<1x64xf32>
    %326 = arith.subf %325, %324 : vector<1x64xf32>
    %327 = math.exp %326 : vector<1x64xf32>
    %cst_118 = arith.constant 1.000000e+00 : f32
    %328 = vector.broadcast %cst_118 : f32 to vector<1x64xf32>
    %329 = arith.addf %328, %327 : vector<1x64xf32>
    %cst_119 = arith.constant 1.000000e+00 : f32
    %330 = vector.broadcast %cst_119 : f32 to vector<1x64xf32>
    %331 = arith.divf %330, %329 : vector<1x64xf32>
    %332 = arith.mulf %321, %261 : vector<1x64xf32>
    %333 = arith.mulf %313, %323 : vector<1x64xf32>
    %334 = arith.addf %332, %333 : vector<1x64xf32>
    %335 = math.tanh %334 : vector<1x64xf32>
    %336 = arith.mulf %331, %335 : vector<1x64xf32>
    %cst_120 = arith.constant dense<0.000000e+00> : vector<1x256xf32>
    %337 = tpu.matmul %336, %3, %cst_120 {dimension_numbers = #tpu.dot_dimension_numbers<[1], [0], [0], [1], [0, 0, 1, 1], [], []>} : vector<1x64xf32>, vector<64x256xf32>, vector<1x256xf32> -> vector<1x256xf32>
    %cst_121 = arith.constant dense<0.000000e+00> : vector<1x256xf32>
    %338 = tpu.matmul %298, %4, %cst_121 {dimension_numbers = #tpu.dot_dimension_numbers<[1], [0], [0], [1], [0, 0, 1, 1], [], []>} : vector<1x64xf32>, vector<64x256xf32>, vector<1x256xf32> -> vector<1x256xf32>
    %339 = arith.addf %337, %338 : vector<1x256xf32>
    %340 = arith.addf %339, %5 : vector<1x256xf32>
    %341 = vector.extract_strided_slice %340 {offsets = [0, 0], sizes = [1, 64], strides = [1, 1]} : vector<1x256xf32> to vector<1x64xf32>
    %cst_122 = arith.constant 0.000000e+00 : f32
    %342 = vector.broadcast %cst_122 : f32 to vector<1x64xf32>
    %343 = arith.subf %342, %341 : vector<1x64xf32>
    %344 = math.exp %343 : vector<1x64xf32>
    %cst_123 = arith.constant 1.000000e+00 : f32
    %345 = vector.broadcast %cst_123 : f32 to vector<1x64xf32>
    %346 = arith.addf %345, %344 : vector<1x64xf32>
    %cst_124 = arith.constant 1.000000e+00 : f32
    %347 = vector.broadcast %cst_124 : f32 to vector<1x64xf32>
    %348 = arith.divf %347, %346 : vector<1x64xf32>
    %349 = vector.extract_strided_slice %340 {offsets = [0, 64], sizes = [1, 64], strides = [1, 1]} : vector<1x256xf32> to vector<1x64xf32>
    %cst_125 = arith.constant 0.000000e+00 : f32
    %350 = vector.broadcast %cst_125 : f32 to vector<1x64xf32>
    %351 = arith.subf %350, %349 : vector<1x64xf32>
    %352 = math.exp %351 : vector<1x64xf32>
    %cst_126 = arith.constant 1.000000e+00 : f32
    %353 = vector.broadcast %cst_126 : f32 to vector<1x64xf32>
    %354 = arith.addf %353, %352 : vector<1x64xf32>
    %cst_127 = arith.constant 1.000000e+00 : f32
    %355 = vector.broadcast %cst_127 : f32 to vector<1x64xf32>
    %356 = arith.divf %355, %354 : vector<1x64xf32>
    %357 = vector.extract_strided_slice %340 {offsets = [0, 128], sizes = [1, 64], strides = [1, 1]} : vector<1x256xf32> to vector<1x64xf32>
    %358 = math.tanh %357 : vector<1x64xf32>
    %359 = vector.extract_strided_slice %340 {offsets = [0, 192], sizes = [1, 64], strides = [1, 1]} : vector<1x256xf32> to vector<1x64xf32>
    %cst_128 = arith.constant 0.000000e+00 : f32
    %360 = vector.broadcast %cst_128 : f32 to vector<1x64xf32>
    %361 = arith.subf %360, %359 : vector<1x64xf32>
    %362 = math.exp %361 : vector<1x64xf32>
    %cst_129 = arith.constant 1.000000e+00 : f32
    %363 = vector.broadcast %cst_129 : f32 to vector<1x64xf32>
    %364 = arith.addf %363, %362 : vector<1x64xf32>
    %cst_130 = arith.constant 1.000000e+00 : f32
    %365 = vector.broadcast %cst_130 : f32 to vector<1x64xf32>
    %366 = arith.divf %365, %364 : vector<1x64xf32>
    %367 = arith.mulf %356, %296 : vector<1x64xf32>
    %368 = arith.mulf %348, %358 : vector<1x64xf32>
    %369 = arith.addf %367, %368 : vector<1x64xf32>
    %370 = math.tanh %369 : vector<1x64xf32>
    %371 = arith.mulf %366, %370 : vector<1x64xf32>
    %c5_i32 = arith.constant 5 : i32
    %372 = arith.index_cast %c5_i32 : i32 to index
    %c0_131 = arith.constant 0 : index
    %c0_132 = arith.constant 0 : index
    %373 = vector.load %arg0[%372, %c0_131, %c0_132] : memref<8x1x16xf32, #tpu.memory_space<vmem>>, vector<1x1x16xf32>
    %374 = vector.shape_cast %373 : vector<1x1x16xf32> to vector<1x16xf32>
    %cst_133 = arith.constant dense<0.000000e+00> : vector<1x256xf32>
    %375 = tpu.matmul %374, %0, %cst_133 {dimension_numbers = #tpu.dot_dimension_numbers<[1], [0], [0], [1], [0, 0, 1, 1], [], []>} : vector<1x16xf32>, vector<16x256xf32>, vector<1x256xf32> -> vector<1x256xf32>
    %cst_134 = arith.constant dense<0.000000e+00> : vector<1x256xf32>
    %376 = tpu.matmul %336, %1, %cst_134 {dimension_numbers = #tpu.dot_dimension_numbers<[1], [0], [0], [1], [0, 0, 1, 1], [], []>} : vector<1x64xf32>, vector<64x256xf32>, vector<1x256xf32> -> vector<1x256xf32>
    %377 = arith.addf %375, %376 : vector<1x256xf32>
    %378 = arith.addf %377, %2 : vector<1x256xf32>
    %379 = vector.extract_strided_slice %378 {offsets = [0, 0], sizes = [1, 64], strides = [1, 1]} : vector<1x256xf32> to vector<1x64xf32>
    %cst_135 = arith.constant 0.000000e+00 : f32
    %380 = vector.broadcast %cst_135 : f32 to vector<1x64xf32>
    %381 = arith.subf %380, %379 : vector<1x64xf32>
    %382 = math.exp %381 : vector<1x64xf32>
    %cst_136 = arith.constant 1.000000e+00 : f32
    %383 = vector.broadcast %cst_136 : f32 to vector<1x64xf32>
    %384 = arith.addf %383, %382 : vector<1x64xf32>
    %cst_137 = arith.constant 1.000000e+00 : f32
    %385 = vector.broadcast %cst_137 : f32 to vector<1x64xf32>
    %386 = arith.divf %385, %384 : vector<1x64xf32>
    %387 = vector.extract_strided_slice %378 {offsets = [0, 64], sizes = [1, 64], strides = [1, 1]} : vector<1x256xf32> to vector<1x64xf32>
    %cst_138 = arith.constant 0.000000e+00 : f32
    %388 = vector.broadcast %cst_138 : f32 to vector<1x64xf32>
    %389 = arith.subf %388, %387 : vector<1x64xf32>
    %390 = math.exp %389 : vector<1x64xf32>
    %cst_139 = arith.constant 1.000000e+00 : f32
    %391 = vector.broadcast %cst_139 : f32 to vector<1x64xf32>
    %392 = arith.addf %391, %390 : vector<1x64xf32>
    %cst_140 = arith.constant 1.000000e+00 : f32
    %393 = vector.broadcast %cst_140 : f32 to vector<1x64xf32>
    %394 = arith.divf %393, %392 : vector<1x64xf32>
    %395 = vector.extract_strided_slice %378 {offsets = [0, 128], sizes = [1, 64], strides = [1, 1]} : vector<1x256xf32> to vector<1x64xf32>
    %396 = math.tanh %395 : vector<1x64xf32>
    %397 = vector.extract_strided_slice %378 {offsets = [0, 192], sizes = [1, 64], strides = [1, 1]} : vector<1x256xf32> to vector<1x64xf32>
    %cst_141 = arith.constant 0.000000e+00 : f32
    %398 = vector.broadcast %cst_141 : f32 to vector<1x64xf32>
    %399 = arith.subf %398, %397 : vector<1x64xf32>
    %400 = math.exp %399 : vector<1x64xf32>
    %cst_142 = arith.constant 1.000000e+00 : f32
    %401 = vector.broadcast %cst_142 : f32 to vector<1x64xf32>
    %402 = arith.addf %401, %400 : vector<1x64xf32>
    %cst_143 = arith.constant 1.000000e+00 : f32
    %403 = vector.broadcast %cst_143 : f32 to vector<1x64xf32>
    %404 = arith.divf %403, %402 : vector<1x64xf32>
    %405 = arith.mulf %394, %334 : vector<1x64xf32>
    %406 = arith.mulf %386, %396 : vector<1x64xf32>
    %407 = arith.addf %405, %406 : vector<1x64xf32>
    %408 = math.tanh %407 : vector<1x64xf32>
    %409 = arith.mulf %404, %408 : vector<1x64xf32>
    %cst_144 = arith.constant dense<0.000000e+00> : vector<1x256xf32>
    %410 = tpu.matmul %409, %3, %cst_144 {dimension_numbers = #tpu.dot_dimension_numbers<[1], [0], [0], [1], [0, 0, 1, 1], [], []>} : vector<1x64xf32>, vector<64x256xf32>, vector<1x256xf32> -> vector<1x256xf32>
    %cst_145 = arith.constant dense<0.000000e+00> : vector<1x256xf32>
    %411 = tpu.matmul %371, %4, %cst_145 {dimension_numbers = #tpu.dot_dimension_numbers<[1], [0], [0], [1], [0, 0, 1, 1], [], []>} : vector<1x64xf32>, vector<64x256xf32>, vector<1x256xf32> -> vector<1x256xf32>
    %412 = arith.addf %410, %411 : vector<1x256xf32>
    %413 = arith.addf %412, %5 : vector<1x256xf32>
    %414 = vector.extract_strided_slice %413 {offsets = [0, 0], sizes = [1, 64], strides = [1, 1]} : vector<1x256xf32> to vector<1x64xf32>
    %cst_146 = arith.constant 0.000000e+00 : f32
    %415 = vector.broadcast %cst_146 : f32 to vector<1x64xf32>
    %416 = arith.subf %415, %414 : vector<1x64xf32>
    %417 = math.exp %416 : vector<1x64xf32>
    %cst_147 = arith.constant 1.000000e+00 : f32
    %418 = vector.broadcast %cst_147 : f32 to vector<1x64xf32>
    %419 = arith.addf %418, %417 : vector<1x64xf32>
    %cst_148 = arith.constant 1.000000e+00 : f32
    %420 = vector.broadcast %cst_148 : f32 to vector<1x64xf32>
    %421 = arith.divf %420, %419 : vector<1x64xf32>
    %422 = vector.extract_strided_slice %413 {offsets = [0, 64], sizes = [1, 64], strides = [1, 1]} : vector<1x256xf32> to vector<1x64xf32>
    %cst_149 = arith.constant 0.000000e+00 : f32
    %423 = vector.broadcast %cst_149 : f32 to vector<1x64xf32>
    %424 = arith.subf %423, %422 : vector<1x64xf32>
    %425 = math.exp %424 : vector<1x64xf32>
    %cst_150 = arith.constant 1.000000e+00 : f32
    %426 = vector.broadcast %cst_150 : f32 to vector<1x64xf32>
    %427 = arith.addf %426, %425 : vector<1x64xf32>
    %cst_151 = arith.constant 1.000000e+00 : f32
    %428 = vector.broadcast %cst_151 : f32 to vector<1x64xf32>
    %429 = arith.divf %428, %427 : vector<1x64xf32>
    %430 = vector.extract_strided_slice %413 {offsets = [0, 128], sizes = [1, 64], strides = [1, 1]} : vector<1x256xf32> to vector<1x64xf32>
    %431 = math.tanh %430 : vector<1x64xf32>
    %432 = vector.extract_strided_slice %413 {offsets = [0, 192], sizes = [1, 64], strides = [1, 1]} : vector<1x256xf32> to vector<1x64xf32>
    %cst_152 = arith.constant 0.000000e+00 : f32
    %433 = vector.broadcast %cst_152 : f32 to vector<1x64xf32>
    %434 = arith.subf %433, %432 : vector<1x64xf32>
    %435 = math.exp %434 : vector<1x64xf32>
    %cst_153 = arith.constant 1.000000e+00 : f32
    %436 = vector.broadcast %cst_153 : f32 to vector<1x64xf32>
    %437 = arith.addf %436, %435 : vector<1x64xf32>
    %cst_154 = arith.constant 1.000000e+00 : f32
    %438 = vector.broadcast %cst_154 : f32 to vector<1x64xf32>
    %439 = arith.divf %438, %437 : vector<1x64xf32>
    %440 = arith.mulf %429, %369 : vector<1x64xf32>
    %441 = arith.mulf %421, %431 : vector<1x64xf32>
    %442 = arith.addf %440, %441 : vector<1x64xf32>
    %443 = math.tanh %442 : vector<1x64xf32>
    %444 = arith.mulf %439, %443 : vector<1x64xf32>
    %c6_i32 = arith.constant 6 : i32
    %445 = arith.index_cast %c6_i32 : i32 to index
    %c0_155 = arith.constant 0 : index
    %c0_156 = arith.constant 0 : index
    %446 = vector.load %arg0[%445, %c0_155, %c0_156] : memref<8x1x16xf32, #tpu.memory_space<vmem>>, vector<1x1x16xf32>
    %447 = vector.shape_cast %446 : vector<1x1x16xf32> to vector<1x16xf32>
    %cst_157 = arith.constant dense<0.000000e+00> : vector<1x256xf32>
    %448 = tpu.matmul %447, %0, %cst_157 {dimension_numbers = #tpu.dot_dimension_numbers<[1], [0], [0], [1], [0, 0, 1, 1], [], []>} : vector<1x16xf32>, vector<16x256xf32>, vector<1x256xf32> -> vector<1x256xf32>
    %cst_158 = arith.constant dense<0.000000e+00> : vector<1x256xf32>
    %449 = tpu.matmul %409, %1, %cst_158 {dimension_numbers = #tpu.dot_dimension_numbers<[1], [0], [0], [1], [0, 0, 1, 1], [], []>} : vector<1x64xf32>, vector<64x256xf32>, vector<1x256xf32> -> vector<1x256xf32>
    %450 = arith.addf %448, %449 : vector<1x256xf32>
    %451 = arith.addf %450, %2 : vector<1x256xf32>
    %452 = vector.extract_strided_slice %451 {offsets = [0, 0], sizes = [1, 64], strides = [1, 1]} : vector<1x256xf32> to vector<1x64xf32>
    %cst_159 = arith.constant 0.000000e+00 : f32
    %453 = vector.broadcast %cst_159 : f32 to vector<1x64xf32>
    %454 = arith.subf %453, %452 : vector<1x64xf32>
    %455 = math.exp %454 : vector<1x64xf32>
    %cst_160 = arith.constant 1.000000e+00 : f32
    %456 = vector.broadcast %cst_160 : f32 to vector<1x64xf32>
    %457 = arith.addf %456, %455 : vector<1x64xf32>
    %cst_161 = arith.constant 1.000000e+00 : f32
    %458 = vector.broadcast %cst_161 : f32 to vector<1x64xf32>
    %459 = arith.divf %458, %457 : vector<1x64xf32>
    %460 = vector.extract_strided_slice %451 {offsets = [0, 64], sizes = [1, 64], strides = [1, 1]} : vector<1x256xf32> to vector<1x64xf32>
    %cst_162 = arith.constant 0.000000e+00 : f32
    %461 = vector.broadcast %cst_162 : f32 to vector<1x64xf32>
    %462 = arith.subf %461, %460 : vector<1x64xf32>
    %463 = math.exp %462 : vector<1x64xf32>
    %cst_163 = arith.constant 1.000000e+00 : f32
    %464 = vector.broadcast %cst_163 : f32 to vector<1x64xf32>
    %465 = arith.addf %464, %463 : vector<1x64xf32>
    %cst_164 = arith.constant 1.000000e+00 : f32
    %466 = vector.broadcast %cst_164 : f32 to vector<1x64xf32>
    %467 = arith.divf %466, %465 : vector<1x64xf32>
    %468 = vector.extract_strided_slice %451 {offsets = [0, 128], sizes = [1, 64], strides = [1, 1]} : vector<1x256xf32> to vector<1x64xf32>
    %469 = math.tanh %468 : vector<1x64xf32>
    %470 = vector.extract_strided_slice %451 {offsets = [0, 192], sizes = [1, 64], strides = [1, 1]} : vector<1x256xf32> to vector<1x64xf32>
    %cst_165 = arith.constant 0.000000e+00 : f32
    %471 = vector.broadcast %cst_165 : f32 to vector<1x64xf32>
    %472 = arith.subf %471, %470 : vector<1x64xf32>
    %473 = math.exp %472 : vector<1x64xf32>
    %cst_166 = arith.constant 1.000000e+00 : f32
    %474 = vector.broadcast %cst_166 : f32 to vector<1x64xf32>
    %475 = arith.addf %474, %473 : vector<1x64xf32>
    %cst_167 = arith.constant 1.000000e+00 : f32
    %476 = vector.broadcast %cst_167 : f32 to vector<1x64xf32>
    %477 = arith.divf %476, %475 : vector<1x64xf32>
    %478 = arith.mulf %467, %407 : vector<1x64xf32>
    %479 = arith.mulf %459, %469 : vector<1x64xf32>
    %480 = arith.addf %478, %479 : vector<1x64xf32>
    %481 = math.tanh %480 : vector<1x64xf32>
    %482 = arith.mulf %477, %481 : vector<1x64xf32>
    %cst_168 = arith.constant dense<0.000000e+00> : vector<1x256xf32>
    %483 = tpu.matmul %482, %3, %cst_168 {dimension_numbers = #tpu.dot_dimension_numbers<[1], [0], [0], [1], [0, 0, 1, 1], [], []>} : vector<1x64xf32>, vector<64x256xf32>, vector<1x256xf32> -> vector<1x256xf32>
    %cst_169 = arith.constant dense<0.000000e+00> : vector<1x256xf32>
    %484 = tpu.matmul %444, %4, %cst_169 {dimension_numbers = #tpu.dot_dimension_numbers<[1], [0], [0], [1], [0, 0, 1, 1], [], []>} : vector<1x64xf32>, vector<64x256xf32>, vector<1x256xf32> -> vector<1x256xf32>
    %485 = arith.addf %483, %484 : vector<1x256xf32>
    %486 = arith.addf %485, %5 : vector<1x256xf32>
    %487 = vector.extract_strided_slice %486 {offsets = [0, 0], sizes = [1, 64], strides = [1, 1]} : vector<1x256xf32> to vector<1x64xf32>
    %cst_170 = arith.constant 0.000000e+00 : f32
    %488 = vector.broadcast %cst_170 : f32 to vector<1x64xf32>
    %489 = arith.subf %488, %487 : vector<1x64xf32>
    %490 = math.exp %489 : vector<1x64xf32>
    %cst_171 = arith.constant 1.000000e+00 : f32
    %491 = vector.broadcast %cst_171 : f32 to vector<1x64xf32>
    %492 = arith.addf %491, %490 : vector<1x64xf32>
    %cst_172 = arith.constant 1.000000e+00 : f32
    %493 = vector.broadcast %cst_172 : f32 to vector<1x64xf32>
    %494 = arith.divf %493, %492 : vector<1x64xf32>
    %495 = vector.extract_strided_slice %486 {offsets = [0, 64], sizes = [1, 64], strides = [1, 1]} : vector<1x256xf32> to vector<1x64xf32>
    %cst_173 = arith.constant 0.000000e+00 : f32
    %496 = vector.broadcast %cst_173 : f32 to vector<1x64xf32>
    %497 = arith.subf %496, %495 : vector<1x64xf32>
    %498 = math.exp %497 : vector<1x64xf32>
    %cst_174 = arith.constant 1.000000e+00 : f32
    %499 = vector.broadcast %cst_174 : f32 to vector<1x64xf32>
    %500 = arith.addf %499, %498 : vector<1x64xf32>
    %cst_175 = arith.constant 1.000000e+00 : f32
    %501 = vector.broadcast %cst_175 : f32 to vector<1x64xf32>
    %502 = arith.divf %501, %500 : vector<1x64xf32>
    %503 = vector.extract_strided_slice %486 {offsets = [0, 128], sizes = [1, 64], strides = [1, 1]} : vector<1x256xf32> to vector<1x64xf32>
    %504 = math.tanh %503 : vector<1x64xf32>
    %505 = vector.extract_strided_slice %486 {offsets = [0, 192], sizes = [1, 64], strides = [1, 1]} : vector<1x256xf32> to vector<1x64xf32>
    %cst_176 = arith.constant 0.000000e+00 : f32
    %506 = vector.broadcast %cst_176 : f32 to vector<1x64xf32>
    %507 = arith.subf %506, %505 : vector<1x64xf32>
    %508 = math.exp %507 : vector<1x64xf32>
    %cst_177 = arith.constant 1.000000e+00 : f32
    %509 = vector.broadcast %cst_177 : f32 to vector<1x64xf32>
    %510 = arith.addf %509, %508 : vector<1x64xf32>
    %cst_178 = arith.constant 1.000000e+00 : f32
    %511 = vector.broadcast %cst_178 : f32 to vector<1x64xf32>
    %512 = arith.divf %511, %510 : vector<1x64xf32>
    %513 = arith.mulf %502, %442 : vector<1x64xf32>
    %514 = arith.mulf %494, %504 : vector<1x64xf32>
    %515 = arith.addf %513, %514 : vector<1x64xf32>
    %516 = math.tanh %515 : vector<1x64xf32>
    %517 = arith.mulf %512, %516 : vector<1x64xf32>
    %c7_i32 = arith.constant 7 : i32
    %518 = arith.index_cast %c7_i32 : i32 to index
    %c0_179 = arith.constant 0 : index
    %c0_180 = arith.constant 0 : index
    %519 = vector.load %arg0[%518, %c0_179, %c0_180] : memref<8x1x16xf32, #tpu.memory_space<vmem>>, vector<1x1x16xf32>
    %520 = vector.shape_cast %519 : vector<1x1x16xf32> to vector<1x16xf32>
    %cst_181 = arith.constant dense<0.000000e+00> : vector<1x256xf32>
    %521 = tpu.matmul %520, %0, %cst_181 {dimension_numbers = #tpu.dot_dimension_numbers<[1], [0], [0], [1], [0, 0, 1, 1], [], []>} : vector<1x16xf32>, vector<16x256xf32>, vector<1x256xf32> -> vector<1x256xf32>
    %cst_182 = arith.constant dense<0.000000e+00> : vector<1x256xf32>
    %522 = tpu.matmul %482, %1, %cst_182 {dimension_numbers = #tpu.dot_dimension_numbers<[1], [0], [0], [1], [0, 0, 1, 1], [], []>} : vector<1x64xf32>, vector<64x256xf32>, vector<1x256xf32> -> vector<1x256xf32>
    %523 = arith.addf %521, %522 : vector<1x256xf32>
    %524 = arith.addf %523, %2 : vector<1x256xf32>
    %525 = vector.extract_strided_slice %524 {offsets = [0, 0], sizes = [1, 64], strides = [1, 1]} : vector<1x256xf32> to vector<1x64xf32>
    %cst_183 = arith.constant 0.000000e+00 : f32
    %526 = vector.broadcast %cst_183 : f32 to vector<1x64xf32>
    %527 = arith.subf %526, %525 : vector<1x64xf32>
    %528 = math.exp %527 : vector<1x64xf32>
    %cst_184 = arith.constant 1.000000e+00 : f32
    %529 = vector.broadcast %cst_184 : f32 to vector<1x64xf32>
    %530 = arith.addf %529, %528 : vector<1x64xf32>
    %cst_185 = arith.constant 1.000000e+00 : f32
    %531 = vector.broadcast %cst_185 : f32 to vector<1x64xf32>
    %532 = arith.divf %531, %530 : vector<1x64xf32>
    %533 = vector.extract_strided_slice %524 {offsets = [0, 64], sizes = [1, 64], strides = [1, 1]} : vector<1x256xf32> to vector<1x64xf32>
    %cst_186 = arith.constant 0.000000e+00 : f32
    %534 = vector.broadcast %cst_186 : f32 to vector<1x64xf32>
    %535 = arith.subf %534, %533 : vector<1x64xf32>
    %536 = math.exp %535 : vector<1x64xf32>
    %cst_187 = arith.constant 1.000000e+00 : f32
    %537 = vector.broadcast %cst_187 : f32 to vector<1x64xf32>
    %538 = arith.addf %537, %536 : vector<1x64xf32>
    %cst_188 = arith.constant 1.000000e+00 : f32
    %539 = vector.broadcast %cst_188 : f32 to vector<1x64xf32>
    %540 = arith.divf %539, %538 : vector<1x64xf32>
    %541 = vector.extract_strided_slice %524 {offsets = [0, 128], sizes = [1, 64], strides = [1, 1]} : vector<1x256xf32> to vector<1x64xf32>
    %542 = math.tanh %541 : vector<1x64xf32>
    %543 = vector.extract_strided_slice %524 {offsets = [0, 192], sizes = [1, 64], strides = [1, 1]} : vector<1x256xf32> to vector<1x64xf32>
    %cst_189 = arith.constant 0.000000e+00 : f32
    %544 = vector.broadcast %cst_189 : f32 to vector<1x64xf32>
    %545 = arith.subf %544, %543 : vector<1x64xf32>
    %546 = math.exp %545 : vector<1x64xf32>
    %cst_190 = arith.constant 1.000000e+00 : f32
    %547 = vector.broadcast %cst_190 : f32 to vector<1x64xf32>
    %548 = arith.addf %547, %546 : vector<1x64xf32>
    %cst_191 = arith.constant 1.000000e+00 : f32
    %549 = vector.broadcast %cst_191 : f32 to vector<1x64xf32>
    %550 = arith.divf %549, %548 : vector<1x64xf32>
    %551 = arith.mulf %540, %480 : vector<1x64xf32>
    %552 = arith.mulf %532, %542 : vector<1x64xf32>
    %553 = arith.addf %551, %552 : vector<1x64xf32>
    %554 = math.tanh %553 : vector<1x64xf32>
    %555 = arith.mulf %550, %554 : vector<1x64xf32>
    %cst_192 = arith.constant dense<0.000000e+00> : vector<1x256xf32>
    %556 = tpu.matmul %555, %3, %cst_192 {dimension_numbers = #tpu.dot_dimension_numbers<[1], [0], [0], [1], [0, 0, 1, 1], [], []>} : vector<1x64xf32>, vector<64x256xf32>, vector<1x256xf32> -> vector<1x256xf32>
    %cst_193 = arith.constant dense<0.000000e+00> : vector<1x256xf32>
    %557 = tpu.matmul %517, %4, %cst_193 {dimension_numbers = #tpu.dot_dimension_numbers<[1], [0], [0], [1], [0, 0, 1, 1], [], []>} : vector<1x64xf32>, vector<64x256xf32>, vector<1x256xf32> -> vector<1x256xf32>
    %558 = arith.addf %556, %557 : vector<1x256xf32>
    %559 = arith.addf %558, %5 : vector<1x256xf32>
    %560 = vector.extract_strided_slice %559 {offsets = [0, 0], sizes = [1, 64], strides = [1, 1]} : vector<1x256xf32> to vector<1x64xf32>
    %cst_194 = arith.constant 0.000000e+00 : f32
    %561 = vector.broadcast %cst_194 : f32 to vector<1x64xf32>
    %562 = arith.subf %561, %560 : vector<1x64xf32>
    %563 = math.exp %562 : vector<1x64xf32>
    %cst_195 = arith.constant 1.000000e+00 : f32
    %564 = vector.broadcast %cst_195 : f32 to vector<1x64xf32>
    %565 = arith.addf %564, %563 : vector<1x64xf32>
    %cst_196 = arith.constant 1.000000e+00 : f32
    %566 = vector.broadcast %cst_196 : f32 to vector<1x64xf32>
    %567 = arith.divf %566, %565 : vector<1x64xf32>
    %568 = vector.extract_strided_slice %559 {offsets = [0, 64], sizes = [1, 64], strides = [1, 1]} : vector<1x256xf32> to vector<1x64xf32>
    %cst_197 = arith.constant 0.000000e+00 : f32
    %569 = vector.broadcast %cst_197 : f32 to vector<1x64xf32>
    %570 = arith.subf %569, %568 : vector<1x64xf32>
    %571 = math.exp %570 : vector<1x64xf32>
    %cst_198 = arith.constant 1.000000e+00 : f32
    %572 = vector.broadcast %cst_198 : f32 to vector<1x64xf32>
    %573 = arith.addf %572, %571 : vector<1x64xf32>
    %cst_199 = arith.constant 1.000000e+00 : f32
    %574 = vector.broadcast %cst_199 : f32 to vector<1x64xf32>
    %575 = arith.divf %574, %573 : vector<1x64xf32>
    %576 = vector.extract_strided_slice %559 {offsets = [0, 128], sizes = [1, 64], strides = [1, 1]} : vector<1x256xf32> to vector<1x64xf32>
    %577 = math.tanh %576 : vector<1x64xf32>
    %578 = vector.extract_strided_slice %559 {offsets = [0, 192], sizes = [1, 64], strides = [1, 1]} : vector<1x256xf32> to vector<1x64xf32>
    %cst_200 = arith.constant 0.000000e+00 : f32
    %579 = vector.broadcast %cst_200 : f32 to vector<1x64xf32>
    %580 = arith.subf %579, %578 : vector<1x64xf32>
    %581 = math.exp %580 : vector<1x64xf32>
    %cst_201 = arith.constant 1.000000e+00 : f32
    %582 = vector.broadcast %cst_201 : f32 to vector<1x64xf32>
    %583 = arith.addf %582, %581 : vector<1x64xf32>
    %cst_202 = arith.constant 1.000000e+00 : f32
    %584 = vector.broadcast %cst_202 : f32 to vector<1x64xf32>
    %585 = arith.divf %584, %583 : vector<1x64xf32>
    %586 = arith.mulf %575, %515 : vector<1x64xf32>
    %587 = arith.mulf %567, %577 : vector<1x64xf32>
    %588 = arith.addf %586, %587 : vector<1x64xf32>
    %589 = math.tanh %588 : vector<1x64xf32>
    %590 = arith.mulf %585, %589 : vector<1x64xf32>
    %c8_i32 = arith.constant 8 : i32
    %c0_203 = arith.constant 0 : index
    %c0_204 = arith.constant 0 : index
    %591 = vector.load %arg7[%c0_203, %c0_204] : memref<1x64xf32, #tpu.memory_space<vmem>>, vector<1x64xf32>
    tpu.vector_store %arg7[%c0_203, %c0_204], %590 {strides = array<i32>} : memref<1x64xf32, #tpu.memory_space<vmem>>, vector<1x64xf32>,
    return
  }
}

</mosaic_0001>

<llo_original>
// kernel: tpu_custom_call.1
$region0: #{tpu_custom_call.1}
  #allocation0 [shape = 'u32[]', space=smem, size = 0x4, offset = 0x4, fixed_abs, tag = 'smem constant byte address 0x4 - core index']
  #allocation1 [shape = 'u32[144,128]{1,0:T(1,128)}', space=vmem, size = 0x12000, scoped, tag = 'internal scratch']
  %s0 = inlined_call_operand.hbm [shape: f32[8,1,16], index: 0, kind: input, shape index: {}]
  %s1 = inlined_call_operand.hbm [shape: f32[16,256], index: 1, kind: input, shape index: {}]
  %s2 = inlined_call_operand.hbm [shape: f32[64,256], index: 2, kind: input, shape index: {}]
  %s3 = inlined_call_operand.vmem [shape: f32[1,256], index: 3, kind: input, shape index: {}]
  %s4 = inlined_call_operand.hbm [shape: f32[64,256], index: 4, kind: input, shape index: {}]
  %s5 = inlined_call_operand.hbm [shape: f32[64,256], index: 5, kind: input, shape index: {}]
  %s6 = inlined_call_operand.vmem [shape: f32[1,256], index: 6, kind: input, shape index: {}]
  %s7 = inlined_call_operand.hbm [shape: f32[1,64], index: 7, kind: output, shape index: {}]
  %s8 = sld [smem:[#allocation0]]
  $region58: #{tpu_custom_call.1} parent=0
    _
  %s10 = ssub.s32 1, %s8
  %s11 = scalar_select 0, %s10, %s8
  $region1: #{tpu_custom_call.1} parent=0
    #allocation2 [shape = 'u8[4096]{0}', space=vmem, size = 0x1000, scoped, tag = 'input window, operand 0, single buffered']
    #allocation3 [shape = 's32[1]{0}', space=sflag, size = 0x4, scoped, tag = 'scoped memory for tpu_custom_call.1']
    #allocation4 [shape = 's32[1]{0}', space=sflag, size = 0x4, scoped, tag = 'scoped memory for tpu_custom_call.1']
    #allocation5 [shape = 'u8[16384]{0}', space=vmem, size = 0x4000, scoped, tag = 'input window, operand 1, single buffered']
    #allocation6 [shape = 's32[1]{0}', space=sflag, size = 0x4, scoped, tag = 'scoped memory for tpu_custom_call.1']
    #allocation7 [shape = 'u8[65536]{0}', space=vmem, size = 0x10000, scoped, tag = 'input window, operand 2, single buffered']
    #allocation8 [shape = 'u8[65536]{0}', space=vmem, size = 0x10000, scoped, tag = 'input window, operand 4, single buffered']
    #allocation9 [shape = 's32[1]{0}', space=sflag, size = 0x4, scoped, tag = 'scoped memory for tpu_custom_call.1']
    #allocation10 [shape = 'u8[65536]{0}', space=vmem, size = 0x10000, scoped, tag = 'input window, operand 5, single buffered']
    #allocation11 [shape = 'u8[512]{0}', space=vmem, size = 0x400, scoped, tag = 'output window, operand 0, single buffered']
    %12 = vsyncpa [#allocation3], 0
    %13 = vsyncpa [#allocation6], 0
    %14 = vsyncpa [#allocation9], 0
    %15 = vsyncpa [#allocation4], 0
    // Predicated region
    $region2: #{tpu_custom_call.1} parent=1 // pred_check
      _
    $region3: #{tpu_custom_call.1} parent=1 // pred_check_branch
      %17 = sbr.rel (0) target = $region5
    $region4: #{tpu_custom_call.1} parent=1 // pred_region
      %s19 = ssub.s32 128, 128
      %20 = vsyncadd [#allocation3], %s19
      %s21 = sshll.u32 [#allocation2], 4
      %s22 = int_to_ptr.vmem [resolvable:$true] %s21
      %27 = dma.hbm_to_vmem [thread:$0]  %s0, 128, %s22, [#allocation3], 16, 16, 1
    $region5: #{tpu_custom_call.1} parent=1 // pred_fallthru
      _
    // Predicated region
    $region6: #{tpu_custom_call.1} parent=1 // pred_check
      _
    $region7: #{tpu_custom_call.1} parent=1 // pred_check_branch
      %29 = sbr.rel (0) target = $region9
    $region8: #{tpu_custom_call.1} parent=1 // pred_region
      %s31 = ssub.s32 512, 512
      %32 = vsyncadd [#allocation6], %s31
      %s33 = sshll.u32 [#allocation5], 4
      %s34 = int_to_ptr.vmem [resolvable:$true] %s33
      %39 = dma.hbm_to_vmem [thread:$0]  %s1, 512, %s34, [#allocation6], 256, 256, 16
    $region9: #{tpu_custom_call.1} parent=1 // pred_fallthru
      _
    // Predicated region
    $region10: #{tpu_custom_call.1} parent=1 // pred_check
      _
    $region11: #{tpu_custom_call.1} parent=1 // pred_check_branch
      %41 = sbr.rel (0) target = $region13
    $region12: #{tpu_custom_call.1} parent=1 // pred_region
      %s43 = ssub.s32 2048, 2048
      %44 = vsyncadd [#allocation6], %s43
      %s45 = sshll.u32 [#allocation7], 4
      %s46 = int_to_ptr.vmem [resolvable:$true] %s45
      %51 = dma.hbm_to_vmem [thread:$0]  %s2, 2048, %s46, [#allocation6], 256, 256, 16
    $region13: #{tpu_custom_call.1} parent=1 // pred_fallthru
      _
    // Predicated region
    $region14: #{tpu_custom_call.1} parent=1 // pred_check
      _
    $region15: #{tpu_custom_call.1} parent=1 // pred_check_branch
      %53 = sbr.rel (0) target = $region17
    $region16: #{tpu_custom_call.1} parent=1 // pred_region
      _
    $region17: #{tpu_custom_call.1} parent=1 // pred_fallthru
      _
    // Predicated region
    $region18: #{tpu_custom_call.1} parent=1 // pred_check
      _
    $region19: #{tpu_custom_call.1} parent=1 // pred_check_branch
      %55 = sbr.rel (0) target = $region21
    $region20: #{tpu_custom_call.1} parent=1 // pred_region
      %s57 = ssub.s32 2048, 2048
      %58 = vsyncadd [#allocation9], %s57
      %s59 = sshll.u32 [#allocation8], 4
      %s60 = int_to_ptr.vmem [resolvable:$true] %s59
      %65 = dma.hbm_to_vmem [thread:$0]  %s4, 2048, %s60, [#allocation9], 256, 256, 16
    $region21: #{tpu_custom_call.1} parent=1 // pred_fallthru
      _
    // Predicated region
    $region22: #{tpu_custom_call.1} parent=1 // pred_check
      _
    $region23: #{tpu_custom_call.1} parent=1 // pred_check_branch
      %67 = sbr.rel (0) target = $region25
    $region24: #{tpu_custom_call.1} parent=1 // pred_region
      %s69 = ssub.s32 2048, 2048
      %70 = vsyncadd [#allocation9], %s69
      %s71 = sshll.u32 [#allocation10], 4
      %s72 = int_to_ptr.vmem [resolvable:$true] %s71
      %77 = dma.hbm_to_vmem [thread:$0]  %s5, 2048, %s72, [#allocation9], 256, 256, 16
    $region25: #{tpu_custom_call.1} parent=1 // pred_fallthru
      _
    // Predicated region
    $region26: #{tpu_custom_call.1} parent=1 // pred_check
      _
    $region27: #{tpu_custom_call.1} parent=1 // pred_check_branch
      %79 = sbr.rel (0) target = $region29
    $region28: #{tpu_custom_call.1} parent=1 // pred_region
      _
    $region29: #{tpu_custom_call.1} parent=1 // pred_fallthru
      _
    // Predicated region
    $region30: #{tpu_custom_call.1} parent=1 // pred_check
      _
    $region31: #{tpu_custom_call.1} parent=1 // pred_check_branch
      %81 = sbr.rel (0) target = $region33
    $region32: #{tpu_custom_call.1} parent=1 // pred_region
      %82 = dma.done [#allocation3], 128
    $region33: #{tpu_custom_call.1} parent=1 // pred_fallthru
      _
    // Predicated region
    $region34: #{tpu_custom_call.1} parent=1 // pred_check
      _
    $region35: #{tpu_custom_call.1} parent=1 // pred_check_branch
      %84 = sbr.rel (0) target = $region37
    $region36: #{tpu_custom_call.1} parent=1 // pred_region
      %85 = dma.done [#allocation6], 512
    $region37: #{tpu_custom_call.1} parent=1 // pred_fallthru
      _
    // Predicated region
    $region38: #{tpu_custom_call.1} parent=1 // pred_check
      _
    $region39: #{tpu_custom_call.1} parent=1 // pred_check_branch
      %87 = sbr.rel (0) target = $region41
    $region40: #{tpu_custom_call.1} parent=1 // pred_region
      %88 = dma.done [#allocation6], 2048
    $region41: #{tpu_custom_call.1} parent=1 // pred_fallthru
      _
    // Predicated region
    $region42: #{tpu_custom_call.1} parent=1 // pred_check
      _
    $region43: #{tpu_custom_call.1} parent=1 // pred_check_branch
      %90 = sbr.rel (0) target = $region45
    $region44: #{tpu_custom_call.1} parent=1 // pred_region
      %91 = dma.done [#allocation9], 2048
    $region45: #{tpu_custom_call.1} parent=1 // pred_fallthru
      _
    // Predicated region
    $region46: #{tpu_custom_call.1} parent=1 // pred_check
      _
    $region47: #{tpu_custom_call.1} parent=1 // pred_check_branch
      %93 = sbr.rel (0) target = $region49
    $region48: #{tpu_custom_call.1} parent=1 // pred_region
      %94 = dma.done [#allocation9], 2048
    $region49: #{tpu_custom_call.1} parent=1 // pred_fallthru
      _
    %v95 = vld [vmem:[#allocation5] sm:$0xff]
    %v96 = vld [vmem:[#allocation5 + $0x8] sm:$0xff]
    %v97 = vld [vmem:[#allocation5 + $0x10] sm:$0xff]
    %v98 = vld [vmem:[#allocation5 + $0x18] sm:$0xff]
    %v99 = vld [vmem:[#allocation7] sm:$0xff]
    %v100 = vld [vmem:[#allocation7 + $0x8] sm:$0xff]
    %v101 = vld [vmem:[#allocation7 + $0x10] sm:$0xff]
    %v102 = vld [vmem:[#allocation7 + $0x18] sm:$0xff]
    %v103 = vld [vmem:[#allocation7 + $0x20] sm:$0xff]
    %v104 = vld [vmem:[#allocation7 + $0x28] sm:$0xff]
    %v105 = vld [vmem:[#allocation7 + $0x30] sm:$0xff]
    %v106 = vld [vmem:[#allocation7 + $0x38] sm:$0xff]
    %v107 = vld [vmem:[#allocation7 + $0x40] sm:$0xff]
    %v108 = vld [vmem:[#allocation7 + $0x48] sm:$0xff]
    %v109 = vld [vmem:[#allocation7 + $0x50] sm:$0xff]
    %v110 = vld [vmem:[#allocation7 + $0x58] sm:$0xff]
    %v111 = vld [vmem:[#allocation7 + $0x60] sm:$0xff]
    %v112 = vld [vmem:[#allocation7 + $0x68] sm:$0xff]
    %v113 = vld [vmem:[#allocation7 + $0x70] sm:$0xff]
    %v114 = vld [vmem:[#allocation7 + $0x78] sm:$0xff]
    %v115 = vld [vmem:[%s3] sm:$0x3]
    %v116 = vld [vmem:[#allocation8] sm:$0xff]
    %v117 = vld [vmem:[#allocation8 + $0x8] sm:$0xff]
    %v118 = vld [vmem:[#allocation8 + $0x10] sm:$0xff]
    %v119 = vld [vmem:[#allocation8 + $0x18] sm:$0xff]
    %v120 = vld [vmem:[#allocation8 + $0x20] sm:$0xff]
    %v121 = vld [vmem:[#allocation8 + $0x28] sm:$0xff]
    %v122 = vld [vmem:[#allocation8 + $0x30] sm:$0xff]
    %v123 = vld [vmem:[#allocation8 + $0x38] sm:$0xff]
    %v124 = vld [vmem:[#allocation8 + $0x40] sm:$0xff]
    %v125 = vld [vmem:[#allocation8 + $0x48] sm:$0xff]
    %v126 = vld [vmem:[#allocation8 + $0x50] sm:$0xff]
    %v127 = vld [vmem:[#allocation8 + $0x58] sm:$0xff]
    %v128 = vld [vmem:[#allocation8 + $0x60] sm:$0xff]
    %v129 = vld [vmem:[#allocation8 + $0x68] sm:$0xff]
    %v130 = vld [vmem:[#allocation8 + $0x70] sm:$0xff]
    %v131 = vld [vmem:[#allocation8 + $0x78] sm:$0xff]
    %v132 = vld [vmem:[#allocation10] sm:$0xff]
    %v133 = vld [vmem:[#allocation10 + $0x8] sm:$0xff]
    %v134 = vld [vmem:[#allocation10 + $0x10] sm:$0xff]
    %v135 = vld [vmem:[#allocation10 + $0x18] sm:$0xff]
    %v136 = vld [vmem:[#allocation10 + $0x20] sm:$0xff]
    %v137 = vld [vmem:[#allocation10 + $0x28] sm:$0xff]
    %v138 = vld [vmem:[#allocation10 + $0x30] sm:$0xff]
    %v139 = vld [vmem:[#allocation10 + $0x38] sm:$0xff]
    %v140 = vld [vmem:[#allocation10 + $0x40] sm:$0xff]
    %v141 = vld [vmem:[#allocation10 + $0x48] sm:$0xff]
    %v142 = vld [vmem:[#allocation10 + $0x50] sm:$0xff]
    %v143 = vld [vmem:[#allocation10 + $0x58] sm:$0xff]
    %v144 = vld [vmem:[#allocation10 + $0x60] sm:$0xff]
    %v145 = vld [vmem:[#allocation10 + $0x68] sm:$0xff]
    %v146 = vld [vmem:[#allocation10 + $0x70] sm:$0xff]
    %v147 = vld [vmem:[#allocation10 + $0x78] sm:$0xff]
    %v148 = vld [vmem:[%s6] sm:$0x3]
    %v149 = vld [vmem:[#allocation2] sm:$0x1]
    %vm150 = vcmask 523264
    %v152 = vsel %vm150, 0.0, 0
    %154 = vmatprep.subr.mxu0 %v100
    %155 = vmatpush1.msra.mxu0 %v99
    %156 = vmatprep.subr.mxu0 %v102
    %157 = vmatpush1.msra.mxu0 %v101
    %158 = vmatprep.subr.mxu0 %v104
    %159 = vmatpush1.msra.mxu0 %v103
    %160 = vmatprep.subr.mxu0 %v106
    %161 = vmatpush1.msra.mxu0 %v105
    %162 = vmatprep.subr.mxu0 %v108
    %163 = vmatpush1.msra.mxu0 %v107
    %164 = vmatprep.subr.mxu0 %v110
    %165 = vmatpush1.msra.mxu0 %v109
    %166 = vmatprep.subr.mxu0 %v112
    %167 = vmatpush1.msra.mxu0 %v111
    %168 = vmatprep.subr.mxu0 %v114
    %169 = vmatpush1.msra.mxu0 %v113
    %170 = vmatprep.subr.mxu0 0.0
    %171 = vmatpush1.msra.mxu0 0.0
    %172 = vmatprep.subr.mxu0 0.0
    %173 = vmatpush1.msra.mxu0 0.0
    %174 = vmatprep.subr.mxu0 0.0
    %175 = vmatpush1.msra.mxu0 0.0
    %176 = vmatprep.subr.mxu0 0.0
    %177 = vmatpush1.msra.mxu0 0.0
    %178 = vmatprep.subr.mxu0 0.0
    %179 = vmatpush1.msra.mxu0 0.0
    %180 = vmatprep.subr.mxu0 0.0
    %181 = vmatpush1.msra.mxu0 0.0
    %182 = vmatprep.subr.mxu0 0.0
    %183 = vmatpush1.msra.mxu0 0.0
    %184 = vmatprep.subr.mxu0 0.0
    %185 = vmatpush1.msra.mxu0 0.0
    %186 = vmatprep.subr.mxu0 0.0
    %187 = vmatpush1.msra.mxu0 0.0
    %188 = vmatprep.subr.mxu0 0.0
    %189 = vmatpush1.msra.mxu0 0.0
    %190 = vmatprep.subr.mxu0 0.0
    %191 = vmatpush1.msra.mxu0 0.0
    %192 = vmatprep.subr.mxu0 0.0
    %193 = vmatpush1.msra.mxu0 0.0
    %194 = vmatprep.subr.mxu0 0.0
    %195 = vmatpush1.msra.mxu0 0.0
    %196 = vmatprep.subr.mxu0 0.0
    %197 = vmatpush1.msra.mxu0 0.0
    %198 = vmatprep.subr.mxu0 0.0
    %199 = vmatpush1.msra.mxu0 0.0
    %200 = vmatprep.subr.mxu0 0.0
    %201 = vmatpush1.msra.mxu0 0.0
    %202 = vmatprep.subr.mxu0 0.0
    %203 = vmatpush1.msra.mxu0 0.0
    %204 = vmatprep.subr.mxu0 0.0
    %205 = vmatpush1.msra.mxu0 0.0
    %206 = vmatprep.subr.mxu0 0.0
    %207 = vmatpush1.msra.mxu0 0.0
    %208 = vmatprep.subr.mxu0 0.0
    %209 = vmatpush1.msra.mxu0 0.0
    %210 = vmatprep.subr.mxu0 0.0
    %211 = vmatpush1.msra.mxu0 0.0
    %212 = vmatprep.subr.mxu0 0.0
    %213 = vmatpush1.msra.mxu0 0.0
    %214 = vmatprep.subr.mxu0 0.0
    %215 = vmatpush1.msra.mxu0 0.0
    %216 = vmatprep.subr.mxu0 0.0
    %217 = vmatpush1.msra.mxu0 0.0
    %218 = vmatprep.mubr.f32.mxu0 0.0
    %219 = vmatmul.mubr.f32.gmra.mrb[0].mxu0 %v152
    %v220 = vpop.f32.mrb[0].mxu0
    %v221 = vadd.f32 0.0, %v220
    %v222 = vpop.f32.mrb[0].mxu0
    %v223 = vadd.f32 0.0, %v222
    %224 = vdwg.mxu0
    %vm225 = vcmask 130048
    %v227 = vsel %vm225, %v149, 0
    %229 = vmatprep.subr.mxu0 %v96
    %230 = vmatpush1.msra.mxu0 %v95
    %231 = vmatprep.subr.mxu0 %v98
    %232 = vmatpush1.msra.mxu0 %v97
    %233 = vmatprep.subr.mxu0 0.0
    %234 = vmatpush1.msra.mxu0 0.0
    %235 = vmatprep.subr.mxu0 0.0
    %236 = vmatpush1.msra.mxu0 0.0
    %237 = vmatprep.subr.mxu0 0.0
    %238 = vmatpush1.msra.mxu0 0.0
    %239 = vmatprep.subr.mxu0 0.0
    %240 = vmatpush1.msra.mxu0 0.0
    %241 = vmatprep.subr.mxu0 0.0
    %242 = vmatpush1.msra.mxu0 0.0
    %243 = vmatprep.subr.mxu0 0.0
    %244 = vmatpush1.msra.mxu0 0.0
    %245 = vmatprep.subr.mxu0 0.0
    %246 = vmatpush1.msra.mxu0 0.0
    %247 = vmatprep.subr.mxu0 0.0
    %248 = vmatpush1.msra.mxu0 0.0
    %249 = vmatprep.subr.mxu0 0.0
    %250 = vmatpush1.msra.mxu0 0.0
    %251 = vmatprep.subr.mxu0 0.0
    %252 = vmatpush1.msra.mxu0 0.0
    %253 = vmatprep.subr.mxu0 0.0
    %254 = vmatpush1.msra.mxu0 0.0
    %255 = vmatprep.subr.mxu0 0.0
    %256 = vmatpush1.msra.mxu0 0.0
    %257 = vmatprep.subr.mxu0 0.0
    %258 = vmatpush1.msra.mxu0 0.0
    %259 = vmatprep.subr.mxu0 0.0
    %260 = vmatpush1.msra.mxu0 0.0
    %261 = vmatprep.subr.mxu0 0.0
    %262 = vmatpush1.msra.mxu0 0.0
    %263 = vmatprep.subr.mxu0 0.0
    %264 = vmatpush1.msra.mxu0 0.0
    %265 = vmatprep.subr.mxu0 0.0
    %266 = vmatpush1.msra.mxu0 0.0
    %267 = vmatprep.subr.mxu0 0.0
    %268 = vmatpush1.msra.mxu0 0.0
    %269 = vmatprep.subr.mxu0 0.0
    %270 = vmatpush1.msra.mxu0 0.0
    %271 = vmatprep.subr.mxu0 0.0
    %272 = vmatpush1.msra.mxu0 0.0
    %273 = vmatprep.subr.mxu0 0.0
    %274 = vmatpush1.msra.mxu0 0.0
    %275 = vmatprep.subr.mxu0 0.0
    %276 = vmatpush1.msra.mxu0 0.0
    %277 = vmatprep.subr.mxu0 0.0
    %278 = vmatpush1.msra.mxu0 0.0
    %279 = vmatprep.subr.mxu0 0.0
    %280 = vmatpush1.msra.mxu0 0.0
    %281 = vmatprep.subr.mxu0 0.0
    %282 = vmatpush1.msra.mxu0 0.0
    %283 = vmatprep.subr.mxu0 0.0
    %284 = vmatpush1.msra.mxu0 0.0
    %285 = vmatprep.subr.mxu0 0.0
    %286 = vmatpush1.msra.mxu0 0.0
    %287 = vmatprep.subr.mxu0 0.0
    %288 = vmatpush1.msra.mxu0 0.0
    %289 = vmatprep.subr.mxu0 0.0
    %290 = vmatpush1.msra.mxu0 0.0
    %291 = vmatprep.subr.mxu0 0.0
    %292 = vmatpush1.msra.mxu0 0.0
    %293 = vmatprep.mubr.f32.mxu0 0.0
    %294 = vmatmul.mubr.f32.gmra.mrb[0].mxu0 %v227
    %v295 = vpop.f32.mrb[0].mxu0
    %v296 = vadd.f32 %v221, %v295
    %v297 = vpop.f32.mrb[0].mxu0
    %v298 = vadd.f32 %v223, %v297
    %299 = vdwg.mxu0
    %v301 = vlaneseq
    %v302 = vshrl.u32 %v301, 7
    %v303 = vsub.s32 0, %v302
    %v304 = vrot.slane %v115, %v303
    %v305 = vlaneseq
    %v306 = vshrl.u32 %v305, 7
    %v307 = vsub.s32 1, %v306
    %v308 = vrot.slane %v115, %v307
    %v311 = vadd.f32 %v296, %v304
    %v312 = vadd.f32 %v298, %v308
    %v313 = vsub.f32 0.0, %v311
    %v314 = vmul.f32 %v313, 1.442695
    %v315 = vpow.pop %v314
    %v316 = vadd.f32 %v315, 1.0
    %v317 = vrcp.pop %v316
    %v318 = vmul.f32 1.0, %v317
    %v319 = vtanh.pop %v312
    %v320 = vsub.f32 0.0, %v312
    %v321 = vmul.f32 %v320, 1.442695
    %v322 = vpow.pop %v321
    %v323 = vadd.f32 %v322, 1.0
    %v324 = vrcp.pop %v323
    %v325 = vmul.f32 1.0, %v324
    %v326 = vmul.f32 %v318, 0.0
    %v327 = vmul.f32 %v318, %v319
    %329 = vrot.lane.b32.xlu0 %v327, 64
    %v330 = vpop.permute.xlu0 %329
    %v332 = vadd.f32 %v326, %v330
    %v333 = vtanh.pop %v332
    %v334 = vmul.f32 %v325, %v333
    %335 = vmatprep.subr.mxu0 %v133
    %336 = vmatpush1.msra.mxu0 %v132
    %337 = vmatprep.subr.mxu0 %v135
    %338 = vmatpush1.msra.mxu0 %v134
    %339 = vmatprep.subr.mxu0 %v137
    %340 = vmatpush1.msra.mxu0 %v136
    %341 = vmatprep.subr.mxu0 %v139
    %342 = vmatpush1.msra.mxu0 %v138
    %343 = vmatprep.subr.mxu0 %v141
    %344 = vmatpush1.msra.mxu0 %v140
    %345 = vmatprep.subr.mxu0 %v143
    %346 = vmatpush1.msra.mxu0 %v142
    %347 = vmatprep.subr.mxu0 %v145
    %348 = vmatpush1.msra.mxu0 %v144
    %349 = vmatprep.subr.mxu0 %v147
    %350 = vmatpush1.msra.mxu0 %v146
    %351 = vmatprep.subr.mxu0 0.0
    %352 = vmatpush1.msra.mxu0 0.0
    %353 = vmatprep.subr.mxu0 0.0
    %354 = vmatpush1.msra.mxu0 0.0
    %355 = vmatprep.subr.mxu0 0.0
    %356 = vmatpush1.msra.mxu0 0.0
    %357 = vmatprep.subr.mxu0 0.0
    %358 = vmatpush1.msra.mxu0 0.0
    %359 = vmatprep.subr.mxu0 0.0
    %360 = vmatpush1.msra.mxu0 0.0
    %361 = vmatprep.subr.mxu0 0.0
    %362 = vmatpush1.msra.mxu0 0.0
    %363 = vmatprep.subr.mxu0 0.0
    %364 = vmatpush1.msra.mxu0 0.0
    %365 = vmatprep.subr.mxu0 0.0
    %366 = vmatpush1.msra.mxu0 0.0
    %367 = vmatprep.subr.mxu0 0.0
    %368 = vmatpush1.msra.mxu0 0.0
    %369 = vmatprep.subr.mxu0 0.0
    %370 = vmatpush1.msra.mxu0 0.0
    %371 = vmatprep.subr.mxu0 0.0
    %372 = vmatpush1.msra.mxu0 0.0
    %373 = vmatprep.subr.mxu0 0.0
    %374 = vmatpush1.msra.mxu0 0.0
    %375 = vmatprep.subr.mxu0 0.0
    %376 = vmatpush1.msra.mxu0 0.0
    %377 = vmatprep.subr.mxu0 0.0
    %378 = vmatpush1.msra.mxu0 0.0
    %379 = vmatprep.subr.mxu0 0.0
    %380 = vmatpush1.msra.mxu0 0.0
    %381 = vmatprep.subr.mxu0 0.0
    %382 = vmatpush1.msra.mxu0 0.0
    %383 = vmatprep.subr.mxu0 0.0
    %384 = vmatpush1.msra.mxu0 0.0
    %385 = vmatprep.subr.mxu0 0.0
    %386 = vmatpush1.msra.mxu0 0.0
    %387 = vmatprep.subr.mxu0 0.0
    %388 = vmatpush1.msra.mxu0 0.0
    %389 = vmatprep.subr.mxu0 0.0
    %390 = vmatpush1.msra.mxu0 0.0
    %391 = vmatprep.subr.mxu0 0.0
    %392 = vmatpush1.msra.mxu0 0.0
    %393 = vmatprep.subr.mxu0 0.0
    %394 = vmatpush1.msra.mxu0 0.0
    %395 = vmatprep.subr.mxu0 0.0
    %396 = vmatpush1.msra.mxu0 0.0
    %397 = vmatprep.subr.mxu0 0.0
    %398 = vmatpush1.msra.mxu0 0.0
    %399 = vmatprep.mubr.f32.mxu0 0.0
    %400 = vmatmul.mubr.f32.gmra.mrb[0].mxu0 %v152
    %v401 = vpop.f32.mrb[0].mxu0
    %v402 = vadd.f32 0.0, %v401
    %v403 = vpop.f32.mrb[0].mxu0
    %v404 = vadd.f32 0.0, %v403
    %405 = vdwg.mxu0
    %407 = vrot.lane.b32.xlu0 %v334, 64
    %v408 = vpop.permute.xlu0 %407
    %v409 = vsel %vm150, %v408, 0
    %411 = vmatprep.subr.mxu0 %v117
    %412 = vmatpush1.msra.mxu0 %v116
    %413 = vmatprep.subr.mxu0 %v119
    %414 = vmatpush1.msra.mxu0 %v118
    %415 = vmatprep.subr.mxu0 %v121
    %416 = vmatpush1.msra.mxu0 %v120
    %417 = vmatprep.subr.mxu0 %v123
    %418 = vmatpush1.msra.mxu0 %v122
    %419 = vmatprep.subr.mxu0 %v125
    %420 = vmatpush1.msra.mxu0 %v124
    %421 = vmatprep.subr.mxu0 %v127
    %422 = vmatpush1.msra.mxu0 %v126
    %423 = vmatprep.subr.mxu0 %v129
    %424 = vmatpush1.msra.mxu0 %v128
    %425 = vmatprep.subr.mxu0 %v131
    %426 = vmatpush1.msra.mxu0 %v130
    %427 = vmatprep.subr.mxu0 0.0
    %428 = vmatpush1.msra.mxu0 0.0
    %429 = vmatprep.subr.mxu0 0.0
    %430 = vmatpush1.msra.mxu0 0.0
    %431 = vmatprep.subr.mxu0 0.0
    %432 = vmatpush1.msra.mxu0 0.0
    %433 = vmatprep.subr.mxu0 0.0
    %434 = vmatpush1.msra.mxu0 0.0
    %435 = vmatprep.subr.mxu0 0.0
    %436 = vmatpush1.msra.mxu0 0.0
    %437 = vmatprep.subr.mxu0 0.0
    %438 = vmatpush1.msra.mxu0 0.0
    %439 = vmatprep.subr.mxu0 0.0
    %440 = vmatpush1.msra.mxu0 0.0
    %441 = vmatprep.subr.mxu0 0.0
    %442 = vmatpush1.msra.mxu0 0.0
    %443 = vmatprep.subr.mxu0 0.0
    %444 = vmatpush1.msra.mxu0 0.0
    %445 = vmatprep.subr.mxu0 0.0
    %446 = vmatpush1.msra.mxu0 0.0
    %447 = vmatprep.subr.mxu0 0.0
    %448 = vmatpush1.msra.mxu0 0.0
    %449 = vmatprep.subr.mxu0 0.0
    %450 = vmatpush1.msra.mxu0 0.0
    %451 = vmatprep.subr.mxu0 0.0
    %452 = vmatpush1.msra.mxu0 0.0
    %453 = vmatprep.subr.mxu0 0.0
    %454 = vmatpush1.msra.mxu0 0.0
    %455 = vmatprep.subr.mxu0 0.0
    %456 = vmatpush1.msra.mxu0 0.0
    %457 = vmatprep.subr.mxu0 0.0
    %458 = vmatpush1.msra.mxu0 0.0
    %459 = vmatprep.subr.mxu0 0.0
    %460 = vmatpush1.msra.mxu0 0.0
    %461 = vmatprep.subr.mxu0 0.0
    %462 = vmatpush1.msra.mxu0 0.0
    %463 = vmatprep.subr.mxu0 0.0
    %464 = vmatpush1.msra.mxu0 0.0
    %465 = vmatprep.subr.mxu0 0.0
    %466 = vmatpush1.msra.mxu0 0.0
    %467 = vmatprep.subr.mxu0 0.0
    %468 = vmatpush1.msra.mxu0 0.0
    %469 = vmatprep.subr.mxu0 0.0
    %470 = vmatpush1.msra.mxu0 0.0
    %471 = vmatprep.subr.mxu0 0.0
    %472 = vmatpush1.msra.mxu0 0.0
    %473 = vmatprep.subr.mxu0 0.0
    %474 = vmatpush1.msra.mxu0 0.0
    %475 = vmatprep.mubr.f32.mxu0 0.0
    %476 = vmatmul.mubr.f32.gmra.mrb[0].mxu0 %v409
    %v477 = vpop.f32.mrb[0].mxu0
    %v478 = vadd.f32 %v402, %v477
    %v479 = vpop.f32.mrb[0].mxu0
    %v480 = vadd.f32 %v404, %v479
    %481 = vdwg.mxu0
    %v483 = vlaneseq
    %v484 = vshrl.u32 %v483, 7
    %v485 = vsub.s32 0, %v484
    %v486 = vrot.slane %v148, %v485
    %v487 = vlaneseq
    %v488 = vshrl.u32 %v487, 7
    %v489 = vsub.s32 1, %v488
    %v490 = vrot.slane %v148, %v489
    %v493 = vadd.f32 %v478, %v486
    %v494 = vadd.f32 %v480, %v490
    %v495 = vsub.f32 0.0, %v493
    %v496 = vmul.f32 %v495, 1.442695
    %v497 = vpow.pop %v496
    %v498 = vadd.f32 %v497, 1.0
    %v499 = vrcp.pop %v498
    %v500 = vmul.f32 1.0, %v499
    %v501 = vtanh.pop %v494
    %v502 = vsub.f32 0.0, %v494
    %v503 = vmul.f32 %v502, 1.442695
    %v504 = vpow.pop %v503
    %v505 = vadd.f32 %v504, 1.0
    %v506 = vrcp.pop %v505
    %v507 = vmul.f32 1.0, %v506
    %v508 = vmul.f32 %v500, 0.0
    %v509 = vmul.f32 %v500, %v501
    %511 = vrot.lane.b32.xlu0 %v509, 64
    %v512 = vpop.permute.xlu0 %511
    %v514 = vadd.f32 %v508, %v512
    %v515 = vtanh.pop %v514
    %v516 = vmul.f32 %v507, %v515
    %s517 = scalar_lea.vmem [#allocation2], 1
    %v518 = vld [vmem:[%s517] sm:$0x1]
    %519 = vmatprep.subr.mxu0 %v100
    %520 = vmatpush1.msra.mxu0 %v99
    %521 = vmatprep.subr.mxu0 %v102
    %522 = vmatpush1.msra.mxu0 %v101
    %523 = vmatprep.subr.mxu0 %v104
    %524 = vmatpush1.msra.mxu0 %v103
    %525 = vmatprep.subr.mxu0 %v106
    %526 = vmatpush1.msra.mxu0 %v105
    %527 = vmatprep.subr.mxu0 %v108
    %528 = vmatpush1.msra.mxu0 %v107
    %529 = vmatprep.subr.mxu0 %v110
    %530 = vmatpush1.msra.mxu0 %v109
    %531 = vmatprep.subr.mxu0 %v112
    %532 = vmatpush1.msra.mxu0 %v111
    %533 = vmatprep.subr.mxu0 %v114
    %534 = vmatpush1.msra.mxu0 %v113
    %535 = vmatprep.subr.mxu0 0.0
    %536 = vmatpush1.msra.mxu0 0.0
    %537 = vmatprep.subr.mxu0 0.0
    %538 = vmatpush1.msra.mxu0 0.0
    %539 = vmatprep.subr.mxu0 0.0
    %540 = vmatpush1.msra.mxu0 0.0
    %541 = vmatprep.subr.mxu0 0.0
    %542 = vmatpush1.msra.mxu0 0.0
    %543 = vmatprep.subr.mxu0 0.0
    %544 = vmatpush1.msra.mxu0 0.0
    %545 = vmatprep.subr.mxu0 0.0
    %546 = vmatpush1.msra.mxu0 0.0
    %547 = vmatprep.subr.mxu0 0.0
    %548 = vmatpush1.msra.mxu0 0.0
    %549 = vmatprep.subr.mxu0 0.0
    %550 = vmatpush1.msra.mxu0 0.0
    %551 = vmatprep.subr.mxu0 0.0
    %552 = vmatpush1.msra.mxu0 0.0
    %553 = vmatprep.subr.mxu0 0.0
    %554 = vmatpush1.msra.mxu0 0.0
    %555 = vmatprep.subr.mxu0 0.0
    %556 = vmatpush1.msra.mxu0 0.0
    %557 = vmatprep.subr.mxu0 0.0
    %558 = vmatpush1.msra.mxu0 0.0
    %559 = vmatprep.subr.mxu0 0.0
    %560 = vmatpush1.msra.mxu0 0.0
    %561 = vmatprep.subr.mxu0 0.0
    %562 = vmatpush1.msra.mxu0 0.0
    %563 = vmatprep.subr.mxu0 0.0
    %564 = vmatpush1.msra.mxu0 0.0
    %565 = vmatprep.subr.mxu0 0.0
    %566 = vmatpush1.msra.mxu0 0.0
    %567 = vmatprep.subr.mxu0 0.0
    %568 = vmatpush1.msra.mxu0 0.0
    %569 = vmatprep.subr.mxu0 0.0
    %570 = vmatpush1.msra.mxu0 0.0
    %571 = vmatprep.subr.mxu0 0.0
    %572 = vmatpush1.msra.mxu0 0.0
    %573 = vmatprep.subr.mxu0 0.0
    %574 = vmatpush1.msra.mxu0 0.0
    %575 = vmatprep.subr.mxu0 0.0
    %576 = vmatpush1.msra.mxu0 0.0
    %577 = vmatprep.subr.mxu0 0.0
    %578 = vmatpush1.msra.mxu0 0.0
    %579 = vmatprep.subr.mxu0 0.0
    %580 = vmatpush1.msra.mxu0 0.0
    %581 = vmatprep.subr.mxu0 0.0
    %582 = vmatpush1.msra.mxu0 0.0
    %583 = vmatprep.mubr.f32.mxu0 0.0
    %584 = vmatmul.mubr.f32.gmra.mrb[0].mxu0 %v409
    %v585 = vpop.f32.mrb[0].mxu0
    %v586 = vadd.f32 0.0, %v585
    %v587 = vpop.f32.mrb[0].mxu0
    %v588 = vadd.f32 0.0, %v587
    %589 = vdwg.mxu0
    %v591 = vsel %vm225, %v518, 0
    %593 = vmatprep.subr.mxu0 %v96
    %594 = vmatpush1.msra.mxu0 %v95
    %595 = vmatprep.subr.mxu0 %v98
    %596 = vmatpush1.msra.mxu0 %v97
    %597 = vmatprep.subr.mxu0 0.0
    %598 = vmatpush1.msra.mxu0 0.0
    %599 = vmatprep.subr.mxu0 0.0
    %600 = vmatpush1.msra.mxu0 0.0
    %601 = vmatprep.subr.mxu0 0.0
    %602 = vmatpush1.msra.mxu0 0.0
    %603 = vmatprep.subr.mxu0 0.0
    %604 = vmatpush1.msra.mxu0 0.0
    %605 = vmatprep.subr.mxu0 0.0
    %606 = vmatpush1.msra.mxu0 0.0
    %607 = vmatprep.subr.mxu0 0.0
    %608 = vmatpush1.msra.mxu0 0.0
    %609 = vmatprep.subr.mxu0 0.0
    %610 = vmatpush1.msra.mxu0 0.0
    %611 = vmatprep.subr.mxu0 0.0
    %612 = vmatpush1.msra.mxu0 0.0
    %613 = vmatprep.subr.mxu0 0.0
    %614 = vmatpush1.msra.mxu0 0.0
    %615 = vmatprep.subr.mxu0 0.0
    %616 = vmatpush1.msra.mxu0 0.0
    %617 = vmatprep.subr.mxu0 0.0
    %618 = vmatpush1.msra.mxu0 0.0
    %619 = vmatprep.subr.mxu0 0.0
    %620 = vmatpush1.msra.mxu0 0.0
    %621 = vmatprep.subr.mxu0 0.0
    %622 = vmatpush1.msra.mxu0 0.0
    %623 = vmatprep.subr.mxu0 0.0
    %624 = vmatpush1.msra.mxu0 0.0
    %625 = vmatprep.subr.mxu0 0.0
    %626 = vmatpush1.msra.mxu0 0.0
    %627 = vmatprep.subr.mxu0 0.0
    %628 = vmatpush1.msra.mxu0 0.0
    %629 = vmatprep.subr.mxu0 0.0
    %630 = vmatpush1.msra.mxu0 0.0
    %631 = vmatprep.subr.mxu0 0.0
    %632 = vmatpush1.msra.mxu0 0.0
    %633 = vmatprep.subr.mxu0 0.0
    %634 = vmatpush1.msra.mxu0 0.0
    %635 = vmatprep.subr.mxu0 0.0
    %636 = vmatpush1.msra.mxu0 0.0
    %637 = vmatprep.subr.mxu0 0.0
    %638 = vmatpush1.msra.mxu0 0.0
    %639 = vmatprep.subr.mxu0 0.0
    %640 = vmatpush1.msra.mxu0 0.0
    %641 = vmatprep.subr.mxu0 0.0
    %642 = vmatpush1.msra.mxu0 0.0
    %643 = vmatprep.subr.mxu0 0.0
    %644 = vmatpush1.msra.mxu0 0.0
    %645 = vmatprep.subr.mxu0 0.0
    %646 = vmatpush1.msra.mxu0 0.0
    %647 = vmatprep.subr.mxu0 0.0
    %648 = vmatpush1.msra.mxu0 0.0
    %649 = vmatprep.subr.mxu0 0.0
    %650 = vmatpush1.msra.mxu0 0.0
    %651 = vmatprep.subr.mxu0 0.0
    %652 = vmatpush1.msra.mxu0 0.0
    %653 = vmatprep.subr.mxu0 0.0
    %654 = vmatpush1.msra.mxu0 0.0
    %655 = vmatprep.subr.mxu0 0.0
    %656 = vmatpush1.msra.mxu0 0.0
    %657 = vmatprep.mubr.f32.mxu0 0.0
    %658 = vmatmul.mubr.f32.gmra.mrb[0].mxu0 %v591
    %v659 = vpop.f32.mrb[0].mxu0
    %v660 = vadd.f32 %v586, %v659
    %v661 = vpop.f32.mrb[0].mxu0
    %v662 = vadd.f32 %v588, %v661
    %663 = vdwg.mxu0
    %v664 = vadd.f32 %v660, %v304
    %v665 = vadd.f32 %v662, %v308
    %v666 = vsub.f32 0.0, %v664
    %v667 = vmul.f32 %v666, 1.442695
    %v668 = vpow.pop %v667
    %v669 = vadd.f32 %v668, 1.0
    %v670 = vrcp.pop %v669
    %v671 = vmul.f32 1.0, %v670
    %v672 = vtanh.pop %v665
    %v673 = vsub.f32 0.0, %v665
    %v674 = vmul.f32 %v673, 1.442695
    %v675 = vpow.pop %v674
    %v676 = vadd.f32 %v675, 1.0
    %v677 = vrcp.pop %v676
    %v678 = vmul.f32 1.0, %v677
    %v679 = vmul.f32 %v671, %v332
    %v680 = vmul.f32 %v671, %v672
    %682 = vrot.lane.b32.xlu0 %v680, 64
    %v683 = vpop.permute.xlu0 %682
    %v685 = vadd.f32 %v679, %v683
    %v686 = vtanh.pop %v685
    %v687 = vmul.f32 %v678, %v686
    %689 = vrot.lane.b32.xlu0 %v516, 64
    %v690 = vpop.permute.xlu0 %689
    %v691 = vsel %vm150, %v690, 0
    %693 = vmatprep.subr.mxu0 %v133
    %694 = vmatpush1.msra.mxu0 %v132
    %695 = vmatprep.subr.mxu0 %v135
    %696 = vmatpush1.msra.mxu0 %v134
    %697 = vmatprep.subr.mxu0 %v137
    %698 = vmatpush1.msra.mxu0 %v136
    %699 = vmatprep.subr.mxu0 %v139
    %700 = vmatpush1.msra.mxu0 %v138
    %701 = vmatprep.subr.mxu0 %v141
    %702 = vmatpush1.msra.mxu0 %v140
    %703 = vmatprep.subr.mxu0 %v143
    %704 = vmatpush1.msra.mxu0 %v142
    %705 = vmatprep.subr.mxu0 %v145
    %706 = vmatpush1.msra.mxu0 %v144
    %707 = vmatprep.subr.mxu0 %v147
    %708 = vmatpush1.msra.mxu0 %v146
    %709 = vmatprep.subr.mxu0 0.0
    %710 = vmatpush1.msra.mxu0 0.0
    %711 = vmatprep.subr.mxu0 0.0
    %712 = vmatpush1.msra.mxu0 0.0
    %713 = vmatprep.subr.mxu0 0.0
    %714 = vmatpush1.msra.mxu0 0.0
    %715 = vmatprep.subr.mxu0 0.0
    %716 = vmatpush1.msra.mxu0 0.0
    %717 = vmatprep.subr.mxu0 0.0
    %718 = vmatpush1.msra.mxu0 0.0
    %719 = vmatprep.subr.mxu0 0.0
    %720 = vmatpush1.msra.mxu0 0.0
    %721 = vmatprep.subr.mxu0 0.0
    %722 = vmatpush1.msra.mxu0 0.0
    %723 = vmatprep.subr.mxu0 0.0
    %724 = vmatpush1.msra.mxu0 0.0
    %725 = vmatprep.subr.mxu0 0.0
    %726 = vmatpush1.msra.mxu0 0.0
    %727 = vmatprep.subr.mxu0 0.0
    %728 = vmatpush1.msra.mxu0 0.0
    %729 = vmatprep.subr.mxu0 0.0
    %730 = vmatpush1.msra.mxu0 0.0
    %731 = vmatprep.subr.mxu0 0.0
    %732 = vmatpush1.msra.mxu0 0.0
    %733 = vmatprep.subr.mxu0 0.0
    %734 = vmatpush1.msra.mxu0 0.0
    %735 = vmatprep.subr.mxu0 0.0
    %736 = vmatpush1.msra.mxu0 0.0
    %737 = vmatprep.subr.mxu0 0.0
    %738 = vmatpush1.msra.mxu0 0.0
    %739 = vmatprep.subr.mxu0 0.0
    %740 = vmatpush1.msra.mxu0 0.0
    %741 = vmatprep.subr.mxu0 0.0
    %742 = vmatpush1.msra.mxu0 0.0
    %743 = vmatprep.subr.mxu0 0.0
    %744 = vmatpush1.msra.mxu0 0.0
    %745 = vmatprep.subr.mxu0 0.0
    %746 = vmatpush1.msra.mxu0 0.0
    %747 = vmatprep.subr.mxu0 0.0
    %748 = vmatpush1.msra.mxu0 0.0
    %749 = vmatprep.subr.mxu0 0.0
    %750 = vmatpush1.msra.mxu0 0.0
    %751 = vmatprep.subr.mxu0 0.0
    %752 = vmatpush1.msra.mxu0 0.0
    %753 = vmatprep.subr.mxu0 0.0
    %754 = vmatpush1.msra.mxu0 0.0
    %755 = vmatprep.subr.mxu0 0.0
    %756 = vmatpush1.msra.mxu0 0.0
    %757 = vmatprep.mubr.f32.mxu0 0.0
    %758 = vmatmul.mubr.f32.gmra.mrb[0].mxu0 %v691
    %v759 = vpop.f32.mrb[0].mxu0
    %v760 = vadd.f32 0.0, %v759
    %v761 = vpop.f32.mrb[0].mxu0
    %v762 = vadd.f32 0.0, %v761
    %763 = vdwg.mxu0
    %765 = vrot.lane.b32.xlu0 %v687, 64
    %v766 = vpop.permute.xlu0 %765
    %v767 = vsel %vm150, %v766, 0
    %769 = vmatprep.subr.mxu0 %v117
    %770 = vmatpush1.msra.mxu0 %v116
    %771 = vmatprep.subr.mxu0 %v119
    %772 = vmatpush1.msra.mxu0 %v118
    %773 = vmatprep.subr.mxu0 %v121
    %774 = vmatpush1.msra.mxu0 %v120
    %775 = vmatprep.subr.mxu0 %v123
    %776 = vmatpush1.msra.mxu0 %v122
    %777 = vmatprep.subr.mxu0 %v125
    %778 = vmatpush1.msra.mxu0 %v124
    %779 = vmatprep.subr.mxu0 %v127
    %780 = vmatpush1.msra.mxu0 %v126
    %781 = vmatprep.subr.mxu0 %v129
    %782 = vmatpush1.msra.mxu0 %v128
    %783 = vmatprep.subr.mxu0 %v131
    %784 = vmatpush1.msra.mxu0 %v130
    %785 = vmatprep.subr.mxu0 0.0
    %786 = vmatpush1.msra.mxu0 0.0
    %787 = vmatprep.subr.mxu0 0.0
    %788 = vmatpush1.msra.mxu0 0.0
    %789 = vmatprep.subr.mxu0 0.0
    %790 = vmatpush1.msra.mxu0 0.0
    %791 = vmatprep.subr.mxu0 0.0
    %792 = vmatpush1.msra.mxu0 0.0
    %793 = vmatprep.subr.mxu0 0.0
    %794 = vmatpush1.msra.mxu0 0.0
    %795 = vmatprep.subr.mxu0 0.0
    %796 = vmatpush1.msra.mxu0 0.0
    %797 = vmatprep.subr.mxu0 0.0
    %798 = vmatpush1.msra.mxu0 0.0
    %799 = vmatprep.subr.mxu0 0.0
    %800 = vmatpush1.msra.mxu0 0.0
    %801 = vmatprep.subr.mxu0 0.0
    %802 = vmatpush1.msra.mxu0 0.0
    %803 = vmatprep.subr.mxu0 0.0
    %804 = vmatpush1.msra.mxu0 0.0
    %805 = vmatprep.subr.mxu0 0.0
    %806 = vmatpush1.msra.mxu0 0.0
    %807 = vmatprep.subr.mxu0 0.0
    %808 = vmatpush1.msra.mxu0 0.0
    %809 = vmatprep.subr.mxu0 0.0
    %810 = vmatpush1.msra.mxu0 0.0
    %811 = vmatprep.subr.mxu0 0.0
    %812 = vmatpush1.msra.mxu0 0.0
    %813 = vmatprep.subr.mxu0 0.0
    %814 = vmatpush1.msra.mxu0 0.0
    %815 = vmatprep.subr.mxu0 0.0
    %816 = vmatpush1.msra.mxu0 0.0
    %817 = vmatprep.subr.mxu0 0.0
    %818 = vmatpush1.msra.mxu0 0.0
    %819 = vmatprep.subr.mxu0 0.0
    %820 = vmatpush1.msra.mxu0 0.0
    %821 = vmatprep.subr.mxu0 0.0
    %822 = vmatpush1.msra.mxu0 0.0
    %823 = vmatprep.subr.mxu0 0.0
    %824 = vmatpush1.msra.mxu0 0.0
    %825 = vmatprep.subr.mxu0 0.0
    %826 = vmatpush1.msra.mxu0 0.0
    %827 = vmatprep.subr.mxu0 0.0
    %828 = vmatpush1.msra.mxu0 0.0
    %829 = vmatprep.subr.mxu0 0.0
    %830 = vmatpush1.msra.mxu0 0.0
    %831 = vmatprep.subr.mxu0 0.0
    %832 = vmatpush1.msra.mxu0 0.0
    %833 = vmatprep.mubr.f32.mxu0 0.0
    %834 = vmatmul.mubr.f32.gmra.mrb[0].mxu0 %v767
    %v835 = vpop.f32.mrb[0].mxu0
    %v836 = vadd.f32 %v760, %v835
    %v837 = vpop.f32.mrb[0].mxu0
    %v838 = vadd.f32 %v762, %v837
    %839 = vdwg.mxu0
    %v840 = vadd.f32 %v836, %v486
    %v841 = vadd.f32 %v838, %v490
    %v842 = vsub.f32 0.0, %v840
    %v843 = vmul.f32 %v842, 1.442695
    %v844 = vpow.pop %v843
    %v845 = vadd.f32 %v844, 1.0
    %v846 = vrcp.pop %v845
    %v847 = vmul.f32 1.0, %v846
    %v848 = vtanh.pop %v841
    %v849 = vsub.f32 0.0, %v841
    %v850 = vmul.f32 %v849, 1.442695
    %v851 = vpow.pop %v850
    %v852 = vadd.f32 %v851, 1.0
    %v853 = vrcp.pop %v852
    %v854 = vmul.f32 1.0, %v853
    %v855 = vmul.f32 %v847, %v514
    %v856 = vmul.f32 %v847, %v848
    %858 = vrot.lane.b32.xlu0 %v856, 64
    %v859 = vpop.permute.xlu0 %858
    %v861 = vadd.f32 %v855, %v859
    %v862 = vtanh.pop %v861
    %v863 = vmul.f32 %v854, %v862
    %s864 = scalar_lea.vmem [#allocation2], 2
    %v865 = vld [vmem:[%s864] sm:$0x1]
    %866 = vmatprep.subr.mxu0 %v100
    %867 = vmatpush1.msra.mxu0 %v99
    %868 = vmatprep.subr.mxu0 %v102
    %869 = vmatpush1.msra.mxu0 %v101
    %870 = vmatprep.subr.mxu0 %v104
    %871 = vmatpush1.msra.mxu0 %v103
    %872 = vmatprep.subr.mxu0 %v106
    %873 = vmatpush1.msra.mxu0 %v105
    %874 = vmatprep.subr.mxu0 %v108
    %875 = vmatpush1.msra.mxu0 %v107
    %876 = vmatprep.subr.mxu0 %v110
    %877 = vmatpush1.msra.mxu0 %v109
    %878 = vmatprep.subr.mxu0 %v112
    %879 = vmatpush1.msra.mxu0 %v111
    %880 = vmatprep.subr.mxu0 %v114
    %881 = vmatpush1.msra.mxu0 %v113
    %882 = vmatprep.subr.mxu0 0.0
    %883 = vmatpush1.msra.mxu0 0.0
    %884 = vmatprep.subr.mxu0 0.0
    %885 = vmatpush1.msra.mxu0 0.0
    %886 = vmatprep.subr.mxu0 0.0
    %887 = vmatpush1.msra.mxu0 0.0
    %888 = vmatprep.subr.mxu0 0.0
    %889 = vmatpush1.msra.mxu0 0.0
    %890 = vmatprep.subr.mxu0 0.0
    %891 = vmatpush1.msra.mxu0 0.0
    %892 = vmatprep.subr.mxu0 0.0
    %893 = vmatpush1.msra.mxu0 0.0
    %894 = vmatprep.subr.mxu0 0.0
    %895 = vmatpush1.msra.mxu0 0.0
    %896 = vmatprep.subr.mxu0 0.0
    %897 = vmatpush1.msra.mxu0 0.0
    %898 = vmatprep.subr.mxu0 0.0
    %899 = vmatpush1.msra.mxu0 0.0
    %900 = vmatprep.subr.mxu0 0.0
    %901 = vmatpush1.msra.mxu0 0.0
    %902 = vmatprep.subr.mxu0 0.0
    %903 = vmatpush1.msra.mxu0 0.0
    %904 = vmatprep.subr.mxu0 0.0
    %905 = vmatpush1.msra.mxu0 0.0
    %906 = vmatprep.subr.mxu0 0.0
    %907 = vmatpush1.msra.mxu0 0.0
    %908 = vmatprep.subr.mxu0 0.0
    %909 = vmatpush1.msra.mxu0 0.0
    %910 = vmatprep.subr.mxu0 0.0
    %911 = vmatpush1.msra.mxu0 0.0
    %912 = vmatprep.subr.mxu0 0.0
    %913 = vmatpush1.msra.mxu0 0.0
    %914 = vmatprep.subr.mxu0 0.0
    %915 = vmatpush1.msra.mxu0 0.0
    %916 = vmatprep.subr.mxu0 0.0
    %917 = vmatpush1.msra.mxu0 0.0
    %918 = vmatprep.subr.mxu0 0.0
    %919 = vmatpush1.msra.mxu0 0.0
    %920 = vmatprep.subr.mxu0 0.0
    %921 = vmatpush1.msra.mxu0 0.0
    %922 = vmatprep.subr.mxu0 0.0
    %923 = vmatpush1.msra.mxu0 0.0
    %924 = vmatprep.subr.mxu0 0.0
    %925 = vmatpush1.msra.mxu0 0.0
    %926 = vmatprep.subr.mxu0 0.0
    %927 = vmatpush1.msra.mxu0 0.0
    %928 = vmatprep.subr.mxu0 0.0
    %929 = vmatpush1.msra.mxu0 0.0
    %930 = vmatprep.mubr.f32.mxu0 0.0
    %931 = vmatmul.mubr.f32.gmra.mrb[0].mxu0 %v767
    %v932 = vpop.f32.mrb[0].mxu0
    %v933 = vadd.f32 0.0, %v932
    %v934 = vpop.f32.mrb[0].mxu0
    %v935 = vadd.f32 0.0, %v934
    %936 = vdwg.mxu0
    %v938 = vsel %vm225, %v865, 0
    %940 = vmatprep.subr.mxu0 %v96
    %941 = vmatpush1.msra.mxu0 %v95
    %942 = vmatprep.subr.mxu0 %v98
    %943 = vmatpush1.msra.mxu0 %v97
    %944 = vmatprep.subr.mxu0 0.0
    %945 = vmatpush1.msra.mxu0 0.0
    %946 = vmatprep.subr.mxu0 0.0
    %947 = vmatpush1.msra.mxu0 0.0
    %948 = vmatprep.subr.mxu0 0.0
    %949 = vmatpush1.msra.mxu0 0.0
    %950 = vmatprep.subr.mxu0 0.0
    %951 = vmatpush1.msra.mxu0 0.0
    %952 = vmatprep.subr.mxu0 0.0
    %953 = vmatpush1.msra.mxu0 0.0
    %954 = vmatprep.subr.mxu0 0.0
    %955 = vmatpush1.msra.mxu0 0.0
    %956 = vmatprep.subr.mxu0 0.0
    %957 = vmatpush1.msra.mxu0 0.0
    %958 = vmatprep.subr.mxu0 0.0
    %959 = vmatpush1.msra.mxu0 0.0
    %960 = vmatprep.subr.mxu0 0.0
    %961 = vmatpush1.msra.mxu0 0.0
    %962 = vmatprep.subr.mxu0 0.0
    %963 = vmatpush1.msra.mxu0 0.0
    %964 = vmatprep.subr.mxu0 0.0
    %965 = vmatpush1.msra.mxu0 0.0
    %966 = vmatprep.subr.mxu0 0.0
    %967 = vmatpush1.msra.mxu0 0.0
    %968 = vmatprep.subr.mxu0 0.0
    %969 = vmatpush1.msra.mxu0 0.0
    %970 = vmatprep.subr.mxu0 0.0
    %971 = vmatpush1.msra.mxu0 0.0
    %972 = vmatprep.subr.mxu0 0.0
    %973 = vmatpush1.msra.mxu0 0.0
    %974 = vmatprep.subr.mxu0 0.0
    %975 = vmatpush1.msra.mxu0 0.0
    %976 = vmatprep.subr.mxu0 0.0
    %977 = vmatpush1.msra.mxu0 0.0
    %978 = vmatprep.subr.mxu0 0.0
    %979 = vmatpush1.msra.mxu0 0.0
    %980 = vmatprep.subr.mxu0 0.0
    %981 = vmatpush1.msra.mxu0 0.0
    %982 = vmatprep.subr.mxu0 0.0
    %983 = vmatpush1.msra.mxu0 0.0
    %984 = vmatprep.subr.mxu0 0.0
    %985 = vmatpush1.msra.mxu0 0.0
    %986 = vmatprep.subr.mxu0 0.0
    %987 = vmatpush1.msra.mxu0 0.0
    %988 = vmatprep.subr.mxu0 0.0
    %989 = vmatpush1.msra.mxu0 0.0
    %990 = vmatprep.subr.mxu0 0.0
    %991 = vmatpush1.msra.mxu0 0.0
    %992 = vmatprep.subr.mxu0 0.0
    %993 = vmatpush1.msra.mxu0 0.0
    %994 = vmatprep.subr.mxu0 0.0
    %995 = vmatpush1.msra.mxu0 0.0
    %996 = vmatprep.subr.mxu0 0.0
    %997 = vmatpush1.msra.mxu0 0.0
    %998 = vmatprep.subr.mxu0 0.0
    %999 = vmatpush1.msra.mxu0 0.0
    %1000 = vmatprep.subr.mxu0 0.0
    %1001 = vmatpush1.msra.mxu0 0.0
    %1002 = vmatprep.subr.mxu0 0.0
    %1003 = vmatpush1.msra.mxu0 0.0
    %1004 = vmatprep.mubr.f32.mxu0 0.0
    %1005 = vmatmul.mubr.f32.gmra.mrb[0].mxu0 %v938
    %v1006 = vpop.f32.mrb[0].mxu0
    %v1007 = vadd.f32 %v933, %v1006
    %v1008 = vpop.f32.mrb[0].mxu0
    %v1009 = vadd.f32 %v935, %v1008
    %1010 = vdwg.mxu0
    %v1011 = vadd.f32 %v1007, %v304
    %v1012 = vadd.f32 %v1009, %v308
    %v1013 = vsub.f32 0.0, %v1011
    %v1014 = vmul.f32 %v1013, 1.442695
    %v1015 = vpow.pop %v1014
    %v1016 = vadd.f32 %v1015, 1.0
    %v1017 = vrcp.pop %v1016
    %v1018 = vmul.f32 1.0, %v1017
    %v1019 = vtanh.pop %v1012
    %v1020 = vsub.f32 0.0, %v1012
    %v1021 = vmul.f32 %v1020, 1.442695
    %v1022 = vpow.pop %v1021
    %v1023 = vadd.f32 %v1022, 1.0
    %v1024 = vrcp.pop %v1023
    %v1025 = vmul.f32 1.0, %v1024
    %v1026 = vmul.f32 %v1018, %v685
    %v1027 = vmul.f32 %v1018, %v1019
    %1029 = vrot.lane.b32.xlu0 %v1027, 64
    %v1030 = vpop.permute.xlu0 %1029
    %v1032 = vadd.f32 %v1026, %v1030
    %v1033 = vtanh.pop %v1032
    %v1034 = vmul.f32 %v1025, %v1033
    %1036 = vrot.lane.b32.xlu0 %v863, 64
    %v1037 = vpop.permute.xlu0 %1036
    %v1038 = vsel %vm150, %v1037, 0
    %1040 = vmatprep.subr.mxu0 %v133
    %1041 = vmatpush1.msra.mxu0 %v132
    %1042 = vmatprep.subr.mxu0 %v135
    %1043 = vmatpush1.msra.mxu0 %v134
    %1044 = vmatprep.subr.mxu0 %v137
    %1045 = vmatpush1.msra.mxu0 %v136
    %1046 = vmatprep.subr.mxu0 %v139
    %1047 = vmatpush1.msra.mxu0 %v138
    %1048 = vmatprep.subr.mxu0 %v141
    %1049 = vmatpush1.msra.mxu0 %v140
    %1050 = vmatprep.subr.mxu0 %v143
    %1051 = vmatpush1.msra.mxu0 %v142
    %1052 = vmatprep.subr.mxu0 %v145
    %1053 = vmatpush1.msra.mxu0 %v144
    %1054 = vmatprep.subr.mxu0 %v147
    %1055 = vmatpush1.msra.mxu0 %v146
    %1056 = vmatprep.subr.mxu0 0.0
    %1057 = vmatpush1.msra.mxu0 0.0
    %1058 = vmatprep.subr.mxu0 0.0
    %1059 = vmatpush1.msra.mxu0 0.0
    %1060 = vmatprep.subr.mxu0 0.0
    %1061 = vmatpush1.msra.mxu0 0.0
    %1062 = vmatprep.subr.mxu0 0.0
    %1063 = vmatpush1.msra.mxu0 0.0
    %1064 = vmatprep.subr.mxu0 0.0
    %1065 = vmatpush1.msra.mxu0 0.0
    %1066 = vmatprep.subr.mxu0 0.0
    %1067 = vmatpush1.msra.mxu0 0.0
    %1068 = vmatprep.subr.mxu0 0.0
    %1069 = vmatpush1.msra.mxu0 0.0
    %1070 = vmatprep.subr.mxu0 0.0
    %1071 = vmatpush1.msra.mxu0 0.0
    %1072 = vmatprep.subr.mxu0 0.0
    %1073 = vmatpush1.msra.mxu0 0.0
    %1074 = vmatprep.subr.mxu0 0.0
    %1075 = vmatpush1.msra.mxu0 0.0
    %1076 = vmatprep.subr.mxu0 0.0
    %1077 = vmatpush1.msra.mxu0 0.0
    %1078 = vmatprep.subr.mxu0 0.0
    %1079 = vmatpush1.msra.mxu0 0.0
    %1080 = vmatprep.subr.mxu0 0.0
    %1081 = vmatpush1.msra.mxu0 0.0
    %1082 = vmatprep.subr.mxu0 0.0
    %1083 = vmatpush1.msra.mxu0 0.0
    %1084 = vmatprep.subr.mxu0 0.0
    %1085 = vmatpush1.msra.mxu0 0.0
    %1086 = vmatprep.subr.mxu0 0.0
    %1087 = vmatpush1.msra.mxu0 0.0
    %1088 = vmatprep.subr.mxu0 0.0
    %1089 = vmatpush1.msra.mxu0 0.0
    %1090 = vmatprep.subr.mxu0 0.0
    %1091 = vmatpush1.msra.mxu0 0.0
    %1092 = vmatprep.subr.mxu0 0.0
    %1093 = vmatpush1.msra.mxu0 0.0
    %1094 = vmatprep.subr.mxu0 0.0
    %1095 = vmatpush1.msra.mxu0 0.0
    %1096 = vmatprep.subr.mxu0 0.0
    %1097 = vmatpush1.msra.mxu0 0.0
    %1098 = vmatprep.subr.mxu0 0.0
    %1099 = vmatpush1.msra.mxu0 0.0
    %1100 = vmatprep.subr.mxu0 0.0
    %1101 = vmatpush1.msra.mxu0 0.0
    %1102 = vmatprep.subr.mxu0 0.0
    %1103 = vmatpush1.msra.mxu0 0.0
    %1104 = vmatprep.mubr.f32.mxu0 0.0
    %1105 = vmatmul.mubr.f32.gmra.mrb[0].mxu0 %v1038
    %v1106 = vpop.f32.mrb[0].mxu0
    %v1107 = vadd.f32 0.0, %v1106
    %v1108 = vpop.f32.mrb[0].mxu0
    %v1109 = vadd.f32 0.0, %v1108
    %1110 = vdwg.mxu0
    %1112 = vrot.lane.b32.xlu0 %v1034, 64
    %v1113 = vpop.permute.xlu0 %1112
    %v1114 = vsel %vm150, %v1113, 0
    %1116 = vmatprep.subr.mxu0 %v117
    %1117 = vmatpush1.msra.mxu0 %v116
    %1118 = vmatprep.subr.mxu0 %v119
    %1119 = vmatpush1.msra.mxu0 %v118
    %1120 = vmatprep.subr.mxu0 %v121
    %1121 = vmatpush1.msra.mxu0 %v120
    %1122 = vmatprep.subr.mxu0 %v123
    %1123 = vmatpush1.msra.mxu0 %v122
    %1124 = vmatprep.subr.mxu0 %v125
    %1125 = vmatpush1.msra.mxu0 %v124
    %1126 = vmatprep.subr.mxu0 %v127
    %1127 = vmatpush1.msra.mxu0 %v126
    %1128 = vmatprep.subr.mxu0 %v129
    %1129 = vmatpush1.msra.mxu0 %v128
    %1130 = vmatprep.subr.mxu0 %v131
    %1131 = vmatpush1.msra.mxu0 %v130
    %1132 = vmatprep.subr.mxu0 0.0
    %1133 = vmatpush1.msra.mxu0 0.0
    %1134 = vmatprep.subr.mxu0 0.0
    %1135 = vmatpush1.msra.mxu0 0.0
    %1136 = vmatprep.subr.mxu0 0.0
    %1137 = vmatpush1.msra.mxu0 0.0
    %1138 = vmatprep.subr.mxu0 0.0
    %1139 = vmatpush1.msra.mxu0 0.0
    %1140 = vmatprep.subr.mxu0 0.0
    %1141 = vmatpush1.msra.mxu0 0.0
    %1142 = vmatprep.subr.mxu0 0.0
    %1143 = vmatpush1.msra.mxu0 0.0
    %1144 = vmatprep.subr.mxu0 0.0
    %1145 = vmatpush1.msra.mxu0 0.0
    %1146 = vmatprep.subr.mxu0 0.0
    %1147 = vmatpush1.msra.mxu0 0.0
    %1148 = vmatprep.subr.mxu0 0.0
    %1149 = vmatpush1.msra.mxu0 0.0
    %1150 = vmatprep.subr.mxu0 0.0
    %1151 = vmatpush1.msra.mxu0 0.0
    %1152 = vmatprep.subr.mxu0 0.0
    %1153 = vmatpush1.msra.mxu0 0.0
    %1154 = vmatprep.subr.mxu0 0.0
    %1155 = vmatpush1.msra.mxu0 0.0
    %1156 = vmatprep.subr.mxu0 0.0
    %1157 = vmatpush1.msra.mxu0 0.0
    %1158 = vmatprep.subr.mxu0 0.0
    %1159 = vmatpush1.msra.mxu0 0.0
    %1160 = vmatprep.subr.mxu0 0.0
    %1161 = vmatpush1.msra.mxu0 0.0
    %1162 = vmatprep.subr.mxu0 0.0
    %1163 = vmatpush1.msra.mxu0 0.0
    %1164 = vmatprep.subr.mxu0 0.0
    %1165 = vmatpush1.msra.mxu0 0.0
    %1166 = vmatprep.subr.mxu0 0.0
    %1167 = vmatpush1.msra.mxu0 0.0
    %1168 = vmatprep.subr.mxu0 0.0
    %1169 = vmatpush1.msra.mxu0 0.0
    %1170 = vmatprep.subr.mxu0 0.0
    %1171 = vmatpush1.msra.mxu0 0.0
    %1172 = vmatprep.subr.mxu0 0.0
    %1173 = vmatpush1.msra.mxu0 0.0
    %1174 = vmatprep.subr.mxu0 0.0
    %1175 = vmatpush1.msra.mxu0 0.0
    %1176 = vmatprep.subr.mxu0 0.0
    %1177 = vmatpush1.msra.mxu0 0.0
    %1178 = vmatprep.subr.mxu0 0.0
    %1179 = vmatpush1.msra.mxu0 0.0
    %1180 = vmatprep.mubr.f32.mxu0 0.0
    %1181 = vmatmul.mubr.f32.gmra.mrb[0].mxu0 %v1114
    %v1182 = vpop.f32.mrb[0].mxu0
    %v1183 = vadd.f32 %v1107, %v1182
    %v1184 = vpop.f32.mrb[0].mxu0
    %v1185 = vadd.f32 %v1109, %v1184
    %1186 = vdwg.mxu0
    %v1187 = vadd.f32 %v1183, %v486
    %v1188 = vadd.f32 %v1185, %v490
    %v1189 = vsub.f32 0.0, %v1187
    %v1190 = vmul.f32 %v1189, 1.442695
    %v1191 = vpow.pop %v1190
    %v1192 = vadd.f32 %v1191, 1.0
    %v1193 = vrcp.pop %v1192
    %v1194 = vmul.f32 1.0, %v1193
    %v1195 = vtanh.pop %v1188
    %v1196 = vsub.f32 0.0, %v1188
    %v1197 = vmul.f32 %v1196, 1.442695
    %v1198 = vpow.pop %v1197
    %v1199 = vadd.f32 %v1198, 1.0
    %v1200 = vrcp.pop %v1199
    %v1201 = vmul.f32 1.0, %v1200
    %v1202 = vmul.f32 %v1194, %v861
    %v1203 = vmul.f32 %v1194, %v1195
    %1205 = vrot.lane.b32.xlu0 %v1203, 64
    %v1206 = vpop.permute.xlu0 %1205
    %v1208 = vadd.f32 %v1202, %v1206
    %v1209 = vtanh.pop %v1208
    %v1210 = vmul.f32 %v1201, %v1209
    %s1211 = scalar_lea.vmem [#allocation2], 3
    %v1212 = vld [vmem:[%s1211] sm:$0x1]
    %1213 = vmatprep.subr.mxu0 %v100
    %1214 = vmatpush1.msra.mxu0 %v99
    %1215 = vmatprep.subr.mxu0 %v102
    %1216 = vmatpush1.msra.mxu0 %v101
    %1217 = vmatprep.subr.mxu0 %v104
    %1218 = vmatpush1.msra.mxu0 %v103
    %1219 = vmatprep.subr.mxu0 %v106
    %1220 = vmatpush1.msra.mxu0 %v105
    %1221 = vmatprep.subr.mxu0 %v108
    %1222 = vmatpush1.msra.mxu0 %v107
    %1223 = vmatprep.subr.mxu0 %v110
    %1224 = vmatpush1.msra.mxu0 %v109
    %1225 = vmatprep.subr.mxu0 %v112
    %1226 = vmatpush1.msra.mxu0 %v111
    %1227 = vmatprep.subr.mxu0 %v114
    %1228 = vmatpush1.msra.mxu0 %v113
    %1229 = vmatprep.subr.mxu0 0.0
    %1230 = vmatpush1.msra.mxu0 0.0
    %1231 = vmatprep.subr.mxu0 0.0
    %1232 = vmatpush1.msra.mxu0 0.0
    %1233 = vmatprep.subr.mxu0 0.0
    %1234 = vmatpush1.msra.mxu0 0.0
    %1235 = vmatprep.subr.mxu0 0.0
    %1236 = vmatpush1.msra.mxu0 0.0
    %1237 = vmatprep.subr.mxu0 0.0
    %1238 = vmatpush1.msra.mxu0 0.0
    %1239 = vmatprep.subr.mxu0 0.0
    %1240 = vmatpush1.msra.mxu0 0.0
    %1241 = vmatprep.subr.mxu0 0.0
    %1242 = vmatpush1.msra.mxu0 0.0
    %1243 = vmatprep.subr.mxu0 0.0
    %1244 = vmatpush1.msra.mxu0 0.0
    %1245 = vmatprep.subr.mxu0 0.0
    %1246 = vmatpush1.msra.mxu0 0.0
    %1247 = vmatprep.subr.mxu0 0.0
    %1248 = vmatpush1.msra.mxu0 0.0
    %1249 = vmatprep.subr.mxu0 0.0
    %1250 = vmatpush1.msra.mxu0 0.0
    %1251 = vmatprep.subr.mxu0 0.0
    %1252 = vmatpush1.msra.mxu0 0.0
    %1253 = vmatprep.subr.mxu0 0.0
    %1254 = vmatpush1.msra.mxu0 0.0
    %1255 = vmatprep.subr.mxu0 0.0
    %1256 = vmatpush1.msra.mxu0 0.0
    %1257 = vmatprep.subr.mxu0 0.0
    %1258 = vmatpush1.msra.mxu0 0.0
    %1259 = vmatprep.subr.mxu0 0.0
    %1260 = vmatpush1.msra.mxu0 0.0
    %1261 = vmatprep.subr.mxu0 0.0
    %1262 = vmatpush1.msra.mxu0 0.0
    %1263 = vmatprep.subr.mxu0 0.0
    %1264 = vmatpush1.msra.mxu0 0.0
    %1265 = vmatprep.subr.mxu0 0.0
    %1266 = vmatpush1.msra.mxu0 0.0
    %1267 = vmatprep.subr.mxu0 0.0
    %1268 = vmatpush1.msra.mxu0 0.0
    %1269 = vmatprep.subr.mxu0 0.0
    %1270 = vmatpush1.msra.mxu0 0.0
    %1271 = vmatprep.subr.mxu0 0.0
    %1272 = vmatpush1.msra.mxu0 0.0
    %1273 = vmatprep.subr.mxu0 0.0
    %1274 = vmatpush1.msra.mxu0 0.0
    %1275 = vmatprep.subr.mxu0 0.0
    %1276 = vmatpush1.msra.mxu0 0.0
    %1277 = vmatprep.mubr.f32.mxu0 0.0
    %1278 = vmatmul.mubr.f32.gmra.mrb[0].mxu0 %v1114
    %v1279 = vpop.f32.mrb[0].mxu0
    %v1280 = vadd.f32 0.0, %v1279
    %v1281 = vpop.f32.mrb[0].mxu0
    %v1282 = vadd.f32 0.0, %v1281
    %1283 = vdwg.mxu0
    %v1285 = vsel %vm225, %v1212, 0
    %1287 = vmatprep.subr.mxu0 %v96
    %1288 = vmatpush1.msra.mxu0 %v95
    %1289 = vmatprep.subr.mxu0 %v98
    %1290 = vmatpush1.msra.mxu0 %v97
    %1291 = vmatprep.subr.mxu0 0.0
    %1292 = vmatpush1.msra.mxu0 0.0
    %1293 = vmatprep.subr.mxu0 0.0
    %1294 = vmatpush1.msra.mxu0 0.0
    %1295 = vmatprep.subr.mxu0 0.0
    %1296 = vmatpush1.msra.mxu0 0.0
    %1297 = vmatprep.subr.mxu0 0.0
    %1298 = vmatpush1.msra.mxu0 0.0
    %1299 = vmatprep.subr.mxu0 0.0
    %1300 = vmatpush1.msra.mxu0 0.0
    %1301 = vmatprep.subr.mxu0 0.0
    %1302 = vmatpush1.msra.mxu0 0.0
    %1303 = vmatprep.subr.mxu0 0.0
    %1304 = vmatpush1.msra.mxu0 0.0
    %1305 = vmatprep.subr.mxu0 0.0
    %1306 = vmatpush1.msra.mxu0 0.0
    %1307 = vmatprep.subr.mxu0 0.0
    %1308 = vmatpush1.msra.mxu0 0.0
    %1309 = vmatprep.subr.mxu0 0.0
    %1310 = vmatpush1.msra.mxu0 0.0
    %1311 = vmatprep.subr.mxu0 0.0
    %1312 = vmatpush1.msra.mxu0 0.0
    %1313 = vmatprep.subr.mxu0 0.0
    %1314 = vmatpush1.msra.mxu0 0.0
    %1315 = vmatprep.subr.mxu0 0.0
    %1316 = vmatpush1.msra.mxu0 0.0
    %1317 = vmatprep.subr.mxu0 0.0
    %1318 = vmatpush1.msra.mxu0 0.0
    %1319 = vmatprep.subr.mxu0 0.0
    %1320 = vmatpush1.msra.mxu0 0.0
    %1321 = vmatprep.subr.mxu0 0.0
    %1322 = vmatpush1.msra.mxu0 0.0
    %1323 = vmatprep.subr.mxu0 0.0
    %1324 = vmatpush1.msra.mxu0 0.0
    %1325 = vmatprep.subr.mxu0 0.0
    %1326 = vmatpush1.msra.mxu0 0.0
    %1327 = vmatprep.subr.mxu0 0.0
    %1328 = vmatpush1.msra.mxu0 0.0
    %1329 = vmatprep.subr.mxu0 0.0
    %1330 = vmatpush1.msra.mxu0 0.0
    %1331 = vmatprep.subr.mxu0 0.0
    %1332 = vmatpush1.msra.mxu0 0.0
    %1333 = vmatprep.subr.mxu0 0.0
    %1334 = vmatpush1.msra.mxu0 0.0
    %1335 = vmatprep.subr.mxu0 0.0
    %1336 = vmatpush1.msra.mxu0 0.0
    %1337 = vmatprep.subr.mxu0 0.0
    %1338 = vmatpush1.msra.mxu0 0.0
    %1339 = vmatprep.subr.mxu0 0.0
    %1340 = vmatpush1.msra.mxu0 0.0
    %1341 = vmatprep.subr.mxu0 0.0
    %1342 = vmatpush1.msra.mxu0 0.0
    %1343 = vmatprep.subr.mxu0 0.0
    %1344 = vmatpush1.msra.mxu0 0.0
    %1345 = vmatprep.subr.mxu0 0.0
    %1346 = vmatpush1.msra.mxu0 0.0
    %1347 = vmatprep.subr.mxu0 0.0
    %1348 = vmatpush1.msra.mxu0 0.0
    %1349 = vmatprep.subr.mxu0 0.0
    %1350 = vmatpush1.msra.mxu0 0.0
    %1351 = vmatprep.mubr.f32.mxu0 0.0
    %1352 = vmatmul.mubr.f32.gmra.mrb[0].mxu0 %v1285
    %v1353 = vpop.f32.mrb[0].mxu0
    %v1354 = vadd.f32 %v1280, %v1353
    %v1355 = vpop.f32.mrb[0].mxu0
    %v1356 = vadd.f32 %v1282, %v1355
    %1357 = vdwg.mxu0
    %v1358 = vadd.f32 %v1354, %v304
    %v1359 = vadd.f32 %v1356, %v308
    %v1360 = vsub.f32 0.0, %v1358
    %v1361 = vmul.f32 %v1360, 1.442695
    %v1362 = vpow.pop %v1361
    %v1363 = vadd.f32 %v1362, 1.0
    %v1364 = vrcp.pop %v1363
    %v1365 = vmul.f32 1.0, %v1364
    %v1366 = vtanh.pop %v1359
    %v1367 = vsub.f32 0.0, %v1359
    %v1368 = vmul.f32 %v1367, 1.442695
    %v1369 = vpow.pop %v1368
    %v1370 = vadd.f32 %v1369, 1.0
    %v1371 = vrcp.pop %v1370
    %v1372 = vmul.f32 1.0, %v1371
    %v1373 = vmul.f32 %v1365, %v1032
    %v1374 = vmul.f32 %v1365, %v1366
    %1376 = vrot.lane.b32.xlu0 %v1374, 64
    %v1377 = vpop.permute.xlu0 %1376
    %v1379 = vadd.f32 %v1373, %v1377
    %v1380 = vtanh.pop %v1379
    %v1381 = vmul.f32 %v1372, %v1380
    %1383 = vrot.lane.b32.xlu0 %v1210, 64
    %v1384 = vpop.permute.xlu0 %1383
    %v1385 = vsel %vm150, %v1384, 0
    %1387 = vmatprep.subr.mxu0 %v133
    %1388 = vmatpush1.msra.mxu0 %v132
    %1389 = vmatprep.subr.mxu0 %v135
    %1390 = vmatpush1.msra.mxu0 %v134
    %1391 = vmatprep.subr.mxu0 %v137
    %1392 = vmatpush1.msra.mxu0 %v136
    %1393 = vmatprep.subr.mxu0 %v139
    %1394 = vmatpush1.msra.mxu0 %v138
    %1395 = vmatprep.subr.mxu0 %v141
    %1396 = vmatpush1.msra.mxu0 %v140
    %1397 = vmatprep.subr.mxu0 %v143
    %1398 = vmatpush1.msra.mxu0 %v142
    %1399 = vmatprep.subr.mxu0 %v145
    %1400 = vmatpush1.msra.mxu0 %v144
    %1401 = vmatprep.subr.mxu0 %v147
    %1402 = vmatpush1.msra.mxu0 %v146
    %1403 = vmatprep.subr.mxu0 0.0
    %1404 = vmatpush1.msra.mxu0 0.0
    %1405 = vmatprep.subr.mxu0 0.0
    %1406 = vmatpush1.msra.mxu0 0.0
    %1407 = vmatprep.subr.mxu0 0.0
    %1408 = vmatpush1.msra.mxu0 0.0
    %1409 = vmatprep.subr.mxu0 0.0
    %1410 = vmatpush1.msra.mxu0 0.0
    %1411 = vmatprep.subr.mxu0 0.0
    %1412 = vmatpush1.msra.mxu0 0.0
    %1413 = vmatprep.subr.mxu0 0.0
    %1414 = vmatpush1.msra.mxu0 0.0
    %1415 = vmatprep.subr.mxu0 0.0
    %1416 = vmatpush1.msra.mxu0 0.0
    %1417 = vmatprep.subr.mxu0 0.0
    %1418 = vmatpush1.msra.mxu0 0.0
    %1419 = vmatprep.subr.mxu0 0.0
    %1420 = vmatpush1.msra.mxu0 0.0
    %1421 = vmatprep.subr.mxu0 0.0
    %1422 = vmatpush1.msra.mxu0 0.0
    %1423 = vmatprep.subr.mxu0 0.0
    %1424 = vmatpush1.msra.mxu0 0.0
    %1425 = vmatprep.subr.mxu0 0.0
    %1426 = vmatpush1.msra.mxu0 0.0
    %1427 = vmatprep.subr.mxu0 0.0
    %1428 = vmatpush1.msra.mxu0 0.0
    %1429 = vmatprep.subr.mxu0 0.0
    %1430 = vmatpush1.msra.mxu0 0.0
    %1431 = vmatprep.subr.mxu0 0.0
    %1432 = vmatpush1.msra.mxu0 0.0
    %1433 = vmatprep.subr.mxu0 0.0
    %1434 = vmatpush1.msra.mxu0 0.0
    %1435 = vmatprep.subr.mxu0 0.0
    %1436 = vmatpush1.msra.mxu0 0.0
    %1437 = vmatprep.subr.mxu0 0.0
    %1438 = vmatpush1.msra.mxu0 0.0
    %1439 = vmatprep.subr.mxu0 0.0
    %1440 = vmatpush1.msra.mxu0 0.0
    %1441 = vmatprep.subr.mxu0 0.0
    %1442 = vmatpush1.msra.mxu0 0.0
    %1443 = vmatprep.subr.mxu0 0.0
    %1444 = vmatpush1.msra.mxu0 0.0
    %1445 = vmatprep.subr.mxu0 0.0
    %1446 = vmatpush1.msra.mxu0 0.0
    %1447 = vmatprep.subr.mxu0 0.0
    %1448 = vmatpush1.msra.mxu0 0.0
    %1449 = vmatprep.subr.mxu0 0.0
    %1450 = vmatpush1.msra.mxu0 0.0
    %1451 = vmatprep.mubr.f32.mxu0 0.0
    %1452 = vmatmul.mubr.f32.gmra.mrb[0].mxu0 %v1385
    %v1453 = vpop.f32.mrb[0].mxu0
    %v1454 = vadd.f32 0.0, %v1453
    %v1455 = vpop.f32.mrb[0].mxu0
    %v1456 = vadd.f32 0.0, %v1455
    %1457 = vdwg.mxu0
    %1459 = vrot.lane.b32.xlu0 %v1381, 64
    %v1460 = vpop.permute.xlu0 %1459
    %v1461 = vsel %vm150, %v1460, 0
    %1463 = vmatprep.subr.mxu0 %v117
    %1464 = vmatpush1.msra.mxu0 %v116
    %1465 = vmatprep.subr.mxu0 %v119
    %1466 = vmatpush1.msra.mxu0 %v118
    %1467 = vmatprep.subr.mxu0 %v121
    %1468 = vmatpush1.msra.mxu0 %v120
    %1469 = vmatprep.subr.mxu0 %v123
    %1470 = vmatpush1.msra.mxu0 %v122
    %1471 = vmatprep.subr.mxu0 %v125
    %1472 = vmatpush1.msra.mxu0 %v124
    %1473 = vmatprep.subr.mxu0 %v127
    %1474 = vmatpush1.msra.mxu0 %v126
    %1475 = vmatprep.subr.mxu0 %v129
    %1476 = vmatpush1.msra.mxu0 %v128
    %1477 = vmatprep.subr.mxu0 %v131
    %1478 = vmatpush1.msra.mxu0 %v130
    %1479 = vmatprep.subr.mxu0 0.0
    %1480 = vmatpush1.msra.mxu0 0.0
    %1481 = vmatprep.subr.mxu0 0.0
    %1482 = vmatpush1.msra.mxu0 0.0
    %1483 = vmatprep.subr.mxu0 0.0
    %1484 = vmatpush1.msra.mxu0 0.0
    %1485 = vmatprep.subr.mxu0 0.0
    %1486 = vmatpush1.msra.mxu0 0.0
    %1487 = vmatprep.subr.mxu0 0.0
    %1488 = vmatpush1.msra.mxu0 0.0
    %1489 = vmatprep.subr.mxu0 0.0
    %1490 = vmatpush1.msra.mxu0 0.0
    %1491 = vmatprep.subr.mxu0 0.0
    %1492 = vmatpush1.msra.mxu0 0.0
    %1493 = vmatprep.subr.mxu0 0.0
    %1494 = vmatpush1.msra.mxu0 0.0
    %1495 = vmatprep.subr.mxu0 0.0
    %1496 = vmatpush1.msra.mxu0 0.0
    %1497 = vmatprep.subr.mxu0 0.0
    %1498 = vmatpush1.msra.mxu0 0.0
    %1499 = vmatprep.subr.mxu0 0.0
    %1500 = vmatpush1.msra.mxu0 0.0
    %1501 = vmatprep.subr.mxu0 0.0
    %1502 = vmatpush1.msra.mxu0 0.0
    %1503 = vmatprep.subr.mxu0 0.0
    %1504 = vmatpush1.msra.mxu0 0.0
    %1505 = vmatprep.subr.mxu0 0.0
    %1506 = vmatpush1.msra.mxu0 0.0
    %1507 = vmatprep.subr.mxu0 0.0
    %1508 = vmatpush1.msra.mxu0 0.0
    %1509 = vmatprep.subr.mxu0 0.0
    %1510 = vmatpush1.msra.mxu0 0.0
    %1511 = vmatprep.subr.mxu0 0.0
    %1512 = vmatpush1.msra.mxu0 0.0
    %1513 = vmatprep.subr.mxu0 0.0
    %1514 = vmatpush1.msra.mxu0 0.0
    %1515 = vmatprep.subr.mxu0 0.0
    %1516 = vmatpush1.msra.mxu0 0.0
    %1517 = vmatprep.subr.mxu0 0.0
    %1518 = vmatpush1.msra.mxu0 0.0
    %1519 = vmatprep.subr.mxu0 0.0
    %1520 = vmatpush1.msra.mxu0 0.0
    %1521 = vmatprep.subr.mxu0 0.0
    %1522 = vmatpush1.msra.mxu0 0.0
    %1523 = vmatprep.subr.mxu0 0.0
    %1524 = vmatpush1.msra.mxu0 0.0
    %1525 = vmatprep.subr.mxu0 0.0
    %1526 = vmatpush1.msra.mxu0 0.0
    %1527 = vmatprep.mubr.f32.mxu0 0.0
    %1528 = vmatmul.mubr.f32.gmra.mrb[0].mxu0 %v1461
    %v1529 = vpop.f32.mrb[0].mxu0
    %v1530 = vadd.f32 %v1454, %v1529
    %v1531 = vpop.f32.mrb[0].mxu0
    %v1532 = vadd.f32 %v1456, %v1531
    %1533 = vdwg.mxu0
    %v1534 = vadd.f32 %v1530, %v486
    %v1535 = vadd.f32 %v1532, %v490
    %v1536 = vsub.f32 0.0, %v1534
    %v1537 = vmul.f32 %v1536, 1.442695
    %v1538 = vpow.pop %v1537
    %v1539 = vadd.f32 %v1538, 1.0
    %v1540 = vrcp.pop %v1539
    %v1541 = vmul.f32 1.0, %v1540
    %v1542 = vtanh.pop %v1535
    %v1543 = vsub.f32 0.0, %v1535
    %v1544 = vmul.f32 %v1543, 1.442695
    %v1545 = vpow.pop %v1544
    %v1546 = vadd.f32 %v1545, 1.0
    %v1547 = vrcp.pop %v1546
    %v1548 = vmul.f32 1.0, %v1547
    %v1549 = vmul.f32 %v1541, %v1208
    %v1550 = vmul.f32 %v1541, %v1542
    %1552 = vrot.lane.b32.xlu0 %v1550, 64
    %v1553 = vpop.permute.xlu0 %1552
    %v1555 = vadd.f32 %v1549, %v1553
    %v1556 = vtanh.pop %v1555
    %v1557 = vmul.f32 %v1548, %v1556
    %s1558 = scalar_lea.vmem [#allocation2], 4
    %v1559 = vld [vmem:[%s1558] sm:$0x1]
    %1560 = vmatprep.subr.mxu0 %v100
    %1561 = vmatpush1.msra.mxu0 %v99
    %1562 = vmatprep.subr.mxu0 %v102
    %1563 = vmatpush1.msra.mxu0 %v101
    %1564 = vmatprep.subr.mxu0 %v104
    %1565 = vmatpush1.msra.mxu0 %v103
    %1566 = vmatprep.subr.mxu0 %v106
    %1567 = vmatpush1.msra.mxu0 %v105
    %1568 = vmatprep.subr.mxu0 %v108
    %1569 = vmatpush1.msra.mxu0 %v107
    %1570 = vmatprep.subr.mxu0 %v110
    %1571 = vmatpush1.msra.mxu0 %v109
    %1572 = vmatprep.subr.mxu0 %v112
    %1573 = vmatpush1.msra.mxu0 %v111
    %1574 = vmatprep.subr.mxu0 %v114
    %1575 = vmatpush1.msra.mxu0 %v113
    %1576 = vmatprep.subr.mxu0 0.0
    %1577 = vmatpush1.msra.mxu0 0.0
    %1578 = vmatprep.subr.mxu0 0.0
    %1579 = vmatpush1.msra.mxu0 0.0
    %1580 = vmatprep.subr.mxu0 0.0
    %1581 = vmatpush1.msra.mxu0 0.0
    %1582 = vmatprep.subr.mxu0 0.0
    %1583 = vmatpush1.msra.mxu0 0.0
    %1584 = vmatprep.subr.mxu0 0.0
    %1585 = vmatpush1.msra.mxu0 0.0
    %1586 = vmatprep.subr.mxu0 0.0
    %1587 = vmatpush1.msra.mxu0 0.0
    %1588 = vmatprep.subr.mxu0 0.0
    %1589 = vmatpush1.msra.mxu0 0.0
    %1590 = vmatprep.subr.mxu0 0.0
    %1591 = vmatpush1.msra.mxu0 0.0
    %1592 = vmatprep.subr.mxu0 0.0
    %1593 = vmatpush1.msra.mxu0 0.0
    %1594 = vmatprep.subr.mxu0 0.0
    %1595 = vmatpush1.msra.mxu0 0.0
    %1596 = vmatprep.subr.mxu0 0.0
    %1597 = vmatpush1.msra.mxu0 0.0
    %1598 = vmatprep.subr.mxu0 0.0
    %1599 = vmatpush1.msra.mxu0 0.0
    %1600 = vmatprep.subr.mxu0 0.0
    %1601 = vmatpush1.msra.mxu0 0.0
    %1602 = vmatprep.subr.mxu0 0.0
    %1603 = vmatpush1.msra.mxu0 0.0
    %1604 = vmatprep.subr.mxu0 0.0
    %1605 = vmatpush1.msra.mxu0 0.0
    %1606 = vmatprep.subr.mxu0 0.0
    %1607 = vmatpush1.msra.mxu0 0.0
    %1608 = vmatprep.subr.mxu0 0.0
    %1609 = vmatpush1.msra.mxu0 0.0
    %1610 = vmatprep.subr.mxu0 0.0
    %1611 = vmatpush1.msra.mxu0 0.0
    %1612 = vmatprep.subr.mxu0 0.0
    %1613 = vmatpush1.msra.mxu0 0.0
    %1614 = vmatprep.subr.mxu0 0.0
    %1615 = vmatpush1.msra.mxu0 0.0
    %1616 = vmatprep.subr.mxu0 0.0
    %1617 = vmatpush1.msra.mxu0 0.0
    %1618 = vmatprep.subr.mxu0 0.0
    %1619 = vmatpush1.msra.mxu0 0.0
    %1620 = vmatprep.subr.mxu0 0.0
    %1621 = vmatpush1.msra.mxu0 0.0
    %1622 = vmatprep.subr.mxu0 0.0
    %1623 = vmatpush1.msra.mxu0 0.0
    %1624 = vmatprep.mubr.f32.mxu0 0.0
    %1625 = vmatmul.mubr.f32.gmra.mrb[0].mxu0 %v1461
    %v1626 = vpop.f32.mrb[0].mxu0
    %v1627 = vadd.f32 0.0, %v1626
    %v1628 = vpop.f32.mrb[0].mxu0
    %v1629 = vadd.f32 0.0, %v1628
    %1630 = vdwg.mxu0
    %v1632 = vsel %vm225, %v1559, 0
    %1634 = vmatprep.subr.mxu0 %v96
    %1635 = vmatpush1.msra.mxu0 %v95
    %1636 = vmatprep.subr.mxu0 %v98
    %1637 = vmatpush1.msra.mxu0 %v97
    %1638 = vmatprep.subr.mxu0 0.0
    %1639 = vmatpush1.msra.mxu0 0.0
    %1640 = vmatprep.subr.mxu0 0.0
    %1641 = vmatpush1.msra.mxu0 0.0
    %1642 = vmatprep.subr.mxu0 0.0
    %1643 = vmatpush1.msra.mxu0 0.0
    %1644 = vmatprep.subr.mxu0 0.0
    %1645 = vmatpush1.msra.mxu0 0.0
    %1646 = vmatprep.subr.mxu0 0.0
    %1647 = vmatpush1.msra.mxu0 0.0
    %1648 = vmatprep.subr.mxu0 0.0
    %1649 = vmatpush1.msra.mxu0 0.0
    %1650 = vmatprep.subr.mxu0 0.0
    %1651 = vmatpush1.msra.mxu0 0.0
    %1652 = vmatprep.subr.mxu0 0.0
    %1653 = vmatpush1.msra.mxu0 0.0
    %1654 = vmatprep.subr.mxu0 0.0
    %1655 = vmatpush1.msra.mxu0 0.0
    %1656 = vmatprep.subr.mxu0 0.0
    %1657 = vmatpush1.msra.mxu0 0.0
    %1658 = vmatprep.subr.mxu0 0.0
    %1659 = vmatpush1.msra.mxu0 0.0
    %1660 = vmatprep.subr.mxu0 0.0
    %1661 = vmatpush1.msra.mxu0 0.0
    %1662 = vmatprep.subr.mxu0 0.0
    %1663 = vmatpush1.msra.mxu0 0.0
    %1664 = vmatprep.subr.mxu0 0.0
    %1665 = vmatpush1.msra.mxu0 0.0
    %1666 = vmatprep.subr.mxu0 0.0
    %1667 = vmatpush1.msra.mxu0 0.0
    %1668 = vmatprep.subr.mxu0 0.0
    %1669 = vmatpush1.msra.mxu0 0.0
    %1670 = vmatprep.subr.mxu0 0.0
    %1671 = vmatpush1.msra.mxu0 0.0
    %1672 = vmatprep.subr.mxu0 0.0
    %1673 = vmatpush1.msra.mxu0 0.0
    %1674 = vmatprep.subr.mxu0 0.0
    %1675 = vmatpush1.msra.mxu0 0.0
    %1676 = vmatprep.subr.mxu0 0.0
    %1677 = vmatpush1.msra.mxu0 0.0
    %1678 = vmatprep.subr.mxu0 0.0
    %1679 = vmatpush1.msra.mxu0 0.0
    %1680 = vmatprep.subr.mxu0 0.0
    %1681 = vmatpush1.msra.mxu0 0.0
    %1682 = vmatprep.subr.mxu0 0.0
    %1683 = vmatpush1.msra.mxu0 0.0
    %1684 = vmatprep.subr.mxu0 0.0
    %1685 = vmatpush1.msra.mxu0 0.0
    %1686 = vmatprep.subr.mxu0 0.0
    %1687 = vmatpush1.msra.mxu0 0.0
    %1688 = vmatprep.subr.mxu0 0.0
    %1689 = vmatpush1.msra.mxu0 0.0
    %1690 = vmatprep.subr.mxu0 0.0
    %1691 = vmatpush1.msra.mxu0 0.0
    %1692 = vmatprep.subr.mxu0 0.0
    %1693 = vmatpush1.msra.mxu0 0.0
    %1694 = vmatprep.subr.mxu0 0.0
    %1695 = vmatpush1.msra.mxu0 0.0
    %1696 = vmatprep.subr.mxu0 0.0
    %1697 = vmatpush1.msra.mxu0 0.0
    %1698 = vmatprep.mubr.f32.mxu0 0.0
    %1699 = vmatmul.mubr.f32.gmra.mrb[0].mxu0 %v1632
    %v1700 = vpop.f32.mrb[0].mxu0
    %v1701 = vadd.f32 %v1627, %v1700
    %v1702 = vpop.f32.mrb[0].mxu0
    %v1703 = vadd.f32 %v1629, %v1702
    %1704 = vdwg.mxu0
    %v1705 = vadd.f32 %v1701, %v304
    %v1706 = vadd.f32 %v1703, %v308
    %v1707 = vsub.f32 0.0, %v1705
    %v1708 = vmul.f32 %v1707, 1.442695
    %v1709 = vpow.pop %v1708
    %v1710 = vadd.f32 %v1709, 1.0
    %v1711 = vrcp.pop %v1710
    %v1712 = vmul.f32 1.0, %v1711
    %v1713 = vtanh.pop %v1706
    %v1714 = vsub.f32 0.0, %v1706
    %v1715 = vmul.f32 %v1714, 1.442695
    %v1716 = vpow.pop %v1715
    %v1717 = vadd.f32 %v1716, 1.0
    %v1718 = vrcp.pop %v1717
    %v1719 = vmul.f32 1.0, %v1718
    %v1720 = vmul.f32 %v1712, %v1379
    %v1721 = vmul.f32 %v1712, %v1713
    %1723 = vrot.lane.b32.xlu0 %v1721, 64
    %v1724 = vpop.permute.xlu0 %1723
    %v1726 = vadd.f32 %v1720, %v1724
    %v1727 = vtanh.pop %v1726
    %v1728 = vmul.f32 %v1719, %v1727
    %1730 = vrot.lane.b32.xlu0 %v1557, 64
    %v1731 = vpop.permute.xlu0 %1730
    %v1732 = vsel %vm150, %v1731, 0
    %1734 = vmatprep.subr.mxu0 %v133
    %1735 = vmatpush1.msra.mxu0 %v132
    %1736 = vmatprep.subr.mxu0 %v135
    %1737 = vmatpush1.msra.mxu0 %v134
    %1738 = vmatprep.subr.mxu0 %v137
    %1739 = vmatpush1.msra.mxu0 %v136
    %1740 = vmatprep.subr.mxu0 %v139
    %1741 = vmatpush1.msra.mxu0 %v138
    %1742 = vmatprep.subr.mxu0 %v141
    %1743 = vmatpush1.msra.mxu0 %v140
    %1744 = vmatprep.subr.mxu0 %v143
    %1745 = vmatpush1.msra.mxu0 %v142
    %1746 = vmatprep.subr.mxu0 %v145
    %1747 = vmatpush1.msra.mxu0 %v144
    %1748 = vmatprep.subr.mxu0 %v147
    %1749 = vmatpush1.msra.mxu0 %v146
    %1750 = vmatprep.subr.mxu0 0.0
    %1751 = vmatpush1.msra.mxu0 0.0
    %1752 = vmatprep.subr.mxu0 0.0
    %1753 = vmatpush1.msra.mxu0 0.0
    %1754 = vmatprep.subr.mxu0 0.0
    %1755 = vmatpush1.msra.mxu0 0.0
    %1756 = vmatprep.subr.mxu0 0.0
    %1757 = vmatpush1.msra.mxu0 0.0
    %1758 = vmatprep.subr.mxu0 0.0
    %1759 = vmatpush1.msra.mxu0 0.0
    %1760 = vmatprep.subr.mxu0 0.0
    %1761 = vmatpush1.msra.mxu0 0.0
    %1762 = vmatprep.subr.mxu0 0.0
    %1763 = vmatpush1.msra.mxu0 0.0
    %1764 = vmatprep.subr.mxu0 0.0
    %1765 = vmatpush1.msra.mxu0 0.0
    %1766 = vmatprep.subr.mxu0 0.0
    %1767 = vmatpush1.msra.mxu0 0.0
    %1768 = vmatprep.subr.mxu0 0.0
    %1769 = vmatpush1.msra.mxu0 0.0
    %1770 = vmatprep.subr.mxu0 0.0
    %1771 = vmatpush1.msra.mxu0 0.0
    %1772 = vmatprep.subr.mxu0 0.0
    %1773 = vmatpush1.msra.mxu0 0.0
    %1774 = vmatprep.subr.mxu0 0.0
    %1775 = vmatpush1.msra.mxu0 0.0
    %1776 = vmatprep.subr.mxu0 0.0
    %1777 = vmatpush1.msra.mxu0 0.0
    %1778 = vmatprep.subr.mxu0 0.0
    %1779 = vmatpush1.msra.mxu0 0.0
    %1780 = vmatprep.subr.mxu0 0.0
    %1781 = vmatpush1.msra.mxu0 0.0
    %1782 = vmatprep.subr.mxu0 0.0
    %1783 = vmatpush1.msra.mxu0 0.0
    %1784 = vmatprep.subr.mxu0 0.0
    %1785 = vmatpush1.msra.mxu0 0.0
    %1786 = vmatprep.subr.mxu0 0.0
    %1787 = vmatpush1.msra.mxu0 0.0
    %1788 = vmatprep.subr.mxu0 0.0
    %1789 = vmatpush1.msra.mxu0 0.0
    %1790 = vmatprep.subr.mxu0 0.0
    %1791 = vmatpush1.msra.mxu0 0.0
    %1792 = vmatprep.subr.mxu0 0.0
    %1793 = vmatpush1.msra.mxu0 0.0
    %1794 = vmatprep.subr.mxu0 0.0
    %1795 = vmatpush1.msra.mxu0 0.0
    %1796 = vmatprep.subr.mxu0 0.0
    %1797 = vmatpush1.msra.mxu0 0.0
    %1798 = vmatprep.mubr.f32.mxu0 0.0
    %1799 = vmatmul.mubr.f32.gmra.mrb[0].mxu0 %v1732
    %v1800 = vpop.f32.mrb[0].mxu0
    %v1801 = vadd.f32 0.0, %v1800
    %v1802 = vpop.f32.mrb[0].mxu0
    %v1803 = vadd.f32 0.0, %v1802
    %1804 = vdwg.mxu0
    %1806 = vrot.lane.b32.xlu0 %v1728, 64
    %v1807 = vpop.permute.xlu0 %1806
    %v1808 = vsel %vm150, %v1807, 0
    %1810 = vmatprep.subr.mxu0 %v117
    %1811 = vmatpush1.msra.mxu0 %v116
    %1812 = vmatprep.subr.mxu0 %v119
    %1813 = vmatpush1.msra.mxu0 %v118
    %1814 = vmatprep.subr.mxu0 %v121
    %1815 = vmatpush1.msra.mxu0 %v120
    %1816 = vmatprep.subr.mxu0 %v123
    %1817 = vmatpush1.msra.mxu0 %v122
    %1818 = vmatprep.subr.mxu0 %v125
    %1819 = vmatpush1.msra.mxu0 %v124
    %1820 = vmatprep.subr.mxu0 %v127
    %1821 = vmatpush1.msra.mxu0 %v126
    %1822 = vmatprep.subr.mxu0 %v129
    %1823 = vmatpush1.msra.mxu0 %v128
    %1824 = vmatprep.subr.mxu0 %v131
    %1825 = vmatpush1.msra.mxu0 %v130
    %1826 = vmatprep.subr.mxu0 0.0
    %1827 = vmatpush1.msra.mxu0 0.0
    %1828 = vmatprep.subr.mxu0 0.0
    %1829 = vmatpush1.msra.mxu0 0.0
    %1830 = vmatprep.subr.mxu0 0.0
    %1831 = vmatpush1.msra.mxu0 0.0
    %1832 = vmatprep.subr.mxu0 0.0
    %1833 = vmatpush1.msra.mxu0 0.0
    %1834 = vmatprep.subr.mxu0 0.0
    %1835 = vmatpush1.msra.mxu0 0.0
    %1836 = vmatprep.subr.mxu0 0.0
    %1837 = vmatpush1.msra.mxu0 0.0
    %1838 = vmatprep.subr.mxu0 0.0
    %1839 = vmatpush1.msra.mxu0 0.0
    %1840 = vmatprep.subr.mxu0 0.0
    %1841 = vmatpush1.msra.mxu0 0.0
    %1842 = vmatprep.subr.mxu0 0.0
    %1843 = vmatpush1.msra.mxu0 0.0
    %1844 = vmatprep.subr.mxu0 0.0
    %1845 = vmatpush1.msra.mxu0 0.0
    %1846 = vmatprep.subr.mxu0 0.0
    %1847 = vmatpush1.msra.mxu0 0.0
    %1848 = vmatprep.subr.mxu0 0.0
    %1849 = vmatpush1.msra.mxu0 0.0
    %1850 = vmatprep.subr.mxu0 0.0
    %1851 = vmatpush1.msra.mxu0 0.0
    %1852 = vmatprep.subr.mxu0 0.0
    %1853 = vmatpush1.msra.mxu0 0.0
    %1854 = vmatprep.subr.mxu0 0.0
    %1855 = vmatpush1.msra.mxu0 0.0
    %1856 = vmatprep.subr.mxu0 0.0
    %1857 = vmatpush1.msra.mxu0 0.0
    %1858 = vmatprep.subr.mxu0 0.0
    %1859 = vmatpush1.msra.mxu0 0.0
    %1860 = vmatprep.subr.mxu0 0.0
    %1861 = vmatpush1.msra.mxu0 0.0
    %1862 = vmatprep.subr.mxu0 0.0
    %1863 = vmatpush1.msra.mxu0 0.0
    %1864 = vmatprep.subr.mxu0 0.0
    %1865 = vmatpush1.msra.mxu0 0.0
    %1866 = vmatprep.subr.mxu0 0.0
    %1867 = vmatpush1.msra.mxu0 0.0
    %1868 = vmatprep.subr.mxu0 0.0
    %1869 = vmatpush1.msra.mxu0 0.0
    %1870 = vmatprep.subr.mxu0 0.0
    %1871 = vmatpush1.msra.mxu0 0.0
    %1872 = vmatprep.subr.mxu0 0.0
    %1873 = vmatpush1.msra.mxu0 0.0
    %1874 = vmatprep.mubr.f32.mxu0 0.0
    %1875 = vmatmul.mubr.f32.gmra.mrb[0].mxu0 %v1808
    %v1876 = vpop.f32.mrb[0].mxu0
    %v1877 = vadd.f32 %v1801, %v1876
    %v1878 = vpop.f32.mrb[0].mxu0
    %v1879 = vadd.f32 %v1803, %v1878
    %1880 = vdwg.mxu0
    %v1881 = vadd.f32 %v1877, %v486
    %v1882 = vadd.f32 %v1879, %v490
    %v1883 = vsub.f32 0.0, %v1881
    %v1884 = vmul.f32 %v1883, 1.442695
    %v1885 = vpow.pop %v1884
    %v1886 = vadd.f32 %v1885, 1.0
    %v1887 = vrcp.pop %v1886
    %v1888 = vmul.f32 1.0, %v1887
    %v1889 = vtanh.pop %v1882
    %v1890 = vsub.f32 0.0, %v1882
    %v1891 = vmul.f32 %v1890, 1.442695
    %v1892 = vpow.pop %v1891
    %v1893 = vadd.f32 %v1892, 1.0
    %v1894 = vrcp.pop %v1893
    %v1895 = vmul.f32 1.0, %v1894
    %v1896 = vmul.f32 %v1888, %v1555
    %v1897 = vmul.f32 %v1888, %v1889
    %1899 = vrot.lane.b32.xlu0 %v1897, 64
    %v1900 = vpop.permute.xlu0 %1899
    %v1902 = vadd.f32 %v1896, %v1900
    %v1903 = vtanh.pop %v1902
    %v1904 = vmul.f32 %v1895, %v1903
    %s1905 = scalar_lea.vmem [#allocation2], 5
    %v1906 = vld [vmem:[%s1905] sm:$0x1]
    %1907 = vmatprep.subr.mxu0 %v100
    %1908 = vmatpush1.msra.mxu0 %v99
    %1909 = vmatprep.subr.mxu0 %v102
    %1910 = vmatpush1.msra.mxu0 %v101
    %1911 = vmatprep.subr.mxu0 %v104
    %1912 = vmatpush1.msra.mxu0 %v103
    %1913 = vmatprep.subr.mxu0 %v106
    %1914 = vmatpush1.msra.mxu0 %v105
    %1915 = vmatprep.subr.mxu0 %v108
    %1916 = vmatpush1.msra.mxu0 %v107
    %1917 = vmatprep.subr.mxu0 %v110
    %1918 = vmatpush1.msra.mxu0 %v109
    %1919 = vmatprep.subr.mxu0 %v112
    %1920 = vmatpush1.msra.mxu0 %v111
    %1921 = vmatprep.subr.mxu0 %v114
    %1922 = vmatpush1.msra.mxu0 %v113
    %1923 = vmatprep.subr.mxu0 0.0
    %1924 = vmatpush1.msra.mxu0 0.0
    %1925 = vmatprep.subr.mxu0 0.0
    %1926 = vmatpush1.msra.mxu0 0.0
    %1927 = vmatprep.subr.mxu0 0.0
    %1928 = vmatpush1.msra.mxu0 0.0
    %1929 = vmatprep.subr.mxu0 0.0
    %1930 = vmatpush1.msra.mxu0 0.0
    %1931 = vmatprep.subr.mxu0 0.0
    %1932 = vmatpush1.msra.mxu0 0.0
    %1933 = vmatprep.subr.mxu0 0.0
    %1934 = vmatpush1.msra.mxu0 0.0
    %1935 = vmatprep.subr.mxu0 0.0
    %1936 = vmatpush1.msra.mxu0 0.0
    %1937 = vmatprep.subr.mxu0 0.0
    %1938 = vmatpush1.msra.mxu0 0.0
    %1939 = vmatprep.subr.mxu0 0.0
    %1940 = vmatpush1.msra.mxu0 0.0
    %1941 = vmatprep.subr.mxu0 0.0
    %1942 = vmatpush1.msra.mxu0 0.0
    %1943 = vmatprep.subr.mxu0 0.0
    %1944 = vmatpush1.msra.mxu0 0.0
    %1945 = vmatprep.subr.mxu0 0.0
    %1946 = vmatpush1.msra.mxu0 0.0
    %1947 = vmatprep.subr.mxu0 0.0
    %1948 = vmatpush1.msra.mxu0 0.0
    %1949 = vmatprep.subr.mxu0 0.0
    %1950 = vmatpush1.msra.mxu0 0.0
    %1951 = vmatprep.subr.mxu0 0.0
    %1952 = vmatpush1.msra.mxu0 0.0
    %1953 = vmatprep.subr.mxu0 0.0
    %1954 = vmatpush1.msra.mxu0 0.0
    %1955 = vmatprep.subr.mxu0 0.0
    %1956 = vmatpush1.msra.mxu0 0.0
    %1957 = vmatprep.subr.mxu0 0.0
    %1958 = vmatpush1.msra.mxu0 0.0
    %1959 = vmatprep.subr.mxu0 0.0
    %1960 = vmatpush1.msra.mxu0 0.0
    %1961 = vmatprep.subr.mxu0 0.0
    %1962 = vmatpush1.msra.mxu0 0.0
    %1963 = vmatprep.subr.mxu0 0.0
    %1964 = vmatpush1.msra.mxu0 0.0
    %1965 = vmatprep.subr.mxu0 0.0
    %1966 = vmatpush1.msra.mxu0 0.0
    %1967 = vmatprep.subr.mxu0 0.0
    %1968 = vmatpush1.msra.mxu0 0.0
    %1969 = vmatprep.subr.mxu0 0.0
    %1970 = vmatpush1.msra.mxu0 0.0
    %1971 = vmatprep.mubr.f32.mxu0 0.0
    %1972 = vmatmul.mubr.f32.gmra.mrb[0].mxu0 %v1808
    %v1973 = vpop.f32.mrb[0].mxu0
    %v1974 = vadd.f32 0.0, %v1973
    %v1975 = vpop.f32.mrb[0].mxu0
    %v1976 = vadd.f32 0.0, %v1975
    %1977 = vdwg.mxu0
    %v1979 = vsel %vm225, %v1906, 0
    %1981 = vmatprep.subr.mxu0 %v96
    %1982 = vmatpush1.msra.mxu0 %v95
    %1983 = vmatprep.subr.mxu0 %v98
    %1984 = vmatpush1.msra.mxu0 %v97
    %1985 = vmatprep.subr.mxu0 0.0
    %1986 = vmatpush1.msra.mxu0 0.0
    %1987 = vmatprep.subr.mxu0 0.0
    %1988 = vmatpush1.msra.mxu0 0.0
    %1989 = vmatprep.subr.mxu0 0.0
    %1990 = vmatpush1.msra.mxu0 0.0
    %1991 = vmatprep.subr.mxu0 0.0
    %1992 = vmatpush1.msra.mxu0 0.0
    %1993 = vmatprep.subr.mxu0 0.0
    %1994 = vmatpush1.msra.mxu0 0.0
    %1995 = vmatprep.subr.mxu0 0.0
    %1996 = vmatpush1.msra.mxu0 0.0
    %1997 = vmatprep.subr.mxu0 0.0
    %1998 = vmatpush1.msra.mxu0 0.0
    %1999 = vmatprep.subr.mxu0 0.0
    %2000 = vmatpush1.msra.mxu0 0.0
    %2001 = vmatprep.subr.mxu0 0.0
    %2002 = vmatpush1.msra.mxu0 0.0
    %2003 = vmatprep.subr.mxu0 0.0
    %2004 = vmatpush1.msra.mxu0 0.0
    %2005 = vmatprep.subr.mxu0 0.0
    %2006 = vmatpush1.msra.mxu0 0.0
    %2007 = vmatprep.subr.mxu0 0.0
    %2008 = vmatpush1.msra.mxu0 0.0
    %2009 = vmatprep.subr.mxu0 0.0
    %2010 = vmatpush1.msra.mxu0 0.0
    %2011 = vmatprep.subr.mxu0 0.0
    %2012 = vmatpush1.msra.mxu0 0.0
    %2013 = vmatprep.subr.mxu0 0.0
    %2014 = vmatpush1.msra.mxu0 0.0
    %2015 = vmatprep.subr.mxu0 0.0
    %2016 = vmatpush1.msra.mxu0 0.0
    %2017 = vmatprep.subr.mxu0 0.0
    %2018 = vmatpush1.msra.mxu0 0.0
    %2019 = vmatprep.subr.mxu0 0.0
    %2020 = vmatpush1.msra.mxu0 0.0
    %2021 = vmatprep.subr.mxu0 0.0
    %2022 = vmatpush1.msra.mxu0 0.0
    %2023 = vmatprep.subr.mxu0 0.0
    %2024 = vmatpush1.msra.mxu0 0.0
    %2025 = vmatprep.subr.mxu0 0.0
    %2026 = vmatpush1.msra.mxu0 0.0
    %2027 = vmatprep.subr.mxu0 0.0
    %2028 = vmatpush1.msra.mxu0 0.0
    %2029 = vmatprep.subr.mxu0 0.0
    %2030 = vmatpush1.msra.mxu0 0.0
    %2031 = vmatprep.subr.mxu0 0.0
    %2032 = vmatpush1.msra.mxu0 0.0
    %2033 = vmatprep.subr.mxu0 0.0
    %2034 = vmatpush1.msra.mxu0 0.0
    %2035 = vmatprep.subr.mxu0 0.0
    %2036 = vmatpush1.msra.mxu0 0.0
    %2037 = vmatprep.subr.mxu0 0.0
    %2038 = vmatpush1.msra.mxu0 0.0
    %2039 = vmatprep.subr.mxu0 0.0
    %2040 = vmatpush1.msra.mxu0 0.0
    %2041 = vmatprep.subr.mxu0 0.0
    %2042 = vmatpush1.msra.mxu0 0.0
    %2043 = vmatprep.subr.mxu0 0.0
    %2044 = vmatpush1.msra.mxu0 0.0
    %2045 = vmatprep.mubr.f32.mxu0 0.0
    %2046 = vmatmul.mubr.f32.gmra.mrb[0].mxu0 %v1979
    %v2047 = vpop.f32.mrb[0].mxu0
    %v2048 = vadd.f32 %v1974, %v2047
    %v2049 = vpop.f32.mrb[0].mxu0
    %v2050 = vadd.f32 %v1976, %v2049
    %2051 = vdwg.mxu0
    %v2052 = vadd.f32 %v2048, %v304
    %v2053 = vadd.f32 %v2050, %v308
    %v2054 = vsub.f32 0.0, %v2052
    %v2055 = vmul.f32 %v2054, 1.442695
    %v2056 = vpow.pop %v2055
    %v2057 = vadd.f32 %v2056, 1.0
    %v2058 = vrcp.pop %v2057
    %v2059 = vmul.f32 1.0, %v2058
    %v2060 = vtanh.pop %v2053
    %v2061 = vsub.f32 0.0, %v2053
    %v2062 = vmul.f32 %v2061, 1.442695
    %v2063 = vpow.pop %v2062
    %v2064 = vadd.f32 %v2063, 1.0
    %v2065 = vrcp.pop %v2064
    %v2066 = vmul.f32 1.0, %v2065
    %v2067 = vmul.f32 %v2059, %v1726
    %v2068 = vmul.f32 %v2059, %v2060
    %2070 = vrot.lane.b32.xlu0 %v2068, 64
    %v2071 = vpop.permute.xlu0 %2070
    %v2073 = vadd.f32 %v2067, %v2071
    %v2074 = vtanh.pop %v2073
    %v2075 = vmul.f32 %v2066, %v2074
    %2077 = vrot.lane.b32.xlu0 %v1904, 64
    %v2078 = vpop.permute.xlu0 %2077
    %v2079 = vsel %vm150, %v2078, 0
    %2081 = vmatprep.subr.mxu0 %v133
    %2082 = vmatpush1.msra.mxu0 %v132
    %2083 = vmatprep.subr.mxu0 %v135
    %2084 = vmatpush1.msra.mxu0 %v134
    %2085 = vmatprep.subr.mxu0 %v137
    %2086 = vmatpush1.msra.mxu0 %v136
    %2087 = vmatprep.subr.mxu0 %v139
    %2088 = vmatpush1.msra.mxu0 %v138
    %2089 = vmatprep.subr.mxu0 %v141
    %2090 = vmatpush1.msra.mxu0 %v140
    %2091 = vmatprep.subr.mxu0 %v143
    %2092 = vmatpush1.msra.mxu0 %v142
    %2093 = vmatprep.subr.mxu0 %v145
    %2094 = vmatpush1.msra.mxu0 %v144
    %2095 = vmatprep.subr.mxu0 %v147
    %2096 = vmatpush1.msra.mxu0 %v146
    %2097 = vmatprep.subr.mxu0 0.0
    %2098 = vmatpush1.msra.mxu0 0.0
    %2099 = vmatprep.subr.mxu0 0.0
    %2100 = vmatpush1.msra.mxu0 0.0
    %2101 = vmatprep.subr.mxu0 0.0
    %2102 = vmatpush1.msra.mxu0 0.0
    %2103 = vmatprep.subr.mxu0 0.0
    %2104 = vmatpush1.msra.mxu0 0.0
    %2105 = vmatprep.subr.mxu0 0.0
    %2106 = vmatpush1.msra.mxu0 0.0
    %2107 = vmatprep.subr.mxu0 0.0
    %2108 = vmatpush1.msra.mxu0 0.0
    %2109 = vmatprep.subr.mxu0 0.0
    %2110 = vmatpush1.msra.mxu0 0.0
    %2111 = vmatprep.subr.mxu0 0.0
    %2112 = vmatpush1.msra.mxu0 0.0
    %2113 = vmatprep.subr.mxu0 0.0
    %2114 = vmatpush1.msra.mxu0 0.0
    %2115 = vmatprep.subr.mxu0 0.0
    %2116 = vmatpush1.msra.mxu0 0.0
    %2117 = vmatprep.subr.mxu0 0.0
    %2118 = vmatpush1.msra.mxu0 0.0
    %2119 = vmatprep.subr.mxu0 0.0
    %2120 = vmatpush1.msra.mxu0 0.0
    %2121 = vmatprep.subr.mxu0 0.0
    %2122 = vmatpush1.msra.mxu0 0.0
    %2123 = vmatprep.subr.mxu0 0.0
    %2124 = vmatpush1.msra.mxu0 0.0
    %2125 = vmatprep.subr.mxu0 0.0
    %2126 = vmatpush1.msra.mxu0 0.0
    %2127 = vmatprep.subr.mxu0 0.0
    %2128 = vmatpush1.msra.mxu0 0.0
    %2129 = vmatprep.subr.mxu0 0.0
    %2130 = vmatpush1.msra.mxu0 0.0
    %2131 = vmatprep.subr.mxu0 0.0
    %2132 = vmatpush1.msra.mxu0 0.0
    %2133 = vmatprep.subr.mxu0 0.0
    %2134 = vmatpush1.msra.mxu0 0.0
    %2135 = vmatprep.subr.mxu0 0.0
    %2136 = vmatpush1.msra.mxu0 0.0
    %2137 = vmatprep.subr.mxu0 0.0
    %2138 = vmatpush1.msra.mxu0 0.0
    %2139 = vmatprep.subr.mxu0 0.0
    %2140 = vmatpush1.msra.mxu0 0.0
    %2141 = vmatprep.subr.mxu0 0.0
    %2142 = vmatpush1.msra.mxu0 0.0
    %2143 = vmatprep.subr.mxu0 0.0
    %2144 = vmatpush1.msra.mxu0 0.0
    %2145 = vmatprep.mubr.f32.mxu0 0.0
    %2146 = vmatmul.mubr.f32.gmra.mrb[0].mxu0 %v2079
    %v2147 = vpop.f32.mrb[0].mxu0
    %v2148 = vadd.f32 0.0, %v2147
    %v2149 = vpop.f32.mrb[0].mxu0
    %v2150 = vadd.f32 0.0, %v2149
    %2151 = vdwg.mxu0
    %2153 = vrot.lane.b32.xlu0 %v2075, 64
    %v2154 = vpop.permute.xlu0 %2153
    %v2155 = vsel %vm150, %v2154, 0
    %2157 = vmatprep.subr.mxu0 %v117
    %2158 = vmatpush1.msra.mxu0 %v116
    %2159 = vmatprep.subr.mxu0 %v119
    %2160 = vmatpush1.msra.mxu0 %v118
    %2161 = vmatprep.subr.mxu0 %v121
    %2162 = vmatpush1.msra.mxu0 %v120
    %2163 = vmatprep.subr.mxu0 %v123
    %2164 = vmatpush1.msra.mxu0 %v122
    %2165 = vmatprep.subr.mxu0 %v125
    %2166 = vmatpush1.msra.mxu0 %v124
    %2167 = vmatprep.subr.mxu0 %v127
    %2168 = vmatpush1.msra.mxu0 %v126
    %2169 = vmatprep.subr.mxu0 %v129
    %2170 = vmatpush1.msra.mxu0 %v128
    %2171 = vmatprep.subr.mxu0 %v131
    %2172 = vmatpush1.msra.mxu0 %v130
    %2173 = vmatprep.subr.mxu0 0.0
    %2174 = vmatpush1.msra.mxu0 0.0
    %2175 = vmatprep.subr.mxu0 0.0
    %2176 = vmatpush1.msra.mxu0 0.0
    %2177 = vmatprep.subr.mxu0 0.0
    %2178 = vmatpush1.msra.mxu0 0.0
    %2179 = vmatprep.subr.mxu0 0.0
    %2180 = vmatpush1.msra.mxu0 0.0
    %2181 = vmatprep.subr.mxu0 0.0
    %2182 = vmatpush1.msra.mxu0 0.0
    %2183 = vmatprep.subr.mxu0 0.0
    %2184 = vmatpush1.msra.mxu0 0.0
    %2185 = vmatprep.subr.mxu0 0.0
    %2186 = vmatpush1.msra.mxu0 0.0
    %2187 = vmatprep.subr.mxu0 0.0
    %2188 = vmatpush1.msra.mxu0 0.0
    %2189 = vmatprep.subr.mxu0 0.0
    %2190 = vmatpush1.msra.mxu0 0.0
    %2191 = vmatprep.subr.mxu0 0.0
    %2192 = vmatpush1.msra.mxu0 0.0
    %2193 = vmatprep.subr.mxu0 0.0
    %2194 = vmatpush1.msra.mxu0 0.0
    %2195 = vmatprep.subr.mxu0 0.0
    %2196 = vmatpush1.msra.mxu0 0.0
    %2197 = vmatprep.subr.mxu0 0.0
    %2198 = vmatpush1.msra.mxu0 0.0
    %2199 = vmatprep.subr.mxu0 0.0
    %2200 = vmatpush1.msra.mxu0 0.0
    %2201 = vmatprep.subr.mxu0 0.0
    %2202 = vmatpush1.msra.mxu0 0.0
    %2203 = vmatprep.subr.mxu0 0.0
    %2204 = vmatpush1.msra.mxu0 0.0
    %2205 = vmatprep.subr.mxu0 0.0
    %2206 = vmatpush1.msra.mxu0 0.0
    %2207 = vmatprep.subr.mxu0 0.0
    %2208 = vmatpush1.msra.mxu0 0.0
    %2209 = vmatprep.subr.mxu0 0.0
    %2210 = vmatpush1.msra.mxu0 0.0
    %2211 = vmatprep.subr.mxu0 0.0
    %2212 = vmatpush1.msra.mxu0 0.0
    %2213 = vmatprep.subr.mxu0 0.0
    %2214 = vmatpush1.msra.mxu0 0.0
    %2215 = vmatprep.subr.mxu0 0.0
    %2216 = vmatpush1.msra.mxu0 0.0
    %2217 = vmatprep.subr.mxu0 0.0
    %2218 = vmatpush1.msra.mxu0 0.0
    %2219 = vmatprep.subr.mxu0 0.0
    %2220 = vmatpush1.msra.mxu0 0.0
    %2221 = vmatprep.mubr.f32.mxu0 0.0
    %2222 = vmatmul.mubr.f32.gmra.mrb[0].mxu0 %v2155
    %v2223 = vpop.f32.mrb[0].mxu0
    %v2224 = vadd.f32 %v2148, %v2223
    %v2225 = vpop.f32.mrb[0].mxu0
    %v2226 = vadd.f32 %v2150, %v2225
    %2227 = vdwg.mxu0
    %v2228 = vadd.f32 %v2224, %v486
    %v2229 = vadd.f32 %v2226, %v490
    %v2230 = vsub.f32 0.0, %v2228
    %v2231 = vmul.f32 %v2230, 1.442695
    %v2232 = vpow.pop %v2231
    %v2233 = vadd.f32 %v2232, 1.0
    %v2234 = vrcp.pop %v2233
    %v2235 = vmul.f32 1.0, %v2234
    %v2236 = vtanh.pop %v2229
    %v2237 = vsub.f32 0.0, %v2229
    %v2238 = vmul.f32 %v2237, 1.442695
    %v2239 = vpow.pop %v2238
    %v2240 = vadd.f32 %v2239, 1.0
    %v2241 = vrcp.pop %v2240
    %v2242 = vmul.f32 1.0, %v2241
    %v2243 = vmul.f32 %v2235, %v1902
    %v2244 = vmul.f32 %v2235, %v2236
    %2246 = vrot.lane.b32.xlu0 %v2244, 64
    %v2247 = vpop.permute.xlu0 %2246
    %v2249 = vadd.f32 %v2243, %v2247
    %v2250 = vtanh.pop %v2249
    %v2251 = vmul.f32 %v2242, %v2250
    %s2252 = scalar_lea.vmem [#allocation2], 6
    %v2253 = vld [vmem:[%s2252] sm:$0x1]
    %2254 = vmatprep.subr.mxu0 %v100
    %2255 = vmatpush1.msra.mxu0 %v99
    %2256 = vmatprep.subr.mxu0 %v102
    %2257 = vmatpush1.msra.mxu0 %v101
    %2258 = vmatprep.subr.mxu0 %v104
    %2259 = vmatpush1.msra.mxu0 %v103
    %2260 = vmatprep.subr.mxu0 %v106
    %2261 = vmatpush1.msra.mxu0 %v105
    %2262 = vmatprep.subr.mxu0 %v108
    %2263 = vmatpush1.msra.mxu0 %v107
    %2264 = vmatprep.subr.mxu0 %v110
    %2265 = vmatpush1.msra.mxu0 %v109
    %2266 = vmatprep.subr.mxu0 %v112
    %2267 = vmatpush1.msra.mxu0 %v111
    %2268 = vmatprep.subr.mxu0 %v114
    %2269 = vmatpush1.msra.mxu0 %v113
    %2270 = vmatprep.subr.mxu0 0.0
    %2271 = vmatpush1.msra.mxu0 0.0
    %2272 = vmatprep.subr.mxu0 0.0
    %2273 = vmatpush1.msra.mxu0 0.0
    %2274 = vmatprep.subr.mxu0 0.0
    %2275 = vmatpush1.msra.mxu0 0.0
    %2276 = vmatprep.subr.mxu0 0.0
    %2277 = vmatpush1.msra.mxu0 0.0
    %2278 = vmatprep.subr.mxu0 0.0
    %2279 = vmatpush1.msra.mxu0 0.0
    %2280 = vmatprep.subr.mxu0 0.0
    %2281 = vmatpush1.msra.mxu0 0.0
    %2282 = vmatprep.subr.mxu0 0.0
    %2283 = vmatpush1.msra.mxu0 0.0
    %2284 = vmatprep.subr.mxu0 0.0
    %2285 = vmatpush1.msra.mxu0 0.0
    %2286 = vmatprep.subr.mxu0 0.0
    %2287 = vmatpush1.msra.mxu0 0.0
    %2288 = vmatprep.subr.mxu0 0.0
    %2289 = vmatpush1.msra.mxu0 0.0
    %2290 = vmatprep.subr.mxu0 0.0
    %2291 = vmatpush1.msra.mxu0 0.0
    %2292 = vmatprep.subr.mxu0 0.0
    %2293 = vmatpush1.msra.mxu0 0.0
    %2294 = vmatprep.subr.mxu0 0.0
    %2295 = vmatpush1.msra.mxu0 0.0
    %2296 = vmatprep.subr.mxu0 0.0
    %2297 = vmatpush1.msra.mxu0 0.0
    %2298 = vmatprep.subr.mxu0 0.0
    %2299 = vmatpush1.msra.mxu0 0.0
    %2300 = vmatprep.subr.mxu0 0.0
    %2301 = vmatpush1.msra.mxu0 0.0
    %2302 = vmatprep.subr.mxu0 0.0
    %2303 = vmatpush1.msra.mxu0 0.0
    %2304 = vmatprep.subr.mxu0 0.0
    %2305 = vmatpush1.msra.mxu0 0.0
    %2306 = vmatprep.subr.mxu0 0.0
    %2307 = vmatpush1.msra.mxu0 0.0
    %2308 = vmatprep.subr.mxu0 0.0
    %2309 = vmatpush1.msra.mxu0 0.0
    %2310 = vmatprep.subr.mxu0 0.0
    %2311 = vmatpush1.msra.mxu0 0.0
    %2312 = vmatprep.subr.mxu0 0.0
    %2313 = vmatpush1.msra.mxu0 0.0
    %2314 = vmatprep.subr.mxu0 0.0
    %2315 = vmatpush1.msra.mxu0 0.0
    %2316 = vmatprep.subr.mxu0 0.0
    %2317 = vmatpush1.msra.mxu0 0.0
    %2318 = vmatprep.mubr.f32.mxu0 0.0
    %2319 = vmatmul.mubr.f32.gmra.mrb[0].mxu0 %v2155
    %v2320 = vpop.f32.mrb[0].mxu0
    %v2321 = vadd.f32 0.0, %v2320
    %v2322 = vpop.f32.mrb[0].mxu0
    %v2323 = vadd.f32 0.0, %v2322
    %2324 = vdwg.mxu0
    %v2326 = vsel %vm225, %v2253, 0
    %2328 = vmatprep.subr.mxu0 %v96
    %2329 = vmatpush1.msra.mxu0 %v95
    %2330 = vmatprep.subr.mxu0 %v98
    %2331 = vmatpush1.msra.mxu0 %v97
    %2332 = vmatprep.subr.mxu0 0.0
    %2333 = vmatpush1.msra.mxu0 0.0
    %2334 = vmatprep.subr.mxu0 0.0
    %2335 = vmatpush1.msra.mxu0 0.0
    %2336 = vmatprep.subr.mxu0 0.0
    %2337 = vmatpush1.msra.mxu0 0.0
    %2338 = vmatprep.subr.mxu0 0.0
    %2339 = vmatpush1.msra.mxu0 0.0
    %2340 = vmatprep.subr.mxu0 0.0
    %2341 = vmatpush1.msra.mxu0 0.0
    %2342 = vmatprep.subr.mxu0 0.0
    %2343 = vmatpush1.msra.mxu0 0.0
    %2344 = vmatprep.subr.mxu0 0.0
    %2345 = vmatpush1.msra.mxu0 0.0
    %2346 = vmatprep.subr.mxu0 0.0
    %2347 = vmatpush1.msra.mxu0 0.0
    %2348 = vmatprep.subr.mxu0 0.0
    %2349 = vmatpush1.msra.mxu0 0.0
    %2350 = vmatprep.subr.mxu0 0.0
    %2351 = vmatpush1.msra.mxu0 0.0
    %2352 = vmatprep.subr.mxu0 0.0
    %2353 = vmatpush1.msra.mxu0 0.0
    %2354 = vmatprep.subr.mxu0 0.0
    %2355 = vmatpush1.msra.mxu0 0.0
    %2356 = vmatprep.subr.mxu0 0.0
    %2357 = vmatpush1.msra.mxu0 0.0
    %2358 = vmatprep.subr.mxu0 0.0
    %2359 = vmatpush1.msra.mxu0 0.0
    %2360 = vmatprep.subr.mxu0 0.0
    %2361 = vmatpush1.msra.mxu0 0.0
    %2362 = vmatprep.subr.mxu0 0.0
    %2363 = vmatpush1.msra.mxu0 0.0
    %2364 = vmatprep.subr.mxu0 0.0
    %2365 = vmatpush1.msra.mxu0 0.0
    %2366 = vmatprep.subr.mxu0 0.0
    %2367 = vmatpush1.msra.mxu0 0.0
    %2368 = vmatprep.subr.mxu0 0.0
    %2369 = vmatpush1.msra.mxu0 0.0
    %2370 = vmatprep.subr.mxu0 0.0
    %2371 = vmatpush1.msra.mxu0 0.0
    %2372 = vmatprep.subr.mxu0 0.0
    %2373 = vmatpush1.msra.mxu0 0.0
    %2374 = vmatprep.subr.mxu0 0.0
    %2375 = vmatpush1.msra.mxu0 0.0
    %2376 = vmatprep.subr.mxu0 0.0
    %2377 = vmatpush1.msra.mxu0 0.0
    %2378 = vmatprep.subr.mxu0 0.0
    %2379 = vmatpush1.msra.mxu0 0.0
    %2380 = vmatprep.subr.mxu0 0.0
    %2381 = vmatpush1.msra.mxu0 0.0
    %2382 = vmatprep.subr.mxu0 0.0
    %2383 = vmatpush1.msra.mxu0 0.0
    %2384 = vmatprep.subr.mxu0 0.0
    %2385 = vmatpush1.msra.mxu0 0.0
    %2386 = vmatprep.subr.mxu0 0.0
    %2387 = vmatpush1.msra.mxu0 0.0
    %2388 = vmatprep.subr.mxu0 0.0
    %2389 = vmatpush1.msra.mxu0 0.0
    %2390 = vmatprep.subr.mxu0 0.0
    %2391 = vmatpush1.msra.mxu0 0.0
    %2392 = vmatprep.mubr.f32.mxu0 0.0
    %2393 = vmatmul.mubr.f32.gmra.mrb[0].mxu0 %v2326
    %v2394 = vpop.f32.mrb[0].mxu0
    %v2395 = vadd.f32 %v2321, %v2394
    %v2396 = vpop.f32.mrb[0].mxu0
    %v2397 = vadd.f32 %v2323, %v2396
    %2398 = vdwg.mxu0
    %v2399 = vadd.f32 %v2395, %v304
    %v2400 = vadd.f32 %v2397, %v308
    %v2401 = vsub.f32 0.0, %v2399
    %v2402 = vmul.f32 %v2401, 1.442695
    %v2403 = vpow.pop %v2402
    %v2404 = vadd.f32 %v2403, 1.0
    %v2405 = vrcp.pop %v2404
    %v2406 = vmul.f32 1.0, %v2405
    %v2407 = vtanh.pop %v2400
    %v2408 = vsub.f32 0.0, %v2400
    %v2409 = vmul.f32 %v2408, 1.442695
    %v2410 = vpow.pop %v2409
    %v2411 = vadd.f32 %v2410, 1.0
    %v2412 = vrcp.pop %v2411
    %v2413 = vmul.f32 1.0, %v2412
    %v2414 = vmul.f32 %v2406, %v2073
    %v2415 = vmul.f32 %v2406, %v2407
    %2417 = vrot.lane.b32.xlu0 %v2415, 64
    %v2418 = vpop.permute.xlu0 %2417
    %v2420 = vadd.f32 %v2414, %v2418
    %v2421 = vtanh.pop %v2420
    %v2422 = vmul.f32 %v2413, %v2421
    %2424 = vrot.lane.b32.xlu0 %v2251, 64
    %v2425 = vpop.permute.xlu0 %2424
    %v2426 = vsel %vm150, %v2425, 0
    %2428 = vmatprep.subr.mxu0 %v133
    %2429 = vmatpush1.msra.mxu0 %v132
    %2430 = vmatprep.subr.mxu0 %v135
    %2431 = vmatpush1.msra.mxu0 %v134
    %2432 = vmatprep.subr.mxu0 %v137
    %2433 = vmatpush1.msra.mxu0 %v136
    %2434 = vmatprep.subr.mxu0 %v139
    %2435 = vmatpush1.msra.mxu0 %v138
    %2436 = vmatprep.subr.mxu0 %v141
    %2437 = vmatpush1.msra.mxu0 %v140
    %2438 = vmatprep.subr.mxu0 %v143
    %2439 = vmatpush1.msra.mxu0 %v142
    %2440 = vmatprep.subr.mxu0 %v145
    %2441 = vmatpush1.msra.mxu0 %v144
    %2442 = vmatprep.subr.mxu0 %v147
    %2443 = vmatpush1.msra.mxu0 %v146
    %2444 = vmatprep.subr.mxu0 0.0
    %2445 = vmatpush1.msra.mxu0 0.0
    %2446 = vmatprep.subr.mxu0 0.0
    %2447 = vmatpush1.msra.mxu0 0.0
    %2448 = vmatprep.subr.mxu0 0.0
    %2449 = vmatpush1.msra.mxu0 0.0
    %2450 = vmatprep.subr.mxu0 0.0
    %2451 = vmatpush1.msra.mxu0 0.0
    %2452 = vmatprep.subr.mxu0 0.0
    %2453 = vmatpush1.msra.mxu0 0.0
    %2454 = vmatprep.subr.mxu0 0.0
    %2455 = vmatpush1.msra.mxu0 0.0
    %2456 = vmatprep.subr.mxu0 0.0
    %2457 = vmatpush1.msra.mxu0 0.0
    %2458 = vmatprep.subr.mxu0 0.0
    %2459 = vmatpush1.msra.mxu0 0.0
    %2460 = vmatprep.subr.mxu0 0.0
    %2461 = vmatpush1.msra.mxu0 0.0
    %2462 = vmatprep.subr.mxu0 0.0
    %2463 = vmatpush1.msra.mxu0 0.0
    %2464 = vmatprep.subr.mxu0 0.0
    %2465 = vmatpush1.msra.mxu0 0.0
    %2466 = vmatprep.subr.mxu0 0.0
    %2467 = vmatpush1.msra.mxu0 0.0
    %2468 = vmatprep.subr.mxu0 0.0
    %2469 = vmatpush1.msra.mxu0 0.0
    %2470 = vmatprep.subr.mxu0 0.0
    %2471 = vmatpush1.msra.mxu0 0.0
    %2472 = vmatprep.subr.mxu0 0.0
    %2473 = vmatpush1.msra.mxu0 0.0
    %2474 = vmatprep.subr.mxu0 0.0
    %2475 = vmatpush1.msra.mxu0 0.0
    %2476 = vmatprep.subr.mxu0 0.0
    %2477 = vmatpush1.msra.mxu0 0.0
    %2478 = vmatprep.subr.mxu0 0.0
    %2479 = vmatpush1.msra.mxu0 0.0
    %2480 = vmatprep.subr.mxu0 0.0
    %2481 = vmatpush1.msra.mxu0 0.0
    %2482 = vmatprep.subr.mxu0 0.0
    %2483 = vmatpush1.msra.mxu0 0.0
    %2484 = vmatprep.subr.mxu0 0.0
    %2485 = vmatpush1.msra.mxu0 0.0
    %2486 = vmatprep.subr.mxu0 0.0
    %2487 = vmatpush1.msra.mxu0 0.0
    %2488 = vmatprep.subr.mxu0 0.0
    %2489 = vmatpush1.msra.mxu0 0.0
    %2490 = vmatprep.subr.mxu0 0.0
    %2491 = vmatpush1.msra.mxu0 0.0
    %2492 = vmatprep.mubr.f32.mxu0 0.0
    %2493 = vmatmul.mubr.f32.gmra.mrb[0].mxu0 %v2426
    %v2494 = vpop.f32.mrb[0].mxu0
    %v2495 = vadd.f32 0.0, %v2494
    %v2496 = vpop.f32.mrb[0].mxu0
    %v2497 = vadd.f32 0.0, %v2496
    %2498 = vdwg.mxu0
    %2500 = vrot.lane.b32.xlu0 %v2422, 64
    %v2501 = vpop.permute.xlu0 %2500
    %v2502 = vsel %vm150, %v2501, 0
    %2504 = vmatprep.subr.mxu0 %v117
    %2505 = vmatpush1.msra.mxu0 %v116
    %2506 = vmatprep.subr.mxu0 %v119
    %2507 = vmatpush1.msra.mxu0 %v118
    %2508 = vmatprep.subr.mxu0 %v121
    %2509 = vmatpush1.msra.mxu0 %v120
    %2510 = vmatprep.subr.mxu0 %v123
    %2511 = vmatpush1.msra.mxu0 %v122
    %2512 = vmatprep.subr.mxu0 %v125
    %2513 = vmatpush1.msra.mxu0 %v124
    %2514 = vmatprep.subr.mxu0 %v127
    %2515 = vmatpush1.msra.mxu0 %v126
    %2516 = vmatprep.subr.mxu0 %v129
    %2517 = vmatpush1.msra.mxu0 %v128
    %2518 = vmatprep.subr.mxu0 %v131
    %2519 = vmatpush1.msra.mxu0 %v130
    %2520 = vmatprep.subr.mxu0 0.0
    %2521 = vmatpush1.msra.mxu0 0.0
    %2522 = vmatprep.subr.mxu0 0.0
    %2523 = vmatpush1.msra.mxu0 0.0
    %2524 = vmatprep.subr.mxu0 0.0
    %2525 = vmatpush1.msra.mxu0 0.0
    %2526 = vmatprep.subr.mxu0 0.0
    %2527 = vmatpush1.msra.mxu0 0.0
    %2528 = vmatprep.subr.mxu0 0.0
    %2529 = vmatpush1.msra.mxu0 0.0
    %2530 = vmatprep.subr.mxu0 0.0
    %2531 = vmatpush1.msra.mxu0 0.0
    %2532 = vmatprep.subr.mxu0 0.0
    %2533 = vmatpush1.msra.mxu0 0.0
    %2534 = vmatprep.subr.mxu0 0.0
    %2535 = vmatpush1.msra.mxu0 0.0
    %2536 = vmatprep.subr.mxu0 0.0
    %2537 = vmatpush1.msra.mxu0 0.0
    %2538 = vmatprep.subr.mxu0 0.0
    %2539 = vmatpush1.msra.mxu0 0.0
    %2540 = vmatprep.subr.mxu0 0.0
    %2541 = vmatpush1.msra.mxu0 0.0
    %2542 = vmatprep.subr.mxu0 0.0
    %2543 = vmatpush1.msra.mxu0 0.0
    %2544 = vmatprep.subr.mxu0 0.0
    %2545 = vmatpush1.msra.mxu0 0.0
    %2546 = vmatprep.subr.mxu0 0.0
    %2547 = vmatpush1.msra.mxu0 0.0
    %2548 = vmatprep.subr.mxu0 0.0
    %2549 = vmatpush1.msra.mxu0 0.0
    %2550 = vmatprep.subr.mxu0 0.0
    %2551 = vmatpush1.msra.mxu0 0.0
    %2552 = vmatprep.subr.mxu0 0.0
    %2553 = vmatpush1.msra.mxu0 0.0
    %2554 = vmatprep.subr.mxu0 0.0
    %2555 = vmatpush1.msra.mxu0 0.0
    %2556 = vmatprep.subr.mxu0 0.0
    %2557 = vmatpush1.msra.mxu0 0.0
    %2558 = vmatprep.subr.mxu0 0.0
    %2559 = vmatpush1.msra.mxu0 0.0
    %2560 = vmatprep.subr.mxu0 0.0
    %2561 = vmatpush1.msra.mxu0 0.0
    %2562 = vmatprep.subr.mxu0 0.0
    %2563 = vmatpush1.msra.mxu0 0.0
    %2564 = vmatprep.subr.mxu0 0.0
    %2565 = vmatpush1.msra.mxu0 0.0
    %2566 = vmatprep.subr.mxu0 0.0
    %2567 = vmatpush1.msra.mxu0 0.0
    %2568 = vmatprep.mubr.f32.mxu0 0.0
    %2569 = vmatmul.mubr.f32.gmra.mrb[0].mxu0 %v2502
    %v2570 = vpop.f32.mrb[0].mxu0
    %v2571 = vadd.f32 %v2495, %v2570
    %v2572 = vpop.f32.mrb[0].mxu0
    %v2573 = vadd.f32 %v2497, %v2572
    %2574 = vdwg.mxu0
    %v2575 = vadd.f32 %v2571, %v486
    %v2576 = vadd.f32 %v2573, %v490
    %v2577 = vsub.f32 0.0, %v2575
    %v2578 = vmul.f32 %v2577, 1.442695
    %v2579 = vpow.pop %v2578
    %v2580 = vadd.f32 %v2579, 1.0
    %v2581 = vrcp.pop %v2580
    %v2582 = vmul.f32 1.0, %v2581
    %v2583 = vtanh.pop %v2576
    %v2584 = vsub.f32 0.0, %v2576
    %v2585 = vmul.f32 %v2584, 1.442695
    %v2586 = vpow.pop %v2585
    %v2587 = vadd.f32 %v2586, 1.0
    %v2588 = vrcp.pop %v2587
    %v2589 = vmul.f32 1.0, %v2588
    %v2590 = vmul.f32 %v2582, %v2249
    %v2591 = vmul.f32 %v2582, %v2583
    %2593 = vrot.lane.b32.xlu0 %v2591, 64
    %v2594 = vpop.permute.xlu0 %2593
    %v2596 = vadd.f32 %v2590, %v2594
    %v2597 = vtanh.pop %v2596
    %v2598 = vmul.f32 %v2589, %v2597
    %s2599 = scalar_lea.vmem [#allocation2], 7
    %v2600 = vld [vmem:[%s2599] sm:$0x1]
    %2601 = vmatprep.subr.mxu0 %v100
    %2602 = vmatpush1.msra.mxu0 %v99
    %2603 = vmatprep.subr.mxu0 %v102
    %2604 = vmatpush1.msra.mxu0 %v101
    %2605 = vmatprep.subr.mxu0 %v104
    %2606 = vmatpush1.msra.mxu0 %v103
    %2607 = vmatprep.subr.mxu0 %v106
    %2608 = vmatpush1.msra.mxu0 %v105
    %2609 = vmatprep.subr.mxu0 %v108
    %2610 = vmatpush1.msra.mxu0 %v107
    %2611 = vmatprep.subr.mxu0 %v110
    %2612 = vmatpush1.msra.mxu0 %v109
    %2613 = vmatprep.subr.mxu0 %v112
    %2614 = vmatpush1.msra.mxu0 %v111
    %2615 = vmatprep.subr.mxu0 %v114
    %2616 = vmatpush1.msra.mxu0 %v113
    %2617 = vmatprep.subr.mxu0 0.0
    %2618 = vmatpush1.msra.mxu0 0.0
    %2619 = vmatprep.subr.mxu0 0.0
    %2620 = vmatpush1.msra.mxu0 0.0
    %2621 = vmatprep.subr.mxu0 0.0
    %2622 = vmatpush1.msra.mxu0 0.0
    %2623 = vmatprep.subr.mxu0 0.0
    %2624 = vmatpush1.msra.mxu0 0.0
    %2625 = vmatprep.subr.mxu0 0.0
    %2626 = vmatpush1.msra.mxu0 0.0
    %2627 = vmatprep.subr.mxu0 0.0
    %2628 = vmatpush1.msra.mxu0 0.0
    %2629 = vmatprep.subr.mxu0 0.0
    %2630 = vmatpush1.msra.mxu0 0.0
    %2631 = vmatprep.subr.mxu0 0.0
    %2632 = vmatpush1.msra.mxu0 0.0
    %2633 = vmatprep.subr.mxu0 0.0
    %2634 = vmatpush1.msra.mxu0 0.0
    %2635 = vmatprep.subr.mxu0 0.0
    %2636 = vmatpush1.msra.mxu0 0.0
    %2637 = vmatprep.subr.mxu0 0.0
    %2638 = vmatpush1.msra.mxu0 0.0
    %2639 = vmatprep.subr.mxu0 0.0
    %2640 = vmatpush1.msra.mxu0 0.0
    %2641 = vmatprep.subr.mxu0 0.0
    %2642 = vmatpush1.msra.mxu0 0.0
    %2643 = vmatprep.subr.mxu0 0.0
    %2644 = vmatpush1.msra.mxu0 0.0
    %2645 = vmatprep.subr.mxu0 0.0
    %2646 = vmatpush1.msra.mxu0 0.0
    %2647 = vmatprep.subr.mxu0 0.0
    %2648 = vmatpush1.msra.mxu0 0.0
    %2649 = vmatprep.subr.mxu0 0.0
    %2650 = vmatpush1.msra.mxu0 0.0
    %2651 = vmatprep.subr.mxu0 0.0
    %2652 = vmatpush1.msra.mxu0 0.0
    %2653 = vmatprep.subr.mxu0 0.0
    %2654 = vmatpush1.msra.mxu0 0.0
    %2655 = vmatprep.subr.mxu0 0.0
    %2656 = vmatpush1.msra.mxu0 0.0
    %2657 = vmatprep.subr.mxu0 0.0
    %2658 = vmatpush1.msra.mxu0 0.0
    %2659 = vmatprep.subr.mxu0 0.0
    %2660 = vmatpush1.msra.mxu0 0.0
    %2661 = vmatprep.subr.mxu0 0.0
    %2662 = vmatpush1.msra.mxu0 0.0
    %2663 = vmatprep.subr.mxu0 0.0
    %2664 = vmatpush1.msra.mxu0 0.0
    %2665 = vmatprep.mubr.f32.mxu0 0.0
    %2666 = vmatmul.mubr.f32.gmra.mrb[0].mxu0 %v2502
    %v2667 = vpop.f32.mrb[0].mxu0
    %v2668 = vadd.f32 0.0, %v2667
    %v2669 = vpop.f32.mrb[0].mxu0
    %v2670 = vadd.f32 0.0, %v2669
    %2671 = vdwg.mxu0
    %v2673 = vsel %vm225, %v2600, 0
    %2675 = vmatprep.subr.mxu0 %v96
    %2676 = vmatpush1.msra.mxu0 %v95
    %2677 = vmatprep.subr.mxu0 %v98
    %2678 = vmatpush1.msra.mxu0 %v97
    %2679 = vmatprep.subr.mxu0 0.0
    %2680 = vmatpush1.msra.mxu0 0.0
    %2681 = vmatprep.subr.mxu0 0.0
    %2682 = vmatpush1.msra.mxu0 0.0
    %2683 = vmatprep.subr.mxu0 0.0
    %2684 = vmatpush1.msra.mxu0 0.0
    %2685 = vmatprep.subr.mxu0 0.0
    %2686 = vmatpush1.msra.mxu0 0.0
    %2687 = vmatprep.subr.mxu0 0.0
    %2688 = vmatpush1.msra.mxu0 0.0
    %2689 = vmatprep.subr.mxu0 0.0
    %2690 = vmatpush1.msra.mxu0 0.0
    %2691 = vmatprep.subr.mxu0 0.0
    %2692 = vmatpush1.msra.mxu0 0.0
    %2693 = vmatprep.subr.mxu0 0.0
    %2694 = vmatpush1.msra.mxu0 0.0
    %2695 = vmatprep.subr.mxu0 0.0
    %2696 = vmatpush1.msra.mxu0 0.0
    %2697 = vmatprep.subr.mxu0 0.0
    %2698 = vmatpush1.msra.mxu0 0.0
    %2699 = vmatprep.subr.mxu0 0.0
    %2700 = vmatpush1.msra.mxu0 0.0
    %2701 = vmatprep.subr.mxu0 0.0
    %2702 = vmatpush1.msra.mxu0 0.0
    %2703 = vmatprep.subr.mxu0 0.0
    %2704 = vmatpush1.msra.mxu0 0.0
    %2705 = vmatprep.subr.mxu0 0.0
    %2706 = vmatpush1.msra.mxu0 0.0
    %2707 = vmatprep.subr.mxu0 0.0
    %2708 = vmatpush1.msra.mxu0 0.0
    %2709 = vmatprep.subr.mxu0 0.0
    %2710 = vmatpush1.msra.mxu0 0.0
    %2711 = vmatprep.subr.mxu0 0.0
    %2712 = vmatpush1.msra.mxu0 0.0
    %2713 = vmatprep.subr.mxu0 0.0
    %2714 = vmatpush1.msra.mxu0 0.0
    %2715 = vmatprep.subr.mxu0 0.0
    %2716 = vmatpush1.msra.mxu0 0.0
    %2717 = vmatprep.subr.mxu0 0.0
    %2718 = vmatpush1.msra.mxu0 0.0
    %2719 = vmatprep.subr.mxu0 0.0
    %2720 = vmatpush1.msra.mxu0 0.0
    %2721 = vmatprep.subr.mxu0 0.0
    %2722 = vmatpush1.msra.mxu0 0.0
    %2723 = vmatprep.subr.mxu0 0.0
    %2724 = vmatpush1.msra.mxu0 0.0
    %2725 = vmatprep.subr.mxu0 0.0
    %2726 = vmatpush1.msra.mxu0 0.0
    %2727 = vmatprep.subr.mxu0 0.0
    %2728 = vmatpush1.msra.mxu0 0.0
    %2729 = vmatprep.subr.mxu0 0.0
    %2730 = vmatpush1.msra.mxu0 0.0
    %2731 = vmatprep.subr.mxu0 0.0
    %2732 = vmatpush1.msra.mxu0 0.0
    %2733 = vmatprep.subr.mxu0 0.0
    %2734 = vmatpush1.msra.mxu0 0.0
    %2735 = vmatprep.subr.mxu0 0.0
    %2736 = vmatpush1.msra.mxu0 0.0
    %2737 = vmatprep.subr.mxu0 0.0
    %2738 = vmatpush1.msra.mxu0 0.0
    %2739 = vmatprep.mubr.f32.mxu0 0.0
    %2740 = vmatmul.mubr.f32.gmra.mrb[0].mxu0 %v2673
    %v2741 = vpop.f32.mrb[0].mxu0
    %v2742 = vadd.f32 %v2668, %v2741
    %v2743 = vpop.f32.mrb[0].mxu0
    %v2744 = vadd.f32 %v2670, %v2743
    %2745 = vdwg.mxu0
    %v2746 = vadd.f32 %v2742, %v304
    %v2747 = vadd.f32 %v2744, %v308
    %v2748 = vsub.f32 0.0, %v2746
    %v2749 = vmul.f32 %v2748, 1.442695
    %v2750 = vpow.pop %v2749
    %v2751 = vadd.f32 %v2750, 1.0
    %v2752 = vrcp.pop %v2751
    %v2753 = vmul.f32 1.0, %v2752
    %v2754 = vtanh.pop %v2747
    %v2755 = vsub.f32 0.0, %v2747
    %v2756 = vmul.f32 %v2755, 1.442695
    %v2757 = vpow.pop %v2756
    %v2758 = vadd.f32 %v2757, 1.0
    %v2759 = vrcp.pop %v2758
    %v2760 = vmul.f32 1.0, %v2759
    %v2761 = vmul.f32 %v2753, %v2420
    %v2762 = vmul.f32 %v2753, %v2754
    %2764 = vrot.lane.b32.xlu0 %v2762, 64
    %v2765 = vpop.permute.xlu0 %2764
    %v2767 = vadd.f32 %v2761, %v2765
    %v2768 = vtanh.pop %v2767
    %v2769 = vmul.f32 %v2760, %v2768
    %2771 = vrot.lane.b32.xlu0 %v2598, 64
    %v2772 = vpop.permute.xlu0 %2771
    %v2773 = vsel %vm150, %v2772, 0
    %2775 = vmatprep.subr.mxu0 %v133
    %2776 = vmatpush1.msra.mxu0 %v132
    %2777 = vmatprep.subr.mxu0 %v135
    %2778 = vmatpush1.msra.mxu0 %v134
    %2779 = vmatprep.subr.mxu0 %v137
    %2780 = vmatpush1.msra.mxu0 %v136
    %2781 = vmatprep.subr.mxu0 %v139
    %2782 = vmatpush1.msra.mxu0 %v138
    %2783 = vmatprep.subr.mxu0 %v141
    %2784 = vmatpush1.msra.mxu0 %v140
    %2785 = vmatprep.subr.mxu0 %v143
    %2786 = vmatpush1.msra.mxu0 %v142
    %2787 = vmatprep.subr.mxu0 %v145
    %2788 = vmatpush1.msra.mxu0 %v144
    %2789 = vmatprep.subr.mxu0 %v147
    %2790 = vmatpush1.msra.mxu0 %v146
    %2791 = vmatprep.subr.mxu0 0.0
    %2792 = vmatpush1.msra.mxu0 0.0
    %2793 = vmatprep.subr.mxu0 0.0
    %2794 = vmatpush1.msra.mxu0 0.0
    %2795 = vmatprep.subr.mxu0 0.0
    %2796 = vmatpush1.msra.mxu0 0.0
    %2797 = vmatprep.subr.mxu0 0.0
    %2798 = vmatpush1.msra.mxu0 0.0
    %2799 = vmatprep.subr.mxu0 0.0
    %2800 = vmatpush1.msra.mxu0 0.0
    %2801 = vmatprep.subr.mxu0 0.0
    %2802 = vmatpush1.msra.mxu0 0.0
    %2803 = vmatprep.subr.mxu0 0.0
    %2804 = vmatpush1.msra.mxu0 0.0
    %2805 = vmatprep.subr.mxu0 0.0
    %2806 = vmatpush1.msra.mxu0 0.0
    %2807 = vmatprep.subr.mxu0 0.0
    %2808 = vmatpush1.msra.mxu0 0.0
    %2809 = vmatprep.subr.mxu0 0.0
    %2810 = vmatpush1.msra.mxu0 0.0
    %2811 = vmatprep.subr.mxu0 0.0
    %2812 = vmatpush1.msra.mxu0 0.0
    %2813 = vmatprep.subr.mxu0 0.0
    %2814 = vmatpush1.msra.mxu0 0.0
    %2815 = vmatprep.subr.mxu0 0.0
    %2816 = vmatpush1.msra.mxu0 0.0
    %2817 = vmatprep.subr.mxu0 0.0
    %2818 = vmatpush1.msra.mxu0 0.0
    %2819 = vmatprep.subr.mxu0 0.0
    %2820 = vmatpush1.msra.mxu0 0.0
    %2821 = vmatprep.subr.mxu0 0.0
    %2822 = vmatpush1.msra.mxu0 0.0
    %2823 = vmatprep.subr.mxu0 0.0
    %2824 = vmatpush1.msra.mxu0 0.0
    %2825 = vmatprep.subr.mxu0 0.0
    %2826 = vmatpush1.msra.mxu0 0.0
    %2827 = vmatprep.subr.mxu0 0.0
    %2828 = vmatpush1.msra.mxu0 0.0
    %2829 = vmatprep.subr.mxu0 0.0
    %2830 = vmatpush1.msra.mxu0 0.0
    %2831 = vmatprep.subr.mxu0 0.0
    %2832 = vmatpush1.msra.mxu0 0.0
    %2833 = vmatprep.subr.mxu0 0.0
    %2834 = vmatpush1.msra.mxu0 0.0
    %2835 = vmatprep.subr.mxu0 0.0
    %2836 = vmatpush1.msra.mxu0 0.0
    %2837 = vmatprep.subr.mxu0 0.0
    %2838 = vmatpush1.msra.mxu0 0.0
    %2839 = vmatprep.mubr.f32.mxu0 0.0
    %2840 = vmatmul.mubr.f32.gmra.mrb[0].mxu0 %v2773
    %v2841 = vpop.f32.mrb[0].mxu0
    %v2842 = vadd.f32 0.0, %v2841
    %v2843 = vpop.f32.mrb[0].mxu0
    %v2844 = vadd.f32 0.0, %v2843
    %2845 = vdwg.mxu0
    %2847 = vrot.lane.b32.xlu0 %v2769, 64
    %v2848 = vpop.permute.xlu0 %2847
    %v2849 = vsel %vm150, %v2848, 0
    %2851 = vmatprep.subr.mxu0 %v117
    %2852 = vmatpush1.msra.mxu0 %v116
    %2853 = vmatprep.subr.mxu0 %v119
    %2854 = vmatpush1.msra.mxu0 %v118
    %2855 = vmatprep.subr.mxu0 %v121
    %2856 = vmatpush1.msra.mxu0 %v120
    %2857 = vmatprep.subr.mxu0 %v123
    %2858 = vmatpush1.msra.mxu0 %v122
    %2859 = vmatprep.subr.mxu0 %v125
    %2860 = vmatpush1.msra.mxu0 %v124
    %2861 = vmatprep.subr.mxu0 %v127
    %2862 = vmatpush1.msra.mxu0 %v126
    %2863 = vmatprep.subr.mxu0 %v129
    %2864 = vmatpush1.msra.mxu0 %v128
    %2865 = vmatprep.subr.mxu0 %v131
    %2866 = vmatpush1.msra.mxu0 %v130
    %2867 = vmatprep.subr.mxu0 0.0
    %2868 = vmatpush1.msra.mxu0 0.0
    %2869 = vmatprep.subr.mxu0 0.0
    %2870 = vmatpush1.msra.mxu0 0.0
    %2871 = vmatprep.subr.mxu0 0.0
    %2872 = vmatpush1.msra.mxu0 0.0
    %2873 = vmatprep.subr.mxu0 0.0
    %2874 = vmatpush1.msra.mxu0 0.0
    %2875 = vmatprep.subr.mxu0 0.0
    %2876 = vmatpush1.msra.mxu0 0.0
    %2877 = vmatprep.subr.mxu0 0.0
    %2878 = vmatpush1.msra.mxu0 0.0
    %2879 = vmatprep.subr.mxu0 0.0
    %2880 = vmatpush1.msra.mxu0 0.0
    %2881 = vmatprep.subr.mxu0 0.0
    %2882 = vmatpush1.msra.mxu0 0.0
    %2883 = vmatprep.subr.mxu0 0.0
    %2884 = vmatpush1.msra.mxu0 0.0
    %2885 = vmatprep.subr.mxu0 0.0
    %2886 = vmatpush1.msra.mxu0 0.0
    %2887 = vmatprep.subr.mxu0 0.0
    %2888 = vmatpush1.msra.mxu0 0.0
    %2889 = vmatprep.subr.mxu0 0.0
    %2890 = vmatpush1.msra.mxu0 0.0
    %2891 = vmatprep.subr.mxu0 0.0
    %2892 = vmatpush1.msra.mxu0 0.0
    %2893 = vmatprep.subr.mxu0 0.0
    %2894 = vmatpush1.msra.mxu0 0.0
    %2895 = vmatprep.subr.mxu0 0.0
    %2896 = vmatpush1.msra.mxu0 0.0
    %2897 = vmatprep.subr.mxu0 0.0
    %2898 = vmatpush1.msra.mxu0 0.0
    %2899 = vmatprep.subr.mxu0 0.0
    %2900 = vmatpush1.msra.mxu0 0.0
    %2901 = vmatprep.subr.mxu0 0.0
    %2902 = vmatpush1.msra.mxu0 0.0
    %2903 = vmatprep.subr.mxu0 0.0
    %2904 = vmatpush1.msra.mxu0 0.0
    %2905 = vmatprep.subr.mxu0 0.0
    %2906 = vmatpush1.msra.mxu0 0.0
    %2907 = vmatprep.subr.mxu0 0.0
    %2908 = vmatpush1.msra.mxu0 0.0
    %2909 = vmatprep.subr.mxu0 0.0
    %2910 = vmatpush1.msra.mxu0 0.0
    %2911 = vmatprep.subr.mxu0 0.0
    %2912 = vmatpush1.msra.mxu0 0.0
    %2913 = vmatprep.subr.mxu0 0.0
    %2914 = vmatpush1.msra.mxu0 0.0
    %2915 = vmatprep.mubr.f32.mxu0 0.0
    %2916 = vmatmul.mubr.f32.gmra.mrb[0].mxu0 %v2849
    %v2917 = vpop.f32.mrb[0].mxu0
    %v2918 = vadd.f32 %v2842, %v2917
    %v2919 = vpop.f32.mrb[0].mxu0
    %v2920 = vadd.f32 %v2844, %v2919
    %2921 = vdwg.mxu0
    %v2922 = vadd.f32 %v2918, %v486
    %v2923 = vadd.f32 %v2920, %v490
    %v2924 = vsub.f32 0.0, %v2922
    %v2925 = vmul.f32 %v2924, 1.442695
    %v2926 = vpow.pop %v2925
    %v2927 = vadd.f32 %v2926, 1.0
    %v2928 = vrcp.pop %v2927
    %v2929 = vmul.f32 1.0, %v2928
    %v2930 = vtanh.pop %v2923
    %v2931 = vsub.f32 0.0, %v2923
    %v2932 = vmul.f32 %v2931, 1.442695
    %v2933 = vpow.pop %v2932
    %v2934 = vadd.f32 %v2933, 1.0
    %v2935 = vrcp.pop %v2934
    %v2936 = vmul.f32 1.0, %v2935
    %v2937 = vmul.f32 %v2929, %v2596
    %v2938 = vmul.f32 %v2929, %v2930
    %2940 = vrot.lane.b32.xlu0 %v2938, 64
    %v2941 = vpop.permute.xlu0 %2940
    %v2943 = vadd.f32 %v2937, %v2941
    %v2944 = vtanh.pop %v2943
    %v2945 = vmul.f32 %v2936, %v2944
    %2947 = vrot.lane.b32.xlu0 %v2945, 64
    %v2948 = vpop.permute.xlu0 %2947
    %vm2950 = vcmask 516096
    %2951 = vst.msk [vmem:[#allocation11] sm:$0x1] %vm2950, %v2948
    // Predicated region
    $region50: #{tpu_custom_call.1} parent=1 // pred_check
      _
    $region51: #{tpu_custom_call.1} parent=1 // pred_check_branch
      %2953 = sbr.rel (0) target = $region53
    $region52: #{tpu_custom_call.1} parent=1 // pred_region
      %s2955 = ssub.s32 16, 16
      %2956 = vsyncadd [#allocation4], %s2955
      %s2958 = sshll.u32 [#allocation11], 4
      %s2959 = int_to_ptr.vmem [resolvable:$true] %s2958
      %2961 = dma.vmem_to_hbm [thread:$0]  %s2959, 16, %s7, [#allocation4]
    $region53: #{tpu_custom_call.1} parent=1 // pred_fallthru
      _
    // Predicated region
    $region54: #{tpu_custom_call.1} parent=1 // pred_check
      _
    $region55: #{tpu_custom_call.1} parent=1 // pred_check_branch
      %2963 = sbr.rel (0) target = $region57
    $region56: #{tpu_custom_call.1} parent=1 // pred_region
      %2964 = dma.done [#allocation4], 16
    $region57: #{tpu_custom_call.1} parent=1 // pred_fallthru
      _
    %2965 = vsyncpa [#allocation3], 1
    %2966 = vsyncpa [#allocation6], 1
    %2967 = vsyncpa [#allocation9], 1
    %2968 = vsyncpa [#allocation4], 1

</llo_original>
